<compile_context>
chip_gen: v7x
topology: tpu7x:2x2x1
jax: 0.10.0
libtpu: 0.0.40
codegen_flags: <defaults>
</compile_context>

<pallas_src>
import jax
import jax.numpy as jnp
from jax.experimental import pallas as pl
from jax.experimental.pallas import tpu as pltpu


# ----------------------------------------------------------------------------
# Fused kernel: both folded 3x3 convs for one batch element.
# ----------------------------------------------------------------------------
def _downsample2_kernel(xs_ref, wa_ref, ba_ref, wb_ref, bb_ref, o_ref, hpad_ref):
    """xs_ref  : (1, Ho+1, Wo+1, 4C) bf16  space-to-depth'd padded input
       wa_ref  : (4, 4C, CA)         bf16  per-(2x2)-tap weights of folded conv A
       ba_ref  : (1, CA)             f32   folded bias A
       wb_ref  : (9, CA, CB)         bf16  per-(3x3)-tap weights of folded conv B
       bb_ref  : (1, CB)             f32   folded bias B
       o_ref   : (1, Ho, Wo, CB)     f32
       hpad_ref: (Ho+2, Wo+2, CA)    bf16  VMEM scratch (zero-padded intermediate)
    """
    _, Ho, Wo, CB = o_ref.shape
    _, K4, CA = wa_ref.shape
    M = Ho * Wo

    xs = xs_ref[0]                                      # (Ho+1, Wo+1, 4C) bf16

    # ---- layer A = conv1(3x3,s2,p1) o conv2(1x1): 4 accumulated tap matmuls.
    acc_a = jnp.zeros((M, CA), jnp.float32)
    for t, (dr, dc) in enumerate(((0, 0), (0, 1), (1, 0), (1, 1))):
        lhs = xs[dr:dr + Ho, dc:dc + Wo, :].reshape(M, K4)
        acc_a = acc_a + jnp.dot(lhs, wa_ref[t],
                                preferred_element_type=jnp.float32)
    h_a = acc_a + ba_ref[...]                           # fused bias (f32)

    # ---- zero-padded intermediate in VMEM (the padding=1 of conv3).
    hpad_ref[...] = jnp.zeros_like(hpad_ref)
    hpad_ref[1:Ho + 1, 1:Wo + 1, :] = (
        h_a.reshape(Ho, Wo, CA).astype(hpad_ref.dtype))

    # ---- layer B = conv3(3x3,s1,p1) o conv4(1x1): 9 accumulated tap matmuls.
    acc_b = jnp.zeros((M, CB), jnp.float32)
    for t in range(9):
        i, j = t // 3, t % 3
        lhs = hpad_ref[i:i + Ho, j:j + Wo, :].reshape(M, CA)
        acc_b = acc_b + jnp.dot(lhs, wb_ref[t],
                                preferred_element_type=jnp.float32)
    o_ref[...] = (acc_b + bb_ref[...]).reshape(1, Ho, Wo, CB).astype(o_ref.dtype)


# ----------------------------------------------------------------------------
# Forward pass (NCHW in / NCHW out, PyTorch semantics).
# ----------------------------------------------------------------------------
def downsample2_forward(params, x_nchw):
    w1, b1 = params['conv1']['w'], params['conv1']['b']
    w2, b2 = params['conv2']['w'], params['conv2']['b']
    w3, b3 = params['conv3']['w'], params['conv3']['b']
    w4, b4 = params['conv4']['w'], params['conv4']['b']

    # Fold the 1x1 convs into their 3x3 predecessors (valid: the module has no
    # activation/BN between convs).
    w_a = jnp.einsum('om,mikl->oikl', w2[:, :, 0, 0], w1)    # (C/2, C, 3, 3)
    b_a = w2[:, :, 0, 0] @ b1 + b2                           # (C/2,)
    w_b = jnp.einsum('om,mikl->oikl', w4[:, :, 0, 0], w3)    # (2C, C/2, 3, 3)
    b_b = w4[:, :, 0, 0] @ b3 + b4                           # (2C,)

    N, C, H, W = x_nchw.shape
    CA, CB = w_a.shape[0], w_b.shape[0]
    Ho = (H + 2 - 3) // 2 + 1
    Wo = (W + 2 - 3) // 2 + 1
    Hs, Ws = Ho + 1, Wo + 1

    # NCHW -> NHWC once.  Pad spatially: top/left = 1 (as in PyTorch); bottom/
    # right padded so the padded extent is exactly 2*(Ho+1) / 2*(Wo+1); extra
    # rows/cols beyond PyTorch's pad=1 only ever meet zero weights.
    x = jnp.transpose(x_nchw, (0, 2, 3, 1))
    pad_b = 2 * Ho + 1 - H
    pad_r = 2 * Wo + 1 - W
    xp = jnp.pad(x, ((0, 0), (1, pad_b), (1, pad_r), (0, 0)))

    # Space-to-depth (factor 2): the stride-2 3x3 conv becomes a stride-1 2x2
    # conv over (Hs, Ws, 4C).  1x HBM traffic (vs 9x for im2col); cast to bf16
    # here so the kernel reads half the bytes.
    xs = (xp.reshape(N, Hs, 2, Ws, 2, C)
            .transpose(0, 1, 3, 2, 4, 5)
            .reshape(N, Hs, Ws, 4 * C)
            .astype(jnp.bfloat16))

    # Per-tap weights for layer A on the space-to-depth input.
    # s2d channel k = (ph*2 + pw)*C + c  <->  padded pixel (2a+ph, 2b+pw, c).
    # Block tap (dr, dc) with phase (ph, pw) is original tap (2*dr+ph, 2*dc+pw);
    # combinations with i or j == 3 do not exist -> zero weights.
    w_a_taps = jnp.zeros((4, 4 * C, CA), jnp.float32)
    for dr in range(2):
        for dc in range(2):
            for ph in range(2):
                for pw in range(2):
                    i, j = 2 * dr + ph, 2 * dc + pw
                    if i < 3 and j < 3:
                        k0 = (ph * 2 + pw) * C
                        w_a_taps = w_a_taps.at[dr * 2 + dc, k0:k0 + C, :].set(
                            w_a[:, :, i, j].T)
    w_a_taps = w_a_taps.astype(jnp.bfloat16)

    # Per-tap weights for layer B (plain 3x3, stride 1, pad 1).
    w_b_taps = jnp.stack(
        [w_b[:, :, t // 3, t % 3].T for t in range(9)], axis=0
    ).astype(jnp.bfloat16)                                   # (9, CA, CB)

    flops = 2 * N * Ho * Wo * (4 * (4 * C) * CA + 9 * CA * CB)
    bytes_accessed = (N * Hs * Ws * 4 * C * 2                # xs (bf16)
                      + 4 * 4 * C * CA * 2 + 9 * CA * CB * 2  # weights (bf16)
                      + (CA + CB) * 4                         # biases (f32)
                      + N * Ho * Wo * CB * 4)                 # output (f32)

    out_nhwc = pl.pallas_call(
        _downsample2_kernel,
        out_shape=jax.ShapeDtypeStruct((N, Ho, Wo, CB), jnp.float32),
        grid=(N,),
        in_specs=[
            pl.BlockSpec((1, Hs, Ws, 4 * C), lambda n: (n, 0, 0, 0)),
            pl.BlockSpec((4, 4 * C, CA), lambda n: (0, 0, 0)),
            pl.BlockSpec((1, CA), lambda n: (0, 0)),
            pl.BlockSpec((9, CA, CB), lambda n: (0, 0, 0)),
            pl.BlockSpec((1, CB), lambda n: (0, 0)),
        ],
        out_specs=pl.BlockSpec((1, Ho, Wo, CB), lambda n: (n, 0, 0, 0)),
        scratch_shapes=[pltpu.VMEM((Ho + 2, Wo + 2, CA), jnp.bfloat16)],
        compiler_params=pltpu.CompilerParams(
            dimension_semantics=("parallel",),
            vmem_limit_bytes=32 * 1024 * 1024),
        cost_estimate=pl.CostEstimate(flops=flops, transcendentals=0,
                                      bytes_accessed=bytes_accessed),
    )(xs, w_a_taps, b_a.reshape(1, CA), w_b_taps, b_b.reshape(1, CB))

    return jnp.transpose(out_nhwc, (0, 3, 1, 2))             # NHWC -> NCHW


# ----------------------------------------------------------------------------
# Params + pure-JAX reference (independent correctness check).
# ----------------------------------------------------------------------------
def init_downsample2(key, in_channels):
    assert in_channels % 2 == 0

    def conv_init(k, cout, cin, ksize):
        kw_key, b_key = jax.random.split(k)
        return {'w': 0.1 * jax.random.normal(kw_key, (cout, cin, ksize, ksize),
                                             jnp.float32),
                'b': 0.1 * jax.random.normal(b_key, (cout,), jnp.float32)}

    k1, k2, k3, k4 = jax.random.split(key, 4)
    c = in_channels
    return {
        'conv1': conv_init(k1, 2 * c, c, 3),
        'conv2': conv_init(k2, c // 2, 2 * c, 1),
        'conv3': conv_init(k3, c // 2, c // 2, 3),
        'conv4': conv_init(k4, 2 * c, c // 2, 1),
    }


def reference_forward(params, x):
    def conv(h, w, b, stride, padding):
        y = jax.lax.conv_general_dilated(
            h, w, window_strides=(stride, stride),
            padding=[(padding, padding), (padding, padding)],
            dimension_numbers=('NCHW', 'OIHW', 'NCHW'))
        return y + b.reshape(1, -1, 1, 1)

    h = conv(x, params['conv1']['w'], params['conv1']['b'], 2, 1)
    h = conv(h, params['conv2']['w'], params['conv2']['b'], 1, 0)
    h = conv(h, params['conv3']['w'], params['conv3']['b'], 1, 1)
    h = conv(h, params['conv4']['w'], params['conv4']['b'], 1, 0)
    return h


# ----------------------------------------------------------------------------
if __name__ == "__main__":
    key = jax.random.PRNGKey(0)
    pkey, xkey = jax.random.split(key)

    in_channels = 8
    batch, H, W = 2, 32, 32
    params = init_downsample2(pkey, in_channels)
    x = jax.random.normal(xkey, (batch, in_channels, H, W), jnp.float32)

    fwd = jax.jit(downsample2_forward)
    out = jax.block_until_ready(fwd(params, x))

    assert out.shape == (batch, 2 * in_channels, H // 2, W // 2), out.shape
    assert bool(jnp.all(jnp.isfinite(out)))

    # bf16 MXU inputs + folded weights -> loose tolerance vs f32 reference.
    ref = reference_forward(params, x)
    assert bool(jnp.allclose(out, ref, rtol=5e-2, atol=5e-2)), float(
        jnp.max(jnp.abs(out - ref)))

    print("KERNEL_OK")
</pallas_src>

<mosaic_0001>
module attributes {stable_mosaic.version = 11 : i64} {
  func.func @_downsample2_kernel(%arg0: i32, %arg1: memref<1x17x17x32xbf16, #tpu.memory_space<vmem>>, %arg2: memref<4x32x4xbf16, #tpu.memory_space<vmem>>, %arg3: memref<1x4xf32, #tpu.memory_space<vmem>>, %arg4: memref<9x4x16xbf16, #tpu.memory_space<vmem>>, %arg5: memref<1x16xf32, #tpu.memory_space<vmem>>, %arg6: memref<1x16x16x16xf32, #tpu.memory_space<vmem>>, %arg7: memref<18x18x4xbf16, #tpu.memory_space<vmem>>) attributes {dimension_semantics = [#tpu.dimension_semantics<parallel>], iteration_bounds = array<i64: 2>, scalar_prefetch = 0 : i64, scratch_operands = 1 : i64, tpu.core_type = #tpu.core_type<tc>, window_params = [{transform_indices = @transform_0, window_bounds = array<i64: 1, 17, 17, 32>}, {pipeline_mode = #tpu.pipeline_mode<synchronous>, transform_indices = @transform_1, window_bounds = array<i64: 4, 32, 4>}, {pipeline_mode = #tpu.pipeline_mode<synchronous>, transform_indices = @transform_2, window_bounds = array<i64: 1, 4>}, {pipeline_mode = #tpu.pipeline_mode<synchronous>, transform_indices = @transform_3, window_bounds = array<i64: 9, 4, 16>}, {pipeline_mode = #tpu.pipeline_mode<synchronous>, transform_indices = @transform_4, window_bounds = array<i64: 1, 16>}, {transform_indices = @transform_5, window_bounds = array<i64: 1, 16, 16, 16>}]} {
    %c0 = arith.constant 0 : index
    %c0_0 = arith.constant 0 : index
    %c0_1 = arith.constant 0 : index
    %c0_2 = arith.constant 0 : index
    %0 = vector.load %arg1[%c0, %c0_0, %c0_1, %c0_2] : memref<1x17x17x32xbf16, #tpu.memory_space<vmem>>, vector<1x17x17x32xbf16>
    %1 = vector.shape_cast %0 : vector<1x17x17x32xbf16> to vector<17x17x32xbf16>
    %cst = arith.constant 0.000000e+00 : f32
    %2 = vector.broadcast %cst : f32 to vector<256x4xf32>
    %3 = vector.extract_strided_slice %1 {offsets = [0, 0, 0], sizes = [16, 16, 32], strides = [1, 1, 1]} : vector<17x17x32xbf16> to vector<16x16x32xbf16>
    %4 = vector.shape_cast %3 : vector<16x16x32xbf16> to vector<256x32xbf16>
    %c0_3 = arith.constant 0 : index
    %c0_4 = arith.constant 0 : index
    %c0_5 = arith.constant 0 : index
    %5 = vector.load %arg2[%c0_3, %c0_4, %c0_5] : memref<4x32x4xbf16, #tpu.memory_space<vmem>>, vector<1x32x4xbf16>
    %6 = vector.shape_cast %5 : vector<1x32x4xbf16> to vector<32x4xbf16>
    %cst_6 = arith.constant dense<0.000000e+00> : vector<256x4xf32>
    %7 = tpu.matmul %4, %6, %cst_6 {dimension_numbers = #tpu.dot_dimension_numbers<[1], [0], [0], [1], [0, 0, 1, 1], [], []>} : vector<256x32xbf16>, vector<32x4xbf16>, vector<256x4xf32> -> vector<256x4xf32>
    %8 = arith.addf %2, %7 : vector<256x4xf32>
    %9 = vector.extract_strided_slice %1 {offsets = [0, 1, 0], sizes = [16, 16, 32], strides = [1, 1, 1]} : vector<17x17x32xbf16> to vector<16x16x32xbf16>
    %10 = vector.shape_cast %9 : vector<16x16x32xbf16> to vector<256x32xbf16>
    %c1 = arith.constant 1 : index
    %c0_7 = arith.constant 0 : index
    %c0_8 = arith.constant 0 : index
    %11 = vector.load %arg2[%c1, %c0_7, %c0_8] : memref<4x32x4xbf16, #tpu.memory_space<vmem>>, vector<1x32x4xbf16>
    %12 = vector.shape_cast %11 : vector<1x32x4xbf16> to vector<32x4xbf16>
    %cst_9 = arith.constant dense<0.000000e+00> : vector<256x4xf32>
    %13 = tpu.matmul %10, %12, %cst_9 {dimension_numbers = #tpu.dot_dimension_numbers<[1], [0], [0], [1], [0, 0, 1, 1], [], []>} : vector<256x32xbf16>, vector<32x4xbf16>, vector<256x4xf32> -> vector<256x4xf32>
    %14 = arith.addf %8, %13 : vector<256x4xf32>
    %15 = vector.extract_strided_slice %1 {offsets = [1, 0, 0], sizes = [16, 16, 32], strides = [1, 1, 1]} : vector<17x17x32xbf16> to vector<16x16x32xbf16>
    %16 = vector.shape_cast %15 : vector<16x16x32xbf16> to vector<256x32xbf16>
    %c2 = arith.constant 2 : index
    %c0_10 = arith.constant 0 : index
    %c0_11 = arith.constant 0 : index
    %17 = vector.load %arg2[%c2, %c0_10, %c0_11] : memref<4x32x4xbf16, #tpu.memory_space<vmem>>, vector<1x32x4xbf16>
    %18 = vector.shape_cast %17 : vector<1x32x4xbf16> to vector<32x4xbf16>
    %cst_12 = arith.constant dense<0.000000e+00> : vector<256x4xf32>
    %19 = tpu.matmul %16, %18, %cst_12 {dimension_numbers = #tpu.dot_dimension_numbers<[1], [0], [0], [1], [0, 0, 1, 1], [], []>} : vector<256x32xbf16>, vector<32x4xbf16>, vector<256x4xf32> -> vector<256x4xf32>
    %20 = arith.addf %14, %19 : vector<256x4xf32>
    %21 = vector.extract_strided_slice %1 {offsets = [1, 1, 0], sizes = [16, 16, 32], strides = [1, 1, 1]} : vector<17x17x32xbf16> to vector<16x16x32xbf16>
    %22 = vector.shape_cast %21 : vector<16x16x32xbf16> to vector<256x32xbf16>
    %c3 = arith.constant 3 : index
    %c0_13 = arith.constant 0 : index
    %c0_14 = arith.constant 0 : index
    %23 = vector.load %arg2[%c3, %c0_13, %c0_14] : memref<4x32x4xbf16, #tpu.memory_space<vmem>>, vector<1x32x4xbf16>
    %24 = vector.shape_cast %23 : vector<1x32x4xbf16> to vector<32x4xbf16>
    %cst_15 = arith.constant dense<0.000000e+00> : vector<256x4xf32>
    %25 = tpu.matmul %22, %24, %cst_15 {dimension_numbers = #tpu.dot_dimension_numbers<[1], [0], [0], [1], [0, 0, 1, 1], [], []>} : vector<256x32xbf16>, vector<32x4xbf16>, vector<256x4xf32> -> vector<256x4xf32>
    %26 = arith.addf %20, %25 : vector<256x4xf32>
    %c0_16 = arith.constant 0 : index
    %c0_17 = arith.constant 0 : index
    %27 = vector.load %arg3[%c0_16, %c0_17] : memref<1x4xf32, #tpu.memory_space<vmem>>, vector<1x4xf32>
    %28 = vector.broadcast %27 : vector<1x4xf32> to vector<256x4xf32>
    %29 = arith.addf %26, %28 : vector<256x4xf32>
    %cst_18 = arith.constant 0.000000e+00 : bf16
    %30 = vector.broadcast %cst_18 : bf16 to vector<18x18x4xbf16>
    %c0_19 = arith.constant 0 : index
    %c0_20 = arith.constant 0 : index
    %c0_21 = arith.constant 0 : index
    %31 = vector.load %arg7[%c0_19, %c0_20, %c0_21] : memref<18x18x4xbf16, #tpu.memory_space<vmem>>, vector<18x18x4xbf16>
    tpu.vector_store %arg7[%c0_19, %c0_20, %c0_21], %30 {strides = array<i32>} : memref<18x18x4xbf16, #tpu.memory_space<vmem>>, vector<18x18x4xbf16>,
    %32 = vector.shape_cast %29 : vector<256x4xf32> to vector<16x16x4xf32>
    %33 = arith.truncf %32 : vector<16x16x4xf32> to vector<16x16x4xbf16>
    %c1_22 = arith.constant 1 : index
    %c1_23 = arith.constant 1 : index
    %c0_24 = arith.constant 0 : index
    %34 = vector.load %arg7[%c1_22, %c1_23, %c0_24] : memref<18x18x4xbf16, #tpu.memory_space<vmem>>, vector<16x16x4xbf16>
    tpu.vector_store %arg7[%c1_22, %c1_23, %c0_24], %33 {strides = array<i32>} : memref<18x18x4xbf16, #tpu.memory_space<vmem>>, vector<16x16x4xbf16>,
    %cst_25 = arith.constant 0.000000e+00 : f32
    %35 = vector.broadcast %cst_25 : f32 to vector<256x16xf32>
    %c0_26 = arith.constant 0 : index
    %c0_27 = arith.constant 0 : index
    %c0_28 = arith.constant 0 : index
    %36 = vector.load %arg7[%c0_26, %c0_27, %c0_28] : memref<18x18x4xbf16, #tpu.memory_space<vmem>>, vector<16x16x4xbf16>
    %37 = vector.shape_cast %36 : vector<16x16x4xbf16> to vector<256x4xbf16>
    %c0_29 = arith.constant 0 : index
    %c0_30 = arith.constant 0 : index
    %c0_31 = arith.constant 0 : index
    %38 = vector.load %arg4[%c0_29, %c0_30, %c0_31] : memref<9x4x16xbf16, #tpu.memory_space<vmem>>, vector<1x4x16xbf16>
    %39 = vector.shape_cast %38 : vector<1x4x16xbf16> to vector<4x16xbf16>
    %cst_32 = arith.constant dense<0.000000e+00> : vector<256x16xf32>
    %40 = tpu.matmul %37, %39, %cst_32 {dimension_numbers = #tpu.dot_dimension_numbers<[1], [0], [0], [1], [0, 0, 1, 1], [], []>} : vector<256x4xbf16>, vector<4x16xbf16>, vector<256x16xf32> -> vector<256x16xf32>
    %41 = arith.addf %35, %40 : vector<256x16xf32>
    %c0_33 = arith.constant 0 : index
    %c1_34 = arith.constant 1 : index
    %c0_35 = arith.constant 0 : index
    %42 = vector.load %arg7[%c0_33, %c1_34, %c0_35] : memref<18x18x4xbf16, #tpu.memory_space<vmem>>, vector<16x16x4xbf16>
    %43 = vector.shape_cast %42 : vector<16x16x4xbf16> to vector<256x4xbf16>
    %c1_36 = arith.constant 1 : index
    %c0_37 = arith.constant 0 : index
    %c0_38 = arith.constant 0 : index
    %44 = vector.load %arg4[%c1_36, %c0_37, %c0_38] : memref<9x4x16xbf16, #tpu.memory_space<vmem>>, vector<1x4x16xbf16>
    %45 = vector.shape_cast %44 : vector<1x4x16xbf16> to vector<4x16xbf16>
    %cst_39 = arith.constant dense<0.000000e+00> : vector<256x16xf32>
    %46 = tpu.matmul %43, %45, %cst_39 {dimension_numbers = #tpu.dot_dimension_numbers<[1], [0], [0], [1], [0, 0, 1, 1], [], []>} : vector<256x4xbf16>, vector<4x16xbf16>, vector<256x16xf32> -> vector<256x16xf32>
    %47 = arith.addf %41, %46 : vector<256x16xf32>
    %c0_40 = arith.constant 0 : index
    %c2_41 = arith.constant 2 : index
    %c0_42 = arith.constant 0 : index
    %48 = vector.load %arg7[%c0_40, %c2_41, %c0_42] : memref<18x18x4xbf16, #tpu.memory_space<vmem>>, vector<16x16x4xbf16>
    %49 = vector.shape_cast %48 : vector<16x16x4xbf16> to vector<256x4xbf16>
    %c2_43 = arith.constant 2 : index
    %c0_44 = arith.constant 0 : index
    %c0_45 = arith.constant 0 : index
    %50 = vector.load %arg4[%c2_43, %c0_44, %c0_45] : memref<9x4x16xbf16, #tpu.memory_space<vmem>>, vector<1x4x16xbf16>
    %51 = vector.shape_cast %50 : vector<1x4x16xbf16> to vector<4x16xbf16>
    %cst_46 = arith.constant dense<0.000000e+00> : vector<256x16xf32>
    %52 = tpu.matmul %49, %51, %cst_46 {dimension_numbers = #tpu.dot_dimension_numbers<[1], [0], [0], [1], [0, 0, 1, 1], [], []>} : vector<256x4xbf16>, vector<4x16xbf16>, vector<256x16xf32> -> vector<256x16xf32>
    %53 = arith.addf %47, %52 : vector<256x16xf32>
    %c1_47 = arith.constant 1 : index
    %c0_48 = arith.constant 0 : index
    %c0_49 = arith.constant 0 : index
    %54 = vector.load %arg7[%c1_47, %c0_48, %c0_49] : memref<18x18x4xbf16, #tpu.memory_space<vmem>>, vector<16x16x4xbf16>
    %55 = vector.shape_cast %54 : vector<16x16x4xbf16> to vector<256x4xbf16>
    %c3_50 = arith.constant 3 : index
    %c0_51 = arith.constant 0 : index
    %c0_52 = arith.constant 0 : index
    %56 = vector.load %arg4[%c3_50, %c0_51, %c0_52] : memref<9x4x16xbf16, #tpu.memory_space<vmem>>, vector<1x4x16xbf16>
    %57 = vector.shape_cast %56 : vector<1x4x16xbf16> to vector<4x16xbf16>
    %cst_53 = arith.constant dense<0.000000e+00> : vector<256x16xf32>
    %58 = tpu.matmul %55, %57, %cst_53 {dimension_numbers = #tpu.dot_dimension_numbers<[1], [0], [0], [1], [0, 0, 1, 1], [], []>} : vector<256x4xbf16>, vector<4x16xbf16>, vector<256x16xf32> -> vector<256x16xf32>
    %59 = arith.addf %53, %58 : vector<256x16xf32>
    %c1_54 = arith.constant 1 : index
    %c1_55 = arith.constant 1 : index
    %c0_56 = arith.constant 0 : index
    %60 = vector.load %arg7[%c1_54, %c1_55, %c0_56] : memref<18x18x4xbf16, #tpu.memory_space<vmem>>, vector<16x16x4xbf16>
    %61 = vector.shape_cast %60 : vector<16x16x4xbf16> to vector<256x4xbf16>
    %c4 = arith.constant 4 : index
    %c0_57 = arith.constant 0 : index
    %c0_58 = arith.constant 0 : index
    %62 = vector.load %arg4[%c4, %c0_57, %c0_58] : memref<9x4x16xbf16, #tpu.memory_space<vmem>>, vector<1x4x16xbf16>
    %63 = vector.shape_cast %62 : vector<1x4x16xbf16> to vector<4x16xbf16>
    %cst_59 = arith.constant dense<0.000000e+00> : vector<256x16xf32>
    %64 = tpu.matmul %61, %63, %cst_59 {dimension_numbers = #tpu.dot_dimension_numbers<[1], [0], [0], [1], [0, 0, 1, 1], [], []>} : vector<256x4xbf16>, vector<4x16xbf16>, vector<256x16xf32> -> vector<256x16xf32>
    %65 = arith.addf %59, %64 : vector<256x16xf32>
    %c1_60 = arith.constant 1 : index
    %c2_61 = arith.constant 2 : index
    %c0_62 = arith.constant 0 : index
    %66 = vector.load %arg7[%c1_60, %c2_61, %c0_62] : memref<18x18x4xbf16, #tpu.memory_space<vmem>>, vector<16x16x4xbf16>
    %67 = vector.shape_cast %66 : vector<16x16x4xbf16> to vector<256x4xbf16>
    %c5 = arith.constant 5 : index
    %c0_63 = arith.constant 0 : index
    %c0_64 = arith.constant 0 : index
    %68 = vector.load %arg4[%c5, %c0_63, %c0_64] : memref<9x4x16xbf16, #tpu.memory_space<vmem>>, vector<1x4x16xbf16>
    %69 = vector.shape_cast %68 : vector<1x4x16xbf16> to vector<4x16xbf16>
    %cst_65 = arith.constant dense<0.000000e+00> : vector<256x16xf32>
    %70 = tpu.matmul %67, %69, %cst_65 {dimension_numbers = #tpu.dot_dimension_numbers<[1], [0], [0], [1], [0, 0, 1, 1], [], []>} : vector<256x4xbf16>, vector<4x16xbf16>, vector<256x16xf32> -> vector<256x16xf32>
    %71 = arith.addf %65, %70 : vector<256x16xf32>
    %c2_66 = arith.constant 2 : index
    %c0_67 = arith.constant 0 : index
    %c0_68 = arith.constant 0 : index
    %72 = vector.load %arg7[%c2_66, %c0_67, %c0_68] : memref<18x18x4xbf16, #tpu.memory_space<vmem>>, vector<16x16x4xbf16>
    %73 = vector.shape_cast %72 : vector<16x16x4xbf16> to vector<256x4xbf16>
    %c6 = arith.constant 6 : index
    %c0_69 = arith.constant 0 : index
    %c0_70 = arith.constant 0 : index
    %74 = vector.load %arg4[%c6, %c0_69, %c0_70] : memref<9x4x16xbf16, #tpu.memory_space<vmem>>, vector<1x4x16xbf16>
    %75 = vector.shape_cast %74 : vector<1x4x16xbf16> to vector<4x16xbf16>
    %cst_71 = arith.constant dense<0.000000e+00> : vector<256x16xf32>
    %76 = tpu.matmul %73, %75, %cst_71 {dimension_numbers = #tpu.dot_dimension_numbers<[1], [0], [0], [1], [0, 0, 1, 1], [], []>} : vector<256x4xbf16>, vector<4x16xbf16>, vector<256x16xf32> -> vector<256x16xf32>
    %77 = arith.addf %71, %76 : vector<256x16xf32>
    %c2_72 = arith.constant 2 : index
    %c1_73 = arith.constant 1 : index
    %c0_74 = arith.constant 0 : index
    %78 = vector.load %arg7[%c2_72, %c1_73, %c0_74] : memref<18x18x4xbf16, #tpu.memory_space<vmem>>, vector<16x16x4xbf16>
    %79 = vector.shape_cast %78 : vector<16x16x4xbf16> to vector<256x4xbf16>
    %c7 = arith.constant 7 : index
    %c0_75 = arith.constant 0 : index
    %c0_76 = arith.constant 0 : index
    %80 = vector.load %arg4[%c7, %c0_75, %c0_76] : memref<9x4x16xbf16, #tpu.memory_space<vmem>>, vector<1x4x16xbf16>
    %81 = vector.shape_cast %80 : vector<1x4x16xbf16> to vector<4x16xbf16>
    %cst_77 = arith.constant dense<0.000000e+00> : vector<256x16xf32>
    %82 = tpu.matmul %79, %81, %cst_77 {dimension_numbers = #tpu.dot_dimension_numbers<[1], [0], [0], [1], [0, 0, 1, 1], [], []>} : vector<256x4xbf16>, vector<4x16xbf16>, vector<256x16xf32> -> vector<256x16xf32>
    %83 = arith.addf %77, %82 : vector<256x16xf32>
    %c2_78 = arith.constant 2 : index
    %c2_79 = arith.constant 2 : index
    %c0_80 = arith.constant 0 : index
    %84 = vector.load %arg7[%c2_78, %c2_79, %c0_80] : memref<18x18x4xbf16, #tpu.memory_space<vmem>>, vector<16x16x4xbf16>
    %85 = vector.shape_cast %84 : vector<16x16x4xbf16> to vector<256x4xbf16>
    %c8 = arith.constant 8 : index
    %c0_81 = arith.constant 0 : index
    %c0_82 = arith.constant 0 : index
    %86 = vector.load %arg4[%c8, %c0_81, %c0_82] : memref<9x4x16xbf16, #tpu.memory_space<vmem>>, vector<1x4x16xbf16>
    %87 = vector.shape_cast %86 : vector<1x4x16xbf16> to vector<4x16xbf16>
    %cst_83 = arith.constant dense<0.000000e+00> : vector<256x16xf32>
    %88 = tpu.matmul %85, %87, %cst_83 {dimension_numbers = #tpu.dot_dimension_numbers<[1], [0], [0], [1], [0, 0, 1, 1], [], []>} : vector<256x4xbf16>, vector<4x16xbf16>, vector<256x16xf32> -> vector<256x16xf32>
    %89 = arith.addf %83, %88 : vector<256x16xf32>
    %c0_84 = arith.constant 0 : index
    %c0_85 = arith.constant 0 : index
    %90 = vector.load %arg5[%c0_84, %c0_85] : memref<1x16xf32, #tpu.memory_space<vmem>>, vector<1x16xf32>
    %91 = vector.broadcast %90 : vector<1x16xf32> to vector<256x16xf32>
    %92 = arith.addf %89, %91 : vector<256x16xf32>
    %93 = vector.shape_cast %92 : vector<256x16xf32> to vector<1x16x16x16xf32>
    %c0_86 = arith.constant 0 : index
    %c0_87 = arith.constant 0 : index
    %c0_88 = arith.constant 0 : index
    %c0_89 = arith.constant 0 : index
    %94 = vector.load %arg6[%c0_86, %c0_87, %c0_88, %c0_89] : memref<1x16x16x16xf32, #tpu.memory_space<vmem>>, vector<1x16x16x16xf32>
    tpu.vector_store %arg6[%c0_86, %c0_87, %c0_88, %c0_89], %93 {strides = array<i32>} : memref<1x16x16x16xf32, #tpu.memory_space<vmem>>, vector<1x16x16x16xf32>,
    return
  }
  func.func @transform_0(%arg0: i32) -> (i32, i32, i32, i32) {
    %c0_i32 = arith.constant 0 : i32
    %c0_i32_0 = arith.constant 0 : i32
    %c0_i32_1 = arith.constant 0 : i32
    %c0_i32_2 = arith.constant 0 : i32
    return %arg0, %c0_i32, %c0_i32_0, %c0_i32_1 : i32, i32, i32, i32
  }
  func.func @transform_1(%arg0: i32) -> (i32, i32, i32) {
    %c0_i32 = arith.constant 0 : i32
    %c0_i32_0 = arith.constant 0 : i32
    %c0_i32_1 = arith.constant 0 : i32
    %c0_i32_2 = arith.constant 0 : i32
    return %c0_i32, %c0_i32_0, %c0_i32_1 : i32, i32, i32
  }
  func.func @transform_2(%arg0: i32) -> (i32, i32) {
    %c0_i32 = arith.constant 0 : i32
    %c0_i32_0 = arith.constant 0 : i32
    %c0_i32_1 = arith.constant 0 : i32
    return %c0_i32, %c0_i32_0 : i32, i32
  }
  func.func @transform_3(%arg0: i32) -> (i32, i32, i32) {
    %c0_i32 = arith.constant 0 : i32
    %c0_i32_0 = arith.constant 0 : i32
    %c0_i32_1 = arith.constant 0 : i32
    %c0_i32_2 = arith.constant 0 : i32
    return %c0_i32, %c0_i32_0, %c0_i32_1 : i32, i32, i32
  }
  func.func @transform_4(%arg0: i32) -> (i32, i32) {
    %c0_i32 = arith.constant 0 : i32
    %c0_i32_0 = arith.constant 0 : i32
    %c0_i32_1 = arith.constant 0 : i32
    return %c0_i32, %c0_i32_0 : i32, i32
  }
  func.func @transform_5(%arg0: i32) -> (i32, i32, i32, i32) {
    %c0_i32 = arith.constant 0 : i32
    %c0_i32_0 = arith.constant 0 : i32
    %c0_i32_1 = arith.constant 0 : i32
    %c0_i32_2 = arith.constant 0 : i32
    return %arg0, %c0_i32, %c0_i32_0, %c0_i32_1 : i32, i32, i32, i32
  }
}

</mosaic_0001>

<llo_original>
// kernel: downsample2_forward.1
$region0: #{downsample2_forward.1}
  #allocation0 [shape = 'u32[]', space=smem, size = 0x4, offset = 0x4, fixed_abs, tag = 'smem constant byte address 0x4 - core index']
  #allocation1 [shape = 'u32[144,128]{1,0:T(1,128)}', space=vmem, size = 0x12000, scoped, tag = 'internal scratch']
  #allocation2 [shape = 'bf16[18,18,4]{2,1,0:T(8,128)(2,1)}', space=vmem, size = 0x1b000, scoped, tag = 'scratch operand']
  %s0 = inlined_call_operand.vmem [shape: bf16[2,17,17,32], index: 0, kind: input, shape index: {}]
  %s1 = inlined_call_operand.vmem [shape: bf16[4,32,4], index: 1, kind: input, shape index: {}]
  %s2 = inlined_call_operand.vmem [shape: f32[1,4], index: 2, kind: input, shape index: {}]
  %s3 = inlined_call_operand.vmem [shape: bf16[9,4,16], index: 3, kind: input, shape index: {}]
  %s4 = inlined_call_operand.vmem [shape: f32[1,16], index: 4, kind: input, shape index: {}]
  %s5 = inlined_call_operand.vmem [shape: f32[2,16,16,16], index: 5, kind: output, shape index: {}]
  %s6 = sld [smem:[#allocation0]]
  $region53: #{downsample2_forward.1} parent=0
    _
  %s8 = ssub.s32 1, %s6
  %s9 = scalar_select 0, %s8, %s6
  loop: start=0, step=1, limit=4
  $region2: #{downsample2_forward.1} parent=0 // loop_pre_header
    _
  $region3: #{downsample2_forward.1} parent=0 // loop_header
    %s11 = sphi 0, %s15
    %p12 = scmp.ge.s32.totalorder %s11, 4
    %s21 = sphi 0, %s23
    %s24 = sphi 0, %s21
    %s25 = sphi 0, %s24
    %s41 = sphi 0, %s25
    %s45 = sphi 0, %s45
    %s47 = sphi 0, %s45
    %s48 = sphi 0, %s47
    %s62 = sphi 0, %s48
    %s66 = sphi 0, %s66
    %s68 = sphi 0, %s66
    %s69 = sphi 0, %s68
    %s83 = sphi 0, %s69
    %s87 = sphi 0, %s87
    %s89 = sphi 0, %s87
    %s90 = sphi 0, %s89
    %s104 = sphi 0, %s90
    %s108 = sphi 0, %s108
    %s110 = sphi 0, %s108
    %s111 = sphi 0, %s110
    %s125 = sphi 0, %s111
    %s131 = sphi 0, %s133
    %s134 = sphi 0, %s131
    %s135 = sphi 0, %s134
    %s151 = sphi 0, %s135
  $region4: #{downsample2_forward.1} parent=0 // loop_header_branch
    %14 = sbr.rel (%p12) target = $region8
  $region5: #{downsample2_forward.1} parent=0 // loop_body
    %s16 = ssub.s32 %s11, 1
    %s17 = ssub.s32 %s11, 2
    %s18 = sadd.s32 %s11, 1
    %s19 = ssub.s32 %s11, %s18
    %p20 = scmp.eq.s32.totalorder %s19, 0
    %s22 = sadd.s32 %s21, 1
    %s23 = scalar_select %p20, %s21, %s22
    %p26 = pneg %p20
    %p27 = scmp.eq.s32.totalorder %s11, 1
    %p28 = por %p26, %p27
    %p29 = scmp.ne.s32.totalorder %s21, %s24
    %p30 = scmp.eq.s32.totalorder %s11, 0
    %p31 = por %p29, %p30
    %p32 = scmp.ne.s32.totalorder %s21, %s24
    %p33 = scmp.eq.s32.totalorder %s16, 1
    %p34 = por %p32, %p33
    %p35 = scmp.ne.s32.totalorder %s24, %s25
    %p36 = scmp.eq.s32.totalorder %s16, 0
    %p37 = por %p35, %p36
    %p38 = scmp.ne.s32.totalorder %s24, %s25
    %p39 = scmp.eq.s32.totalorder %s17, 1
    %p40 = por %p38, %p39
    %p42 = scmp.ne.s32.totalorder %s25, %s41
    %p43 = scmp.eq.s32.totalorder %s17, 0
    %p44 = por %p42, %p43
    %s46 = sadd.s32 %s45, 1
    %p49 = scmp.eq.s32.totalorder %s11, 1
    %p50 = scmp.ne.s32.totalorder %s45, %s47
    %p51 = scmp.eq.s32.totalorder %s11, 0
    %p52 = por %p50, %p51
    %p53 = scmp.ne.s32.totalorder %s45, %s47
    %p54 = scmp.eq.s32.totalorder %s16, 1
    %p55 = por %p53, %p54
    %p56 = scmp.ne.s32.totalorder %s47, %s48
    %p57 = scmp.eq.s32.totalorder %s16, 0
    %p58 = por %p56, %p57
    %p59 = scmp.ne.s32.totalorder %s47, %s48
    %p60 = scmp.eq.s32.totalorder %s17, 1
    %p61 = por %p59, %p60
    %p63 = scmp.ne.s32.totalorder %s48, %s62
    %p64 = scmp.eq.s32.totalorder %s17, 0
    %p65 = por %p63, %p64
    %s67 = sadd.s32 %s66, 1
    %p70 = scmp.eq.s32.totalorder %s11, 1
    %p71 = scmp.ne.s32.totalorder %s66, %s68
    %p72 = scmp.eq.s32.totalorder %s11, 0
    %p73 = por %p71, %p72
    %p74 = scmp.ne.s32.totalorder %s66, %s68
    %p75 = scmp.eq.s32.totalorder %s16, 1
    %p76 = por %p74, %p75
    %p77 = scmp.ne.s32.totalorder %s68, %s69
    %p78 = scmp.eq.s32.totalorder %s16, 0
    %p79 = por %p77, %p78
    %p80 = scmp.ne.s32.totalorder %s68, %s69
    %p81 = scmp.eq.s32.totalorder %s17, 1
    %p82 = por %p80, %p81
    %p84 = scmp.ne.s32.totalorder %s69, %s83
    %p85 = scmp.eq.s32.totalorder %s17, 0
    %p86 = por %p84, %p85
    %s88 = sadd.s32 %s87, 1
    %p91 = scmp.eq.s32.totalorder %s11, 1
    %p92 = scmp.ne.s32.totalorder %s87, %s89
    %p93 = scmp.eq.s32.totalorder %s11, 0
    %p94 = por %p92, %p93
    %p95 = scmp.ne.s32.totalorder %s87, %s89
    %p96 = scmp.eq.s32.totalorder %s16, 1
    %p97 = por %p95, %p96
    %p98 = scmp.ne.s32.totalorder %s89, %s90
    %p99 = scmp.eq.s32.totalorder %s16, 0
    %p100 = por %p98, %p99
    %p101 = scmp.ne.s32.totalorder %s89, %s90
    %p102 = scmp.eq.s32.totalorder %s17, 1
    %p103 = por %p101, %p102
    %p105 = scmp.ne.s32.totalorder %s90, %s104
    %p106 = scmp.eq.s32.totalorder %s17, 0
    %p107 = por %p105, %p106
    %s109 = sadd.s32 %s108, 1
    %p112 = scmp.eq.s32.totalorder %s11, 1
    %p113 = scmp.ne.s32.totalorder %s108, %s110
    %p114 = scmp.eq.s32.totalorder %s11, 0
    %p115 = por %p113, %p114
    %p116 = scmp.ne.s32.totalorder %s108, %s110
    %p117 = scmp.eq.s32.totalorder %s16, 1
    %p118 = por %p116, %p117
    %p119 = scmp.ne.s32.totalorder %s110, %s111
    %p120 = scmp.eq.s32.totalorder %s16, 0
    %p121 = por %p119, %p120
    %p122 = scmp.ne.s32.totalorder %s110, %s111
    %p123 = scmp.eq.s32.totalorder %s17, 1
    %p124 = por %p122, %p123
    %p126 = scmp.ne.s32.totalorder %s111, %s125
    %p127 = scmp.eq.s32.totalorder %s17, 0
    %p128 = por %p126, %p127
    %s129 = ssub.s32 %s11, %s18
    %p130 = scmp.eq.s32.totalorder %s129, 0
    %s132 = sadd.s32 %s131, 1
    %s133 = scalar_select %p130, %s131, %s132
    %p136 = pneg %p130
    %p137 = scmp.eq.s32.totalorder %s11, 1
    %p138 = por %p136, %p137
    %p139 = scmp.ne.s32.totalorder %s131, %s134
    %p140 = scmp.eq.s32.totalorder %s11, 0
    %p141 = por %p139, %p140
    %p142 = scmp.ne.s32.totalorder %s131, %s134
    %p143 = scmp.eq.s32.totalorder %s16, 1
    %p144 = por %p142, %p143
    %p145 = scmp.ne.s32.totalorder %s134, %s135
    %p146 = scmp.eq.s32.totalorder %s16, 0
    %p147 = por %p145, %p146
    %p148 = scmp.ne.s32.totalorder %s134, %s135
    %p149 = scmp.eq.s32.totalorder %s17, 1
    %p150 = por %p148, %p149
    %p152 = scmp.ne.s32.totalorder %s135, %s151
    %p153 = scmp.eq.s32.totalorder %s17, 0
    %p154 = por %p152, %p153
    %p155 = scmp.le.s32.totalorder 1, %s11
    %p156 = scmp.lt.s32.totalorder %s11, 3
    %p157 = pnand %p155, %p156
    %p158 = pneg %p157
    // Predicated region
    $region9: #{downsample2_forward.1} parent=5 // pred_check
      _
    $region10: #{downsample2_forward.1} parent=5 // pred_check_branch
      %160 = sbr.rel (%p157) target = $region12
    $region11: #{downsample2_forward.1} parent=5 // pred_region
      %s161 = ssub.s32 %s11, 1
      // Predicated region
      $region13: #{downsample2_forward.1} parent=11 // pred_check
        %p162 = pneg %p58
      $region14: #{downsample2_forward.1} parent=11 // pred_check_branch
        %164 = sbr.rel (%p162) target = $region16
      $region15: #{downsample2_forward.1} parent=11 // pred_region
        _
      $region16: #{downsample2_forward.1} parent=11 // pred_fallthru
        _
      // Predicated region
      $region17: #{downsample2_forward.1} parent=11 // pred_check
        %p165 = pneg %p79
      $region18: #{downsample2_forward.1} parent=11 // pred_check_branch
        %167 = sbr.rel (%p165) target = $region20
      $region19: #{downsample2_forward.1} parent=11 // pred_region
        _
      $region20: #{downsample2_forward.1} parent=11 // pred_fallthru
        _
      // Predicated region
      $region21: #{downsample2_forward.1} parent=11 // pred_check
        %p168 = pneg %p100
      $region22: #{downsample2_forward.1} parent=11 // pred_check_branch
        %170 = sbr.rel (%p168) target = $region24
      $region23: #{downsample2_forward.1} parent=11 // pred_region
        _
      $region24: #{downsample2_forward.1} parent=11 // pred_fallthru
        _
      // Predicated region
      $region25: #{downsample2_forward.1} parent=11 // pred_check
        %p171 = pneg %p121
      $region26: #{downsample2_forward.1} parent=11 // pred_check_branch
        %173 = sbr.rel (%p171) target = $region28
      $region27: #{downsample2_forward.1} parent=11 // pred_region
        _
      $region28: #{downsample2_forward.1} parent=11 // pred_fallthru
        _
    $region12: #{downsample2_forward.1} parent=5 // pred_fallthru
      _
    %p174 = scmp.lt.s32.totalorder %s11, 2
    // Predicated region
    $region29: #{downsample2_forward.1} parent=5 // pred_check
      %p175 = pneg %p174
    $region30: #{downsample2_forward.1} parent=5 // pred_check_branch
      %177 = sbr.rel (%p175) target = $region32
    $region31: #{downsample2_forward.1} parent=5 // pred_region
      // Predicated region
      $region33: #{downsample2_forward.1} parent=31 // pred_check
        %p178 = pneg %p31
      $region34: #{downsample2_forward.1} parent=31 // pred_check_branch
        %180 = sbr.rel (%p178) target = $region36
      $region35: #{downsample2_forward.1} parent=31 // pred_region
        %p181 = scmp.lt.s32.totalorder %s11, 1
        %s182 = scalar_select %p181, %s11, 1
        %s183 = smul.addr %s182, 51
        %s184 = smul.addr %s183, 4
        %s185 = scalar_lea.vmem %s0, %s184
      $region36: #{downsample2_forward.1} parent=31 // pred_fallthru
        _
    $region32: #{downsample2_forward.1} parent=5 // pred_fallthru
      _
    %p186 = scmp.le.s32.totalorder 1, %s11
    %p187 = scmp.lt.s32.totalorder %s11, 3
    %p188 = pnand %p186, %p187
    %p189 = pneg %p188
    // Predicated region
    $region37: #{downsample2_forward.1} parent=5 // pred_check
      _
    $region38: #{downsample2_forward.1} parent=5 // pred_check_branch
      %191 = sbr.rel (%p188) target = $region40
    $region39: #{downsample2_forward.1} parent=5 // pred_region
      %s192 = ssub.s32 %s11, 1
      %p193 = scmp.lt.s32.totalorder %s16, 1
      %s194 = scalar_select %p193, %s16, 1
      %s195 = smul.addr %s194, 51
      %s196 = smul.addr %s195, 4
      %s197 = scalar_lea.vmem %s0, %s196
      %p198 = pneg %p37
      %p199 = pneg %p34
      %p200 = pneg %p58
      %p201 = pneg %p55
      %p202 = pneg %p79
      %p203 = pneg %p76
      %p204 = pneg %p100
      %p205 = pneg %p97
      %p206 = pneg %p121
      %p207 = pneg %p118
      %p208 = pneg %p147
      %p209 = pneg %p144
      %p210 = scmp.lt.s32.totalorder %s16, 1
      %s211 = scalar_select %p210, %s16, 1
      %s212 = smul.addr %s211, 32
      %s213 = smul.addr %s212, 8
      %s214 = scalar_lea.vmem %s5, %s213
      %p215 = scmp.lt.s32.totalorder %s16, 1
      %s216 = scalar_select %p215, %s16, 1
      %s217 = smul.addr %s216, 51
      %s218 = smul.addr %s217, 4
      %s219 = scalar_lea.vmem %s0, %s218
      %p220 = scmp.lt.s32.totalorder %s16, 1
      %s221 = scalar_select %p220, %s16, 1
      %s222 = smul.addr %s221, 32
      %s223 = smul.addr %s222, 8
      %s224 = scalar_lea.vmem %s5, %s223
      %v226 = vld [vmem:[%s219] sm:$0xf]
      %v227 = vld [vmem:[%s219 + $0x4] sm:$0xf]
      %v228 = vld [vmem:[%s219 + $0x8] sm:$0x1]
      %v229 = vld [vmem:[%s219 + $0xc] sm:$0xf]
      %v230 = vld [vmem:[%s219 + $0x10] sm:$0xf]
      %v231 = vld [vmem:[%s219 + $0x14] sm:$0x1]
      %v232 = vld [vmem:[%s219 + $0x18] sm:$0xf]
      %v233 = vld [vmem:[%s219 + $0x1c] sm:$0xf]
      %v234 = vld [vmem:[%s219 + $0x20] sm:$0x1]
      %v235 = vld [vmem:[%s219 + $0x24] sm:$0xf]
      %v236 = vld [vmem:[%s219 + $0x28] sm:$0xf]
      %v237 = vld [vmem:[%s219 + $0x2c] sm:$0x1]
      %v238 = vld [vmem:[%s219 + $0x30] sm:$0xf]
      %v239 = vld [vmem:[%s219 + $0x34] sm:$0xf]
      %v240 = vld [vmem:[%s219 + $0x38] sm:$0x1]
      %v241 = vld [vmem:[%s219 + $0x3c] sm:$0xf]
      %v242 = vld [vmem:[%s219 + $0x40] sm:$0xf]
      %v243 = vld [vmem:[%s219 + $0x44] sm:$0x1]
      %v244 = vld [vmem:[%s219 + $0x48] sm:$0xf]
      %v245 = vld [vmem:[%s219 + $0x4c] sm:$0xf]
      %v246 = vld [vmem:[%s219 + $0x50] sm:$0x1]
      %v247 = vld [vmem:[%s219 + $0x54] sm:$0xf]
      %v248 = vld [vmem:[%s219 + $0x58] sm:$0xf]
      %v249 = vld [vmem:[%s219 + $0x5c] sm:$0x1]
      %v250 = vld [vmem:[%s219 + $0x60] sm:$0xf]
      %v251 = vld [vmem:[%s219 + $0x64] sm:$0xf]
      %v252 = vld [vmem:[%s219 + $0x68] sm:$0x1]
      %v253 = vld [vmem:[%s219 + $0x6c] sm:$0xf]
      %v254 = vld [vmem:[%s219 + $0x70] sm:$0xf]
      %v255 = vld [vmem:[%s219 + $0x74] sm:$0x1]
      %v256 = vld [vmem:[%s219 + $0x78] sm:$0xf]
      %v257 = vld [vmem:[%s219 + $0x7c] sm:$0xf]
      %v258 = vld [vmem:[%s219 + $0x80] sm:$0x1]
      %v259 = vld [vmem:[%s219 + $0x84] sm:$0xf]
      %v260 = vld [vmem:[%s219 + $0x88] sm:$0xf]
      %v261 = vld [vmem:[%s219 + $0x8c] sm:$0x1]
      %v262 = vld [vmem:[%s219 + $0x90] sm:$0xf]
      %v263 = vld [vmem:[%s219 + $0x94] sm:$0xf]
      %v264 = vld [vmem:[%s219 + $0x98] sm:$0x1]
      %v265 = vld [vmem:[%s219 + $0x9c] sm:$0xf]
      %v266 = vld [vmem:[%s219 + $0xa0] sm:$0xf]
      %v267 = vld [vmem:[%s219 + $0xa4] sm:$0x1]
      %v268 = vld [vmem:[%s219 + $0xa8] sm:$0xf]
      %v269 = vld [vmem:[%s219 + $0xac] sm:$0xf]
      %v270 = vld [vmem:[%s219 + $0xb0] sm:$0x1]
      %v271 = vld [vmem:[%s219 + $0xb4] sm:$0xf]
      %v272 = vld [vmem:[%s219 + $0xb8] sm:$0xf]
      %v273 = vld [vmem:[%s219 + $0xbc] sm:$0x1]
      %v274 = vld [vmem:[%s219 + $0xc0] sm:$0xf]
      %v275 = vld [vmem:[%s219 + $0xc4] sm:$0xf]
      %v276 = vld [vmem:[%s219 + $0xc8] sm:$0x1]
      %v277 = vld [vmem:[%s1] sm:$0xf]
      %v278 = vld [vmem:[%s1 + $0x4] sm:$0xf]
      %v279 = vld [vmem:[%s1 + $0x8] sm:$0xf]
      %v280 = vld [vmem:[%s1 + $0xc] sm:$0xf]
      %vm281 = vsmask.f32 3328
      %vm282 = vsmask.f32 7440
      %vm283 = vmor %vm281, %vm282
      %v285 = vshrl.u32 %v226, 16
      %v287 = vrot.slane %v285, 4
      %v288 = vshll.u32 %v226, 16
      %v290 = vrot.slane %v288, 5
      %v291 = vor.u32 %v287, %v290
      %v292 = vrot.slane %v291, 4
      %v294 = vshll.u32 %v227, 16
      %v296 = vrot.slane %v294, 5
      %v297 = vsel %vm283, %v292, %v296
      %v298 = vshrl.u32 %v227, 16
      %v300 = vrot.slane %v298, 4
      %v301 = vor.u32 %v300, %v296
      %v302 = vrot.slane %v301, 4
      %v304 = vshll.u32 %v228, 16
      %v306 = vrot.slane %v304, 5
      %v307 = vsel %vm283, %v302, %v306
      %v309 = vshrl.u32 %v229, 16
      %v311 = vrot.slane %v309, 4
      %v312 = vshll.u32 %v229, 16
      %v314 = vrot.slane %v312, 5
      %v315 = vor.u32 %v311, %v314
      %v316 = vrot.slane %v315, 4
      %v318 = vshll.u32 %v230, 16
      %v320 = vrot.slane %v318, 5
      %v321 = vsel %vm283, %v316, %v320
      %v322 = vshrl.u32 %v230, 16
      %v324 = vrot.slane %v322, 4
      %v325 = vor.u32 %v324, %v320
      %v326 = vrot.slane %v325, 4
      %v328 = vshll.u32 %v231, 16
      %v330 = vrot.slane %v328, 5
      %v331 = vsel %vm283, %v326, %v330
      %v333 = vshrl.u32 %v232, 16
      %v335 = vrot.slane %v333, 4
      %v336 = vshll.u32 %v232, 16
      %v338 = vrot.slane %v336, 5
      %v339 = vor.u32 %v335, %v338
      %v340 = vrot.slane %v339, 4
      %v342 = vshll.u32 %v233, 16
      %v344 = vrot.slane %v342, 5
      %v345 = vsel %vm283, %v340, %v344
      %v346 = vshrl.u32 %v233, 16
      %v348 = vrot.slane %v346, 4
      %v349 = vor.u32 %v348, %v344
      %v350 = vrot.slane %v349, 4
      %v352 = vshll.u32 %v234, 16
      %v354 = vrot.slane %v352, 5
      %v355 = vsel %vm283, %v350, %v354
      %v357 = vshrl.u32 %v235, 16
      %v359 = vrot.slane %v357, 4
      %v360 = vshll.u32 %v235, 16
      %v362 = vrot.slane %v360, 5
      %v363 = vor.u32 %v359, %v362
      %v364 = vrot.slane %v363, 4
      %v366 = vshll.u32 %v236, 16
      %v368 = vrot.slane %v366, 5
      %v369 = vsel %vm283, %v364, %v368
      %v370 = vshrl.u32 %v236, 16
      %v372 = vrot.slane %v370, 4
      %v373 = vor.u32 %v372, %v368
      %v374 = vrot.slane %v373, 4
      %v376 = vshll.u32 %v237, 16
      %v378 = vrot.slane %v376, 5
      %v379 = vsel %vm283, %v374, %v378
      %v381 = vshrl.u32 %v238, 16
      %v383 = vrot.slane %v381, 4
      %v384 = vshll.u32 %v238, 16
      %v386 = vrot.slane %v384, 5
      %v387 = vor.u32 %v383, %v386
      %v388 = vrot.slane %v387, 4
      %v390 = vshll.u32 %v239, 16
      %v392 = vrot.slane %v390, 5
      %v393 = vsel %vm283, %v388, %v392
      %v394 = vshrl.u32 %v239, 16
      %v396 = vrot.slane %v394, 4
      %v397 = vor.u32 %v396, %v392
      %v398 = vrot.slane %v397, 4
      %v400 = vshll.u32 %v240, 16
      %v402 = vrot.slane %v400, 5
      %v403 = vsel %vm283, %v398, %v402
      %v405 = vshrl.u32 %v241, 16
      %v407 = vrot.slane %v405, 4
      %v408 = vshll.u32 %v241, 16
      %v410 = vrot.slane %v408, 5
      %v411 = vor.u32 %v407, %v410
      %v412 = vrot.slane %v411, 4
      %v414 = vshll.u32 %v242, 16
      %v416 = vrot.slane %v414, 5
      %v417 = vsel %vm283, %v412, %v416
      %v418 = vshrl.u32 %v242, 16
      %v420 = vrot.slane %v418, 4
      %v421 = vor.u32 %v420, %v416
      %v422 = vrot.slane %v421, 4
      %v424 = vshll.u32 %v243, 16
      %v426 = vrot.slane %v424, 5
      %v427 = vsel %vm283, %v422, %v426
      %v429 = vshrl.u32 %v244, 16
      %v431 = vrot.slane %v429, 4
      %v432 = vshll.u32 %v244, 16
      %v434 = vrot.slane %v432, 5
      %v435 = vor.u32 %v431, %v434
      %v436 = vrot.slane %v435, 4
      %v438 = vshll.u32 %v245, 16
      %v440 = vrot.slane %v438, 5
      %v441 = vsel %vm283, %v436, %v440
      %v442 = vshrl.u32 %v245, 16
      %v444 = vrot.slane %v442, 4
      %v445 = vor.u32 %v444, %v440
      %v446 = vrot.slane %v445, 4
      %v448 = vshll.u32 %v246, 16
      %v450 = vrot.slane %v448, 5
      %v451 = vsel %vm283, %v446, %v450
      %v453 = vshrl.u32 %v247, 16
      %v455 = vrot.slane %v453, 4
      %v456 = vshll.u32 %v247, 16
      %v458 = vrot.slane %v456, 5
      %v459 = vor.u32 %v455, %v458
      %v460 = vrot.slane %v459, 4
      %v462 = vshll.u32 %v248, 16
      %v464 = vrot.slane %v462, 5
      %v465 = vsel %vm283, %v460, %v464
      %v466 = vshrl.u32 %v248, 16
      %v468 = vrot.slane %v466, 4
      %v469 = vor.u32 %v468, %v464
      %v470 = vrot.slane %v469, 4
      %v472 = vshll.u32 %v249, 16
      %v474 = vrot.slane %v472, 5
      %v475 = vsel %vm283, %v470, %v474
      %v477 = vshrl.u32 %v250, 16
      %v479 = vrot.slane %v477, 4
      %v480 = vshll.u32 %v250, 16
      %v482 = vrot.slane %v480, 5
      %v483 = vor.u32 %v479, %v482
      %v484 = vrot.slane %v483, 4
      %v486 = vshll.u32 %v251, 16
      %v488 = vrot.slane %v486, 5
      %v489 = vsel %vm283, %v484, %v488
      %v490 = vshrl.u32 %v251, 16
      %v492 = vrot.slane %v490, 4
      %v493 = vor.u32 %v492, %v488
      %v494 = vrot.slane %v493, 4
      %v496 = vshll.u32 %v252, 16
      %v498 = vrot.slane %v496, 5
      %v499 = vsel %vm283, %v494, %v498
      %v501 = vshrl.u32 %v253, 16
      %v503 = vrot.slane %v501, 4
      %v504 = vshll.u32 %v253, 16
      %v506 = vrot.slane %v504, 5
      %v507 = vor.u32 %v503, %v506
      %v508 = vrot.slane %v507, 4
      %v510 = vshll.u32 %v254, 16
      %v512 = vrot.slane %v510, 5
      %v513 = vsel %vm283, %v508, %v512
      %v514 = vshrl.u32 %v254, 16
      %v516 = vrot.slane %v514, 4
      %v517 = vor.u32 %v516, %v512
      %v518 = vrot.slane %v517, 4
      %v520 = vshll.u32 %v255, 16
      %v522 = vrot.slane %v520, 5
      %v523 = vsel %vm283, %v518, %v522
      %v525 = vshrl.u32 %v256, 16
      %v527 = vrot.slane %v525, 4
      %v528 = vshll.u32 %v256, 16
      %v530 = vrot.slane %v528, 5
      %v531 = vor.u32 %v527, %v530
      %v532 = vrot.slane %v531, 4
      %v534 = vshll.u32 %v257, 16
      %v536 = vrot.slane %v534, 5
      %v537 = vsel %vm283, %v532, %v536
      %v538 = vshrl.u32 %v257, 16
      %v540 = vrot.slane %v538, 4
      %v541 = vor.u32 %v540, %v536
      %v542 = vrot.slane %v541, 4
      %v544 = vshll.u32 %v258, 16
      %v546 = vrot.slane %v544, 5
      %v547 = vsel %vm283, %v542, %v546
      %v549 = vshrl.u32 %v259, 16
      %v551 = vrot.slane %v549, 4
      %v552 = vshll.u32 %v259, 16
      %v554 = vrot.slane %v552, 5
      %v555 = vor.u32 %v551, %v554
      %v556 = vrot.slane %v555, 4
      %v558 = vshll.u32 %v260, 16
      %v560 = vrot.slane %v558, 5
      %v561 = vsel %vm283, %v556, %v560
      %v562 = vshrl.u32 %v260, 16
      %v564 = vrot.slane %v562, 4
      %v565 = vor.u32 %v564, %v560
      %v566 = vrot.slane %v565, 4
      %v568 = vshll.u32 %v261, 16
      %v570 = vrot.slane %v568, 5
      %v571 = vsel %vm283, %v566, %v570
      %v573 = vshrl.u32 %v262, 16
      %v575 = vrot.slane %v573, 4
      %v576 = vshll.u32 %v262, 16
      %v578 = vrot.slane %v576, 5
      %v579 = vor.u32 %v575, %v578
      %v580 = vrot.slane %v579, 4
      %v582 = vshll.u32 %v263, 16
      %v584 = vrot.slane %v582, 5
      %v585 = vsel %vm283, %v580, %v584
      %v586 = vshrl.u32 %v263, 16
      %v588 = vrot.slane %v586, 4
      %v589 = vor.u32 %v588, %v584
      %v590 = vrot.slane %v589, 4
      %v592 = vshll.u32 %v264, 16
      %v594 = vrot.slane %v592, 5
      %v595 = vsel %vm283, %v590, %v594
      %v597 = vshrl.u32 %v265, 16
      %v599 = vrot.slane %v597, 4
      %v600 = vshll.u32 %v265, 16
      %v602 = vrot.slane %v600, 5
      %v603 = vor.u32 %v599, %v602
      %v604 = vrot.slane %v603, 4
      %v606 = vshll.u32 %v266, 16
      %v608 = vrot.slane %v606, 5
      %v609 = vsel %vm283, %v604, %v608
      %v610 = vshrl.u32 %v266, 16
      %v612 = vrot.slane %v610, 4
      %v613 = vor.u32 %v612, %v608
      %v614 = vrot.slane %v613, 4
      %v616 = vshll.u32 %v267, 16
      %v618 = vrot.slane %v616, 5
      %v619 = vsel %vm283, %v614, %v618
      %v621 = vshrl.u32 %v268, 16
      %v623 = vrot.slane %v621, 4
      %v624 = vshll.u32 %v268, 16
      %v626 = vrot.slane %v624, 5
      %v627 = vor.u32 %v623, %v626
      %v628 = vrot.slane %v627, 4
      %v630 = vshll.u32 %v269, 16
      %v632 = vrot.slane %v630, 5
      %v633 = vsel %vm283, %v628, %v632
      %v634 = vshrl.u32 %v269, 16
      %v636 = vrot.slane %v634, 4
      %v637 = vor.u32 %v636, %v632
      %v638 = vrot.slane %v637, 4
      %v640 = vshll.u32 %v270, 16
      %v642 = vrot.slane %v640, 5
      %v643 = vsel %vm283, %v638, %v642
      %v645 = vshrl.u32 %v271, 16
      %v647 = vrot.slane %v645, 4
      %v648 = vshll.u32 %v271, 16
      %v650 = vrot.slane %v648, 5
      %v651 = vor.u32 %v647, %v650
      %v652 = vrot.slane %v651, 4
      %v654 = vshll.u32 %v272, 16
      %v656 = vrot.slane %v654, 5
      %v657 = vsel %vm283, %v652, %v656
      %v658 = vshrl.u32 %v272, 16
      %v660 = vrot.slane %v658, 4
      %v661 = vor.u32 %v660, %v656
      %v662 = vrot.slane %v661, 4
      %v664 = vshll.u32 %v273, 16
      %v666 = vrot.slane %v664, 5
      %v667 = vsel %vm283, %v662, %v666
      %s668 = scalar_lea.vmem %s1, 16
      %v669 = vld [vmem:[%s668] sm:$0xf]
      %v670 = vld [vmem:[%s668 + $0x4] sm:$0xf]
      %v671 = vld [vmem:[%s668 + $0x8] sm:$0xf]
      %v672 = vld [vmem:[%s668 + $0xc] sm:$0xf]
      %v673 = vunpack.c.l.b16 %v297
      %v674 = vunpack.c.l.b16 %v307
      %v675 = vunpack.c.l.b16 %v321
      %v676 = vunpack.c.l.b16 %v331
      %v677 = vunpack.c.l.b16 %v345
      %v678 = vunpack.c.l.b16 %v355
      %v679 = vunpack.c.l.b16 %v369
      %v680 = vunpack.c.l.b16 %v379
      %v681 = vunpack.c.l.b16 %v393
      %v682 = vunpack.c.l.b16 %v403
      %v683 = vunpack.c.l.b16 %v417
      %v684 = vunpack.c.l.b16 %v427
      %v685 = vunpack.c.l.b16 %v441
      %v686 = vunpack.c.l.b16 %v451
      %v687 = vunpack.c.l.b16 %v465
      %v688 = vunpack.c.l.b16 %v475
      %v689 = vunpack.c.l.b16 %v489
      %v690 = vunpack.c.l.b16 %v499
      %v691 = vunpack.c.l.b16 %v513
      %v692 = vunpack.c.l.b16 %v523
      %v693 = vunpack.c.l.b16 %v537
      %v694 = vunpack.c.l.b16 %v547
      %v695 = vunpack.c.l.b16 %v561
      %v696 = vunpack.c.l.b16 %v571
      %v697 = vunpack.c.l.b16 %v585
      %v698 = vunpack.c.l.b16 %v595
      %v699 = vunpack.c.l.b16 %v609
      %v700 = vunpack.c.l.b16 %v619
      %v701 = vunpack.c.l.b16 %v633
      %v702 = vunpack.c.l.b16 %v643
      %v703 = vunpack.c.l.b16 %v657
      %v704 = vunpack.c.l.b16 %v667
      %v705 = vpack.c.b16 %v674, %v673
      %v706 = vpack.c.b16 %v676, %v675
      %v707 = vpack.c.b16 %v678, %v677
      %v708 = vpack.c.b16 %v680, %v679
      %v709 = vpack.c.b16 %v682, %v681
      %v710 = vpack.c.b16 %v684, %v683
      %v711 = vpack.c.b16 %v686, %v685
      %v712 = vpack.c.b16 %v688, %v687
      %v713 = vpack.c.b16 %v690, %v689
      %v714 = vpack.c.b16 %v692, %v691
      %v715 = vpack.c.b16 %v694, %v693
      %v716 = vpack.c.b16 %v696, %v695
      %v717 = vpack.c.b16 %v698, %v697
      %v718 = vpack.c.b16 %v700, %v699
      %v719 = vpack.c.b16 %v702, %v701
      %v720 = vpack.c.b16 %v704, %v703
      %v725 = vunpack.c.l.b16 %v669
      %v726 = vunpack.c.l.b16 %v670
      %v727 = vunpack.c.l.b16 %v671
      %v728 = vunpack.c.l.b16 %v672
      %v729 = vpack.c.b16 %v726, %v725
      %v730 = vpack.c.b16 %v728, %v727
      %vm733 = vcmask 261120
      %v735 = vsel %vm733, %v705, 0
      %v738 = vsel %vm733, %v706, 0
      %v741 = vsel %vm733, %v707, 0
      %v744 = vsel %vm733, %v708, 0
      %v747 = vsel %vm733, %v709, 0
      %v750 = vsel %vm733, %v710, 0
      %v753 = vsel %vm733, %v711, 0
      %v756 = vsel %vm733, %v712, 0
      %v759 = vsel %vm733, %v713, 0
      %v762 = vsel %vm733, %v714, 0
      %v765 = vsel %vm733, %v715, 0
      %v768 = vsel %vm733, %v716, 0
      %v771 = vsel %vm733, %v717, 0
      %v774 = vsel %vm733, %v718, 0
      %v777 = vsel %vm733, %v719, 0
      %v780 = vsel %vm733, %v720, 0
      %782 = vmatprep.subr.bf16.mxu0 0
      %783 = vmatpush1.bf16.msra.mxu0 %v729
      %784 = vmatprep.subr.bf16.mxu0 0
      %785 = vmatpush1.bf16.msra.mxu0 %v730
      %786 = vmatprep.subr.bf16.mxu0 0
      %787 = vmatpush1.bf16.msra.mxu0 0
      %788 = vmatprep.subr.bf16.mxu0 0
      %789 = vmatpush1.bf16.msra.mxu0 0
      %790 = vmatprep.subr.bf16.mxu0 0
      %791 = vmatpush1.bf16.msra.mxu0 0
      %792 = vmatprep.subr.bf16.mxu0 0
      %793 = vmatpush1.bf16.msra.mxu0 0
      %794 = vmatprep.subr.bf16.mxu0 0
      %795 = vmatpush1.bf16.msra.mxu0 0
      %796 = vmatprep.subr.bf16.mxu0 0
      %797 = vmatpush1.bf16.msra.mxu0 0
      %798 = vmatprep.subr.bf16.mxu0 0
      %799 = vmatpush1.bf16.msra.mxu0 0
      %800 = vmatprep.subr.bf16.mxu0 0
      %801 = vmatpush1.bf16.msra.mxu0 0
      %802 = vmatprep.subr.bf16.mxu0 0
      %803 = vmatpush1.bf16.msra.mxu0 0
      %804 = vmatprep.subr.bf16.mxu0 0
      %805 = vmatpush1.bf16.msra.mxu0 0
      %806 = vmatprep.subr.bf16.mxu0 0
      %807 = vmatpush1.bf16.msra.mxu0 0
      %808 = vmatprep.subr.bf16.mxu0 0
      %809 = vmatpush1.bf16.msra.mxu0 0
      %810 = vmatprep.subr.bf16.mxu0 0
      %811 = vmatpush1.bf16.msra.mxu0 0
      %812 = vmatprep.subr.bf16.mxu0 0
      %813 = vmatpush1.bf16.msra.mxu0 0
      %814 = vmatprep.mubr.bf16.mxu0 0
      %815 = vmatmul.mubr.bf16.gmra.mrb[0].mxu0 %v735
      %v816 = vpop.f32.mrb[0].mxu0
      %v817 = vadd.f32 0.0, %v816
      %v818 = vpop.f32.mrb[0].mxu0
      %v819 = vpop.f32.mrb[0].mxu0
      %v820 = vadd.f32 0.0, %v819
      %v821 = vpop.f32.mrb[0].mxu0
      %822 = vmatprep.mubr.bf16.mxu0 0
      %823 = vmatmul.mubr.bf16.gmra.mrb[0].mxu0 %v738
      %v824 = vpop.f32.mrb[0].mxu0
      %v825 = vadd.f32 0.0, %v824
      %v826 = vpop.f32.mrb[0].mxu0
      %v827 = vpop.f32.mrb[0].mxu0
      %v828 = vadd.f32 0.0, %v827
      %v829 = vpop.f32.mrb[0].mxu0
      %830 = vmatprep.mubr.bf16.mxu0 0
      %831 = vmatmul.mubr.bf16.gmra.mrb[0].mxu0 %v741
      %v832 = vpop.f32.mrb[0].mxu0
      %v833 = vadd.f32 0.0, %v832
      %v834 = vpop.f32.mrb[0].mxu0
      %v835 = vpop.f32.mrb[0].mxu0
      %v836 = vadd.f32 0.0, %v835
      %v837 = vpop.f32.mrb[0].mxu0
      %838 = vmatprep.mubr.bf16.mxu0 0
      %839 = vmatmul.mubr.bf16.gmra.mrb[0].mxu0 %v744
      %v840 = vpop.f32.mrb[0].mxu0
      %v841 = vadd.f32 0.0, %v840
      %v842 = vpop.f32.mrb[0].mxu0
      %v843 = vpop.f32.mrb[0].mxu0
      %v844 = vadd.f32 0.0, %v843
      %v845 = vpop.f32.mrb[0].mxu0
      %846 = vmatprep.mubr.bf16.mxu0 0
      %847 = vmatmul.mubr.bf16.gmra.mrb[0].mxu0 %v747
      %v848 = vpop.f32.mrb[0].mxu0
      %v849 = vadd.f32 0.0, %v848
      %v850 = vpop.f32.mrb[0].mxu0
      %v851 = vpop.f32.mrb[0].mxu0
      %v852 = vadd.f32 0.0, %v851
      %v853 = vpop.f32.mrb[0].mxu0
      %854 = vmatprep.mubr.bf16.mxu0 0
      %855 = vmatmul.mubr.bf16.gmra.mrb[0].mxu0 %v750
      %v856 = vpop.f32.mrb[0].mxu0
      %v857 = vadd.f32 0.0, %v856
      %v858 = vpop.f32.mrb[0].mxu0
      %v859 = vpop.f32.mrb[0].mxu0
      %v860 = vadd.f32 0.0, %v859
      %v861 = vpop.f32.mrb[0].mxu0
      %862 = vmatprep.mubr.bf16.mxu0 0
      %863 = vmatmul.mubr.bf16.gmra.mrb[0].mxu0 %v753
      %v864 = vpop.f32.mrb[0].mxu0
      %v865 = vadd.f32 0.0, %v864
      %v866 = vpop.f32.mrb[0].mxu0
      %v867 = vpop.f32.mrb[0].mxu0
      %v868 = vadd.f32 0.0, %v867
      %v869 = vpop.f32.mrb[0].mxu0
      %870 = vmatprep.mubr.bf16.mxu0 0
      %871 = vmatmul.mubr.bf16.gmra.mrb[0].mxu0 %v756
      %v872 = vpop.f32.mrb[0].mxu0
      %v873 = vadd.f32 0.0, %v872
      %v874 = vpop.f32.mrb[0].mxu0
      %v875 = vpop.f32.mrb[0].mxu0
      %v876 = vadd.f32 0.0, %v875
      %v877 = vpop.f32.mrb[0].mxu0
      %878 = vmatprep.mubr.bf16.mxu0 0
      %879 = vmatmul.mubr.bf16.gmra.mrb[0].mxu0 %v759
      %v880 = vpop.f32.mrb[0].mxu0
      %v881 = vadd.f32 0.0, %v880
      %v882 = vpop.f32.mrb[0].mxu0
      %v883 = vpop.f32.mrb[0].mxu0
      %v884 = vadd.f32 0.0, %v883
      %v885 = vpop.f32.mrb[0].mxu0
      %886 = vmatprep.mubr.bf16.mxu0 0
      %887 = vmatmul.mubr.bf16.gmra.mrb[0].mxu0 %v762
      %v888 = vpop.f32.mrb[0].mxu0
      %v889 = vadd.f32 0.0, %v888
      %v890 = vpop.f32.mrb[0].mxu0
      %v891 = vpop.f32.mrb[0].mxu0
      %v892 = vadd.f32 0.0, %v891
      %v893 = vpop.f32.mrb[0].mxu0
      %894 = vmatprep.mubr.bf16.mxu0 0
      %895 = vmatmul.mubr.bf16.gmra.mrb[0].mxu0 %v765
      %v896 = vpop.f32.mrb[0].mxu0
      %v897 = vadd.f32 0.0, %v896
      %v898 = vpop.f32.mrb[0].mxu0
      %v899 = vpop.f32.mrb[0].mxu0
      %v900 = vadd.f32 0.0, %v899
      %v901 = vpop.f32.mrb[0].mxu0
      %902 = vmatprep.mubr.bf16.mxu0 0
      %903 = vmatmul.mubr.bf16.gmra.mrb[0].mxu0 %v768
      %v904 = vpop.f32.mrb[0].mxu0
      %v905 = vadd.f32 0.0, %v904
      %v906 = vpop.f32.mrb[0].mxu0
      %v907 = vpop.f32.mrb[0].mxu0
      %v908 = vadd.f32 0.0, %v907
      %v909 = vpop.f32.mrb[0].mxu0
      %910 = vmatprep.mubr.bf16.mxu0 0
      %911 = vmatmul.mubr.bf16.gmra.mrb[0].mxu0 %v771
      %v912 = vpop.f32.mrb[0].mxu0
      %v913 = vadd.f32 0.0, %v912
      %v914 = vpop.f32.mrb[0].mxu0
      %v915 = vpop.f32.mrb[0].mxu0
      %v916 = vadd.f32 0.0, %v915
      %v917 = vpop.f32.mrb[0].mxu0
      %918 = vmatprep.mubr.bf16.mxu0 0
      %919 = vmatmul.mubr.bf16.gmra.mrb[0].mxu0 %v774
      %v920 = vpop.f32.mrb[0].mxu0
      %v921 = vadd.f32 0.0, %v920
      %v922 = vpop.f32.mrb[0].mxu0
      %v923 = vpop.f32.mrb[0].mxu0
      %v924 = vadd.f32 0.0, %v923
      %v925 = vpop.f32.mrb[0].mxu0
      %926 = vmatprep.mubr.bf16.mxu0 0
      %927 = vmatmul.mubr.bf16.gmra.mrb[0].mxu0 %v777
      %v928 = vpop.f32.mrb[0].mxu0
      %v929 = vadd.f32 0.0, %v928
      %v930 = vpop.f32.mrb[0].mxu0
      %v931 = vpop.f32.mrb[0].mxu0
      %v932 = vadd.f32 0.0, %v931
      %v933 = vpop.f32.mrb[0].mxu0
      %934 = vmatprep.mubr.bf16.mxu0 0
      %935 = vmatmul.mubr.bf16.gmra.mrb[0].mxu0 %v780
      %v936 = vpop.f32.mrb[0].mxu0
      %v937 = vadd.f32 0.0, %v936
      %v938 = vpop.f32.mrb[0].mxu0
      %v939 = vpop.f32.mrb[0].mxu0
      %v940 = vadd.f32 0.0, %v939
      %v941 = vpop.f32.mrb[0].mxu0
      %942 = vdwg.mxu0
      %v975 = vunpack.c.l.b16 %v226
      %v976 = vunpack.c.l.b16 %v227
      %v977 = vunpack.c.l.b16 %v229
      %v978 = vunpack.c.l.b16 %v230
      %v979 = vunpack.c.l.b16 %v232
      %v980 = vunpack.c.l.b16 %v233
      %v981 = vunpack.c.l.b16 %v235
      %v982 = vunpack.c.l.b16 %v236
      %v983 = vunpack.c.l.b16 %v238
      %v984 = vunpack.c.l.b16 %v239
      %v985 = vunpack.c.l.b16 %v241
      %v986 = vunpack.c.l.b16 %v242
      %v987 = vunpack.c.l.b16 %v244
      %v988 = vunpack.c.l.b16 %v245
      %v989 = vunpack.c.l.b16 %v247
      %v990 = vunpack.c.l.b16 %v248
      %v991 = vunpack.c.l.b16 %v250
      %v992 = vunpack.c.l.b16 %v251
      %v993 = vunpack.c.l.b16 %v253
      %v994 = vunpack.c.l.b16 %v254
      %v995 = vunpack.c.l.b16 %v256
      %v996 = vunpack.c.l.b16 %v257
      %v997 = vunpack.c.l.b16 %v259
      %v998 = vunpack.c.l.b16 %v260
      %v999 = vunpack.c.l.b16 %v262
      %v1000 = vunpack.c.l.b16 %v263
      %v1001 = vunpack.c.l.b16 %v265
      %v1002 = vunpack.c.l.b16 %v266
      %v1003 = vunpack.c.l.b16 %v268
      %v1004 = vunpack.c.l.b16 %v269
      %v1005 = vunpack.c.l.b16 %v271
      %v1006 = vunpack.c.l.b16 %v272
      %v1007 = vpack.c.b16 %v976, %v975
      %v1008 = vpack.c.b16 %v978, %v977
      %v1009 = vpack.c.b16 %v980, %v979
      %v1010 = vpack.c.b16 %v982, %v981
      %v1011 = vpack.c.b16 %v984, %v983
      %v1012 = vpack.c.b16 %v986, %v985
      %v1013 = vpack.c.b16 %v988, %v987
      %v1014 = vpack.c.b16 %v990, %v989
      %v1015 = vpack.c.b16 %v992, %v991
      %v1016 = vpack.c.b16 %v994, %v993
      %v1017 = vpack.c.b16 %v996, %v995
      %v1018 = vpack.c.b16 %v998, %v997
      %v1019 = vpack.c.b16 %v1000, %v999
      %v1020 = vpack.c.b16 %v1002, %v1001
      %v1021 = vpack.c.b16 %v1004, %v1003
      %v1022 = vpack.c.b16 %v1006, %v1005
      %v1027 = vunpack.c.l.b16 %v277
      %v1028 = vunpack.c.l.b16 %v278
      %v1029 = vunpack.c.l.b16 %v279
      %v1030 = vunpack.c.l.b16 %v280
      %v1031 = vpack.c.b16 %v1028, %v1027
      %v1032 = vpack.c.b16 %v1030, %v1029
      %v1036 = vsel %vm733, %v1007, 0
      %v1039 = vsel %vm733, %v1008, 0
      %v1042 = vsel %vm733, %v1009, 0
      %v1045 = vsel %vm733, %v1010, 0
      %v1048 = vsel %vm733, %v1011, 0
      %v1051 = vsel %vm733, %v1012, 0
      %v1054 = vsel %vm733, %v1013, 0
      %v1057 = vsel %vm733, %v1014, 0
      %v1060 = vsel %vm733, %v1015, 0
      %v1063 = vsel %vm733, %v1016, 0
      %v1066 = vsel %vm733, %v1017, 0
      %v1069 = vsel %vm733, %v1018, 0
      %v1072 = vsel %vm733, %v1019, 0
      %v1075 = vsel %vm733, %v1020, 0
      %v1078 = vsel %vm733, %v1021, 0
      %v1081 = vsel %vm733, %v1022, 0
      %1083 = vmatprep.subr.bf16.mxu0 0
      %1084 = vmatpush1.bf16.msra.mxu0 %v1031
      %1085 = vmatprep.subr.bf16.mxu0 0
      %1086 = vmatpush1.bf16.msra.mxu0 %v1032
      %1087 = vmatprep.subr.bf16.mxu0 0
      %1088 = vmatpush1.bf16.msra.mxu0 0
      %1089 = vmatprep.subr.bf16.mxu0 0
      %1090 = vmatpush1.bf16.msra.mxu0 0
      %1091 = vmatprep.subr.bf16.mxu0 0
      %1092 = vmatpush1.bf16.msra.mxu0 0
      %1093 = vmatprep.subr.bf16.mxu0 0
      %1094 = vmatpush1.bf16.msra.mxu0 0
      %1095 = vmatprep.subr.bf16.mxu0 0
      %1096 = vmatpush1.bf16.msra.mxu0 0
      %1097 = vmatprep.subr.bf16.mxu0 0
      %1098 = vmatpush1.bf16.msra.mxu0 0
      %1099 = vmatprep.subr.bf16.mxu0 0
      %1100 = vmatpush1.bf16.msra.mxu0 0
      %1101 = vmatprep.subr.bf16.mxu0 0
      %1102 = vmatpush1.bf16.msra.mxu0 0
      %1103 = vmatprep.subr.bf16.mxu0 0
      %1104 = vmatpush1.bf16.msra.mxu0 0
      %1105 = vmatprep.subr.bf16.mxu0 0
      %1106 = vmatpush1.bf16.msra.mxu0 0
      %1107 = vmatprep.subr.bf16.mxu0 0
      %1108 = vmatpush1.bf16.msra.mxu0 0
      %1109 = vmatprep.subr.bf16.mxu0 0
      %1110 = vmatpush1.bf16.msra.mxu0 0
      %1111 = vmatprep.subr.bf16.mxu0 0
      %1112 = vmatpush1.bf16.msra.mxu0 0
      %1113 = vmatprep.subr.bf16.mxu0 0
      %1114 = vmatpush1.bf16.msra.mxu0 0
      %1115 = vmatprep.mubr.bf16.mxu0 0
      %1116 = vmatmul.mubr.bf16.gmra.mrb[0].mxu0 %v1036
      %v1117 = vpop.f32.mrb[0].mxu0
      %v1118 = vadd.f32 %v817, %v1117
      %v1119 = vpop.f32.mrb[0].mxu0
      %v1120 = vpop.f32.mrb[0].mxu0
      %v1121 = vadd.f32 %v820, %v1120
      %v1122 = vpop.f32.mrb[0].mxu0
      %1123 = vmatprep.mubr.bf16.mxu0 0
      %1124 = vmatmul.mubr.bf16.gmra.mrb[0].mxu0 %v1039
      %v1125 = vpop.f32.mrb[0].mxu0
      %v1126 = vadd.f32 %v825, %v1125
      %v1127 = vpop.f32.mrb[0].mxu0
      %v1128 = vpop.f32.mrb[0].mxu0
      %v1129 = vadd.f32 %v828, %v1128
      %v1130 = vpop.f32.mrb[0].mxu0
      %1131 = vmatprep.mubr.bf16.mxu0 0
      %1132 = vmatmul.mubr.bf16.gmra.mrb[0].mxu0 %v1042
      %v1133 = vpop.f32.mrb[0].mxu0
      %v1134 = vadd.f32 %v833, %v1133
      %v1135 = vpop.f32.mrb[0].mxu0
      %v1136 = vpop.f32.mrb[0].mxu0
      %v1137 = vadd.f32 %v836, %v1136
      %v1138 = vpop.f32.mrb[0].mxu0
      %1139 = vmatprep.mubr.bf16.mxu0 0
      %1140 = vmatmul.mubr.bf16.gmra.mrb[0].mxu0 %v1045
      %v1141 = vpop.f32.mrb[0].mxu0
      %v1142 = vadd.f32 %v841, %v1141
      %v1143 = vpop.f32.mrb[0].mxu0
      %v1144 = vpop.f32.mrb[0].mxu0
      %v1145 = vadd.f32 %v844, %v1144
      %v1146 = vpop.f32.mrb[0].mxu0
      %1147 = vmatprep.mubr.bf16.mxu0 0
      %1148 = vmatmul.mubr.bf16.gmra.mrb[0].mxu0 %v1048
      %v1149 = vpop.f32.mrb[0].mxu0
      %v1150 = vadd.f32 %v849, %v1149
      %v1151 = vpop.f32.mrb[0].mxu0
      %v1152 = vpop.f32.mrb[0].mxu0
      %v1153 = vadd.f32 %v852, %v1152
      %v1154 = vpop.f32.mrb[0].mxu0
      %1155 = vmatprep.mubr.bf16.mxu0 0
      %1156 = vmatmul.mubr.bf16.gmra.mrb[0].mxu0 %v1051
      %v1157 = vpop.f32.mrb[0].mxu0
      %v1158 = vadd.f32 %v857, %v1157
      %v1159 = vpop.f32.mrb[0].mxu0
      %v1160 = vpop.f32.mrb[0].mxu0
      %v1161 = vadd.f32 %v860, %v1160
      %v1162 = vpop.f32.mrb[0].mxu0
      %1163 = vmatprep.mubr.bf16.mxu0 0
      %1164 = vmatmul.mubr.bf16.gmra.mrb[0].mxu0 %v1054
      %v1165 = vpop.f32.mrb[0].mxu0
      %v1166 = vadd.f32 %v865, %v1165
      %v1167 = vpop.f32.mrb[0].mxu0
      %v1168 = vpop.f32.mrb[0].mxu0
      %v1169 = vadd.f32 %v868, %v1168
      %v1170 = vpop.f32.mrb[0].mxu0
      %1171 = vmatprep.mubr.bf16.mxu0 0
      %1172 = vmatmul.mubr.bf16.gmra.mrb[0].mxu0 %v1057
      %v1173 = vpop.f32.mrb[0].mxu0
      %v1174 = vadd.f32 %v873, %v1173
      %v1175 = vpop.f32.mrb[0].mxu0
      %v1176 = vpop.f32.mrb[0].mxu0
      %v1177 = vadd.f32 %v876, %v1176
      %v1178 = vpop.f32.mrb[0].mxu0
      %1179 = vmatprep.mubr.bf16.mxu0 0
      %1180 = vmatmul.mubr.bf16.gmra.mrb[0].mxu0 %v1060
      %v1181 = vpop.f32.mrb[0].mxu0
      %v1182 = vadd.f32 %v881, %v1181
      %v1183 = vpop.f32.mrb[0].mxu0
      %v1184 = vpop.f32.mrb[0].mxu0
      %v1185 = vadd.f32 %v884, %v1184
      %v1186 = vpop.f32.mrb[0].mxu0
      %1187 = vmatprep.mubr.bf16.mxu0 0
      %1188 = vmatmul.mubr.bf16.gmra.mrb[0].mxu0 %v1063
      %v1189 = vpop.f32.mrb[0].mxu0
      %v1190 = vadd.f32 %v889, %v1189
      %v1191 = vpop.f32.mrb[0].mxu0
      %v1192 = vpop.f32.mrb[0].mxu0
      %v1193 = vadd.f32 %v892, %v1192
      %v1194 = vpop.f32.mrb[0].mxu0
      %1195 = vmatprep.mubr.bf16.mxu0 0
      %1196 = vmatmul.mubr.bf16.gmra.mrb[0].mxu0 %v1066
      %v1197 = vpop.f32.mrb[0].mxu0
      %v1198 = vadd.f32 %v897, %v1197
      %v1199 = vpop.f32.mrb[0].mxu0
      %v1200 = vpop.f32.mrb[0].mxu0
      %v1201 = vadd.f32 %v900, %v1200
      %v1202 = vpop.f32.mrb[0].mxu0
      %1203 = vmatprep.mubr.bf16.mxu0 0
      %1204 = vmatmul.mubr.bf16.gmra.mrb[0].mxu0 %v1069
      %v1205 = vpop.f32.mrb[0].mxu0
      %v1206 = vadd.f32 %v905, %v1205
      %v1207 = vpop.f32.mrb[0].mxu0
      %v1208 = vpop.f32.mrb[0].mxu0
      %v1209 = vadd.f32 %v908, %v1208
      %v1210 = vpop.f32.mrb[0].mxu0
      %1211 = vmatprep.mubr.bf16.mxu0 0
      %1212 = vmatmul.mubr.bf16.gmra.mrb[0].mxu0 %v1072
      %v1213 = vpop.f32.mrb[0].mxu0
      %v1214 = vadd.f32 %v913, %v1213
      %v1215 = vpop.f32.mrb[0].mxu0
      %v1216 = vpop.f32.mrb[0].mxu0
      %v1217 = vadd.f32 %v916, %v1216
      %v1218 = vpop.f32.mrb[0].mxu0
      %1219 = vmatprep.mubr.bf16.mxu0 0
      %1220 = vmatmul.mubr.bf16.gmra.mrb[0].mxu0 %v1075
      %v1221 = vpop.f32.mrb[0].mxu0
      %v1222 = vadd.f32 %v921, %v1221
      %v1223 = vpop.f32.mrb[0].mxu0
      %v1224 = vpop.f32.mrb[0].mxu0
      %v1225 = vadd.f32 %v924, %v1224
      %v1226 = vpop.f32.mrb[0].mxu0
      %1227 = vmatprep.mubr.bf16.mxu0 0
      %1228 = vmatmul.mubr.bf16.gmra.mrb[0].mxu0 %v1078
      %v1229 = vpop.f32.mrb[0].mxu0
      %v1230 = vadd.f32 %v929, %v1229
      %v1231 = vpop.f32.mrb[0].mxu0
      %v1232 = vpop.f32.mrb[0].mxu0
      %v1233 = vadd.f32 %v932, %v1232
      %v1234 = vpop.f32.mrb[0].mxu0
      %1235 = vmatprep.mubr.bf16.mxu0 0
      %1236 = vmatmul.mubr.bf16.gmra.mrb[0].mxu0 %v1081
      %v1237 = vpop.f32.mrb[0].mxu0
      %v1238 = vadd.f32 %v937, %v1237
      %v1239 = vpop.f32.mrb[0].mxu0
      %v1240 = vpop.f32.mrb[0].mxu0
      %v1241 = vadd.f32 %v940, %v1240
      %v1242 = vpop.f32.mrb[0].mxu0
      %1243 = vdwg.mxu0
      %s1244 = scalar_lea.vmem %s1, 32
      %v1245 = vld [vmem:[%s1244] sm:$0xf]
      %v1246 = vld [vmem:[%s1244 + $0x4] sm:$0xf]
      %v1247 = vld [vmem:[%s1244 + $0x8] sm:$0xf]
      %v1248 = vld [vmem:[%s1244 + $0xc] sm:$0xf]
      %v1251 = vunpack.c.l.b16 %v274
      %v1252 = vunpack.c.l.b16 %v275
      %v1253 = vpack.c.b16 %v1252, %v1251
      %v1258 = vunpack.c.l.b16 %v1245
      %v1259 = vunpack.c.l.b16 %v1246
      %v1260 = vunpack.c.l.b16 %v1247
      %v1261 = vunpack.c.l.b16 %v1248
      %v1262 = vpack.c.b16 %v1259, %v1258
      %v1263 = vpack.c.b16 %v1261, %v1260
      %v1267 = vsel %vm733, %v1253, 0
      %1269 = vmatprep.subr.bf16.mxu0 0
      %1270 = vmatpush1.bf16.msra.mxu0 %v1262
      %1271 = vmatprep.subr.bf16.mxu0 0
      %1272 = vmatpush1.bf16.msra.mxu0 %v1263
      %1273 = vmatprep.subr.bf16.mxu0 0
      %1274 = vmatpush1.bf16.msra.mxu0 0
      %1275 = vmatprep.subr.bf16.mxu0 0
      %1276 = vmatpush1.bf16.msra.mxu0 0
      %1277 = vmatprep.subr.bf16.mxu0 0
      %1278 = vmatpush1.bf16.msra.mxu0 0
      %1279 = vmatprep.subr.bf16.mxu0 0
      %1280 = vmatpush1.bf16.msra.mxu0 0
      %1281 = vmatprep.subr.bf16.mxu0 0
      %1282 = vmatpush1.bf16.msra.mxu0 0
      %1283 = vmatprep.subr.bf16.mxu0 0
      %1284 = vmatpush1.bf16.msra.mxu0 0
      %1285 = vmatprep.subr.bf16.mxu0 0
      %1286 = vmatpush1.bf16.msra.mxu0 0
      %1287 = vmatprep.subr.bf16.mxu0 0
      %1288 = vmatpush1.bf16.msra.mxu0 0
      %1289 = vmatprep.subr.bf16.mxu0 0
      %1290 = vmatpush1.bf16.msra.mxu0 0
      %1291 = vmatprep.subr.bf16.mxu0 0
      %1292 = vmatpush1.bf16.msra.mxu0 0
      %1293 = vmatprep.subr.bf16.mxu0 0
      %1294 = vmatpush1.bf16.msra.mxu0 0
      %1295 = vmatprep.subr.bf16.mxu0 0
      %1296 = vmatpush1.bf16.msra.mxu0 0
      %1297 = vmatprep.subr.bf16.mxu0 0
      %1298 = vmatpush1.bf16.msra.mxu0 0
      %1299 = vmatprep.subr.bf16.mxu0 0
      %1300 = vmatpush1.bf16.msra.mxu0 0
      %1301 = vmatprep.mubr.bf16.mxu0 0
      %1302 = vmatmul.mubr.bf16.gmra.mrb[0].mxu0 %v1039
      %v1303 = vpop.f32.mrb[0].mxu0
      %v1304 = vadd.f32 0.0, %v1303
      %v1305 = vpop.f32.mrb[0].mxu0
      %v1306 = vpop.f32.mrb[0].mxu0
      %v1307 = vadd.f32 0.0, %v1306
      %v1308 = vpop.f32.mrb[0].mxu0
      %1309 = vmatprep.mubr.bf16.mxu0 0
      %1310 = vmatmul.mubr.bf16.gmra.mrb[0].mxu0 %v1042
      %v1311 = vpop.f32.mrb[0].mxu0
      %v1312 = vadd.f32 0.0, %v1311
      %v1313 = vpop.f32.mrb[0].mxu0
      %v1314 = vpop.f32.mrb[0].mxu0
      %v1315 = vadd.f32 0.0, %v1314
      %v1316 = vpop.f32.mrb[0].mxu0
      %1317 = vmatprep.mubr.bf16.mxu0 0
      %1318 = vmatmul.mubr.bf16.gmra.mrb[0].mxu0 %v1045
      %v1319 = vpop.f32.mrb[0].mxu0
      %v1320 = vadd.f32 0.0, %v1319
      %v1321 = vpop.f32.mrb[0].mxu0
      %v1322 = vpop.f32.mrb[0].mxu0
      %v1323 = vadd.f32 0.0, %v1322
      %v1324 = vpop.f32.mrb[0].mxu0
      %1325 = vmatprep.mubr.bf16.mxu0 0
      %1326 = vmatmul.mubr.bf16.gmra.mrb[0].mxu0 %v1048
      %v1327 = vpop.f32.mrb[0].mxu0
      %v1328 = vadd.f32 0.0, %v1327
      %v1329 = vpop.f32.mrb[0].mxu0
      %v1330 = vpop.f32.mrb[0].mxu0
      %v1331 = vadd.f32 0.0, %v1330
      %v1332 = vpop.f32.mrb[0].mxu0
      %1333 = vmatprep.mubr.bf16.mxu0 0
      %1334 = vmatmul.mubr.bf16.gmra.mrb[0].mxu0 %v1051
      %v1335 = vpop.f32.mrb[0].mxu0
      %v1336 = vadd.f32 0.0, %v1335
      %v1337 = vpop.f32.mrb[0].mxu0
      %v1338 = vpop.f32.mrb[0].mxu0
      %v1339 = vadd.f32 0.0, %v1338
      %v1340 = vpop.f32.mrb[0].mxu0
      %1341 = vmatprep.mubr.bf16.mxu0 0
      %1342 = vmatmul.mubr.bf16.gmra.mrb[0].mxu0 %v1054
      %v1343 = vpop.f32.mrb[0].mxu0
      %v1344 = vadd.f32 0.0, %v1343
      %v1345 = vpop.f32.mrb[0].mxu0
      %v1346 = vpop.f32.mrb[0].mxu0
      %v1347 = vadd.f32 0.0, %v1346
      %v1348 = vpop.f32.mrb[0].mxu0
      %1349 = vmatprep.mubr.bf16.mxu0 0
      %1350 = vmatmul.mubr.bf16.gmra.mrb[0].mxu0 %v1057
      %v1351 = vpop.f32.mrb[0].mxu0
      %v1352 = vadd.f32 0.0, %v1351
      %v1353 = vpop.f32.mrb[0].mxu0
      %v1354 = vpop.f32.mrb[0].mxu0
      %v1355 = vadd.f32 0.0, %v1354
      %v1356 = vpop.f32.mrb[0].mxu0
      %1357 = vmatprep.mubr.bf16.mxu0 0
      %1358 = vmatmul.mubr.bf16.gmra.mrb[0].mxu0 %v1060
      %v1359 = vpop.f32.mrb[0].mxu0
      %v1360 = vadd.f32 0.0, %v1359
      %v1361 = vpop.f32.mrb[0].mxu0
      %v1362 = vpop.f32.mrb[0].mxu0
      %v1363 = vadd.f32 0.0, %v1362
      %v1364 = vpop.f32.mrb[0].mxu0
      %1365 = vmatprep.mubr.bf16.mxu0 0
      %1366 = vmatmul.mubr.bf16.gmra.mrb[0].mxu0 %v1063
      %v1367 = vpop.f32.mrb[0].mxu0
      %v1368 = vadd.f32 0.0, %v1367
      %v1369 = vpop.f32.mrb[0].mxu0
      %v1370 = vpop.f32.mrb[0].mxu0
      %v1371 = vadd.f32 0.0, %v1370
      %v1372 = vpop.f32.mrb[0].mxu0
      %1373 = vmatprep.mubr.bf16.mxu0 0
      %1374 = vmatmul.mubr.bf16.gmra.mrb[0].mxu0 %v1066
      %v1375 = vpop.f32.mrb[0].mxu0
      %v1376 = vadd.f32 0.0, %v1375
      %v1377 = vpop.f32.mrb[0].mxu0
      %v1378 = vpop.f32.mrb[0].mxu0
      %v1379 = vadd.f32 0.0, %v1378
      %v1380 = vpop.f32.mrb[0].mxu0
      %1381 = vmatprep.mubr.bf16.mxu0 0
      %1382 = vmatmul.mubr.bf16.gmra.mrb[0].mxu0 %v1069
      %v1383 = vpop.f32.mrb[0].mxu0
      %v1384 = vadd.f32 0.0, %v1383
      %v1385 = vpop.f32.mrb[0].mxu0
      %v1386 = vpop.f32.mrb[0].mxu0
      %v1387 = vadd.f32 0.0, %v1386
      %v1388 = vpop.f32.mrb[0].mxu0
      %1389 = vmatprep.mubr.bf16.mxu0 0
      %1390 = vmatmul.mubr.bf16.gmra.mrb[0].mxu0 %v1072
      %v1391 = vpop.f32.mrb[0].mxu0
      %v1392 = vadd.f32 0.0, %v1391
      %v1393 = vpop.f32.mrb[0].mxu0
      %v1394 = vpop.f32.mrb[0].mxu0
      %v1395 = vadd.f32 0.0, %v1394
      %v1396 = vpop.f32.mrb[0].mxu0
      %1397 = vmatprep.mubr.bf16.mxu0 0
      %1398 = vmatmul.mubr.bf16.gmra.mrb[0].mxu0 %v1075
      %v1399 = vpop.f32.mrb[0].mxu0
      %v1400 = vadd.f32 0.0, %v1399
      %v1401 = vpop.f32.mrb[0].mxu0
      %v1402 = vpop.f32.mrb[0].mxu0
      %v1403 = vadd.f32 0.0, %v1402
      %v1404 = vpop.f32.mrb[0].mxu0
      %1405 = vmatprep.mubr.bf16.mxu0 0
      %1406 = vmatmul.mubr.bf16.gmra.mrb[0].mxu0 %v1078
      %v1407 = vpop.f32.mrb[0].mxu0
      %v1408 = vadd.f32 0.0, %v1407
      %v1409 = vpop.f32.mrb[0].mxu0
      %v1410 = vpop.f32.mrb[0].mxu0
      %v1411 = vadd.f32 0.0, %v1410
      %v1412 = vpop.f32.mrb[0].mxu0
      %1413 = vmatprep.mubr.bf16.mxu0 0
      %1414 = vmatmul.mubr.bf16.gmra.mrb[0].mxu0 %v1081
      %v1415 = vpop.f32.mrb[0].mxu0
      %v1416 = vadd.f32 0.0, %v1415
      %v1417 = vpop.f32.mrb[0].mxu0
      %v1418 = vpop.f32.mrb[0].mxu0
      %v1419 = vadd.f32 0.0, %v1418
      %v1420 = vpop.f32.mrb[0].mxu0
      %1421 = vmatprep.mubr.bf16.mxu0 0
      %1422 = vmatmul.mubr.bf16.gmra.mrb[0].mxu0 %v1267
      %v1423 = vpop.f32.mrb[0].mxu0
      %v1424 = vadd.f32 0.0, %v1423
      %v1425 = vpop.f32.mrb[0].mxu0
      %v1426 = vpop.f32.mrb[0].mxu0
      %v1427 = vadd.f32 0.0, %v1426
      %v1428 = vpop.f32.mrb[0].mxu0
      %1429 = vdwg.mxu0
      %v1430 = vadd.f32 %v1118, %v1304
      %v1431 = vadd.f32 %v1121, %v1307
      %v1432 = vadd.f32 %v1126, %v1312
      %v1433 = vadd.f32 %v1129, %v1315
      %v1434 = vadd.f32 %v1134, %v1320
      %v1435 = vadd.f32 %v1137, %v1323
      %v1436 = vadd.f32 %v1142, %v1328
      %v1437 = vadd.f32 %v1145, %v1331
      %v1438 = vadd.f32 %v1150, %v1336
      %v1439 = vadd.f32 %v1153, %v1339
      %v1440 = vadd.f32 %v1158, %v1344
      %v1441 = vadd.f32 %v1161, %v1347
      %v1442 = vadd.f32 %v1166, %v1352
      %v1443 = vadd.f32 %v1169, %v1355
      %v1444 = vadd.f32 %v1174, %v1360
      %v1445 = vadd.f32 %v1177, %v1363
      %v1446 = vadd.f32 %v1182, %v1368
      %v1447 = vadd.f32 %v1185, %v1371
      %v1448 = vadd.f32 %v1190, %v1376
      %v1449 = vadd.f32 %v1193, %v1379
      %v1450 = vadd.f32 %v1198, %v1384
      %v1451 = vadd.f32 %v1201, %v1387
      %v1452 = vadd.f32 %v1206, %v1392
      %v1453 = vadd.f32 %v1209, %v1395
      %v1454 = vadd.f32 %v1214, %v1400
      %v1455 = vadd.f32 %v1217, %v1403
      %v1456 = vadd.f32 %v1222, %v1408
      %v1457 = vadd.f32 %v1225, %v1411
      %v1458 = vadd.f32 %v1230, %v1416
      %v1459 = vadd.f32 %v1233, %v1419
      %v1460 = vadd.f32 %v1238, %v1424
      %v1461 = vadd.f32 %v1241, %v1427
      %v1463 = vshrl.u32 %v274, 16
      %v1465 = vrot.slane %v1463, 4
      %v1466 = vshll.u32 %v274, 16
      %v1468 = vrot.slane %v1466, 5
      %v1469 = vor.u32 %v1465, %v1468
      %v1470 = vrot.slane %v1469, 4
      %v1472 = vshll.u32 %v275, 16
      %v1474 = vrot.slane %v1472, 5
      %v1475 = vsel %vm283, %v1470, %v1474
      %v1476 = vshrl.u32 %v275, 16
      %v1478 = vrot.slane %v1476, 4
      %v1479 = vor.u32 %v1478, %v1474
      %v1480 = vrot.slane %v1479, 4
      %v1482 = vshll.u32 %v276, 16
      %v1484 = vrot.slane %v1482, 5
      %v1485 = vsel %vm283, %v1480, %v1484
      %s1486 = scalar_lea.vmem %s1, 48
      %v1487 = vld [vmem:[%s1486] sm:$0xf]
      %v1488 = vld [vmem:[%s1486 + $0x4] sm:$0xf]
      %v1489 = vld [vmem:[%s1486 + $0x8] sm:$0xf]
      %v1490 = vld [vmem:[%s1486 + $0xc] sm:$0xf]
      %v1491 = vunpack.c.l.b16 %v1475
      %v1492 = vunpack.c.l.b16 %v1485
      %v1493 = vpack.c.b16 %v1492, %v1491
      %v1498 = vunpack.c.l.b16 %v1487
      %v1499 = vunpack.c.l.b16 %v1488
      %v1500 = vunpack.c.l.b16 %v1489
      %v1501 = vunpack.c.l.b16 %v1490
      %v1502 = vpack.c.b16 %v1499, %v1498
      %v1503 = vpack.c.b16 %v1501, %v1500
      %v1507 = vsel %vm733, %v1493, 0
      %1509 = vmatprep.subr.bf16.mxu0 0
      %1510 = vmatpush1.bf16.msra.mxu0 %v1502
      %1511 = vmatprep.subr.bf16.mxu0 0
      %1512 = vmatpush1.bf16.msra.mxu0 %v1503
      %1513 = vmatprep.subr.bf16.mxu0 0
      %1514 = vmatpush1.bf16.msra.mxu0 0
      %1515 = vmatprep.subr.bf16.mxu0 0
      %1516 = vmatpush1.bf16.msra.mxu0 0
      %1517 = vmatprep.subr.bf16.mxu0 0
      %1518 = vmatpush1.bf16.msra.mxu0 0
      %1519 = vmatprep.subr.bf16.mxu0 0
      %1520 = vmatpush1.bf16.msra.mxu0 0
      %1521 = vmatprep.subr.bf16.mxu0 0
      %1522 = vmatpush1.bf16.msra.mxu0 0
      %1523 = vmatprep.subr.bf16.mxu0 0
      %1524 = vmatpush1.bf16.msra.mxu0 0
      %1525 = vmatprep.subr.bf16.mxu0 0
      %1526 = vmatpush1.bf16.msra.mxu0 0
      %1527 = vmatprep.subr.bf16.mxu0 0
      %1528 = vmatpush1.bf16.msra.mxu0 0
      %1529 = vmatprep.subr.bf16.mxu0 0
      %1530 = vmatpush1.bf16.msra.mxu0 0
      %1531 = vmatprep.subr.bf16.mxu0 0
      %1532 = vmatpush1.bf16.msra.mxu0 0
      %1533 = vmatprep.subr.bf16.mxu0 0
      %1534 = vmatpush1.bf16.msra.mxu0 0
      %1535 = vmatprep.subr.bf16.mxu0 0
      %1536 = vmatpush1.bf16.msra.mxu0 0
      %1537 = vmatprep.subr.bf16.mxu0 0
      %1538 = vmatpush1.bf16.msra.mxu0 0
      %1539 = vmatprep.subr.bf16.mxu0 0
      %1540 = vmatpush1.bf16.msra.mxu0 0
      %1541 = vmatprep.mubr.bf16.mxu0 0
      %1542 = vmatmul.mubr.bf16.gmra.mrb[0].mxu0 %v738
      %v1543 = vpop.f32.mrb[0].mxu0
      %v1544 = vadd.f32 0.0, %v1543
      %v1545 = vpop.f32.mrb[0].mxu0
      %v1546 = vpop.f32.mrb[0].mxu0
      %v1547 = vadd.f32 0.0, %v1546
      %v1548 = vpop.f32.mrb[0].mxu0
      %1549 = vmatprep.mubr.bf16.mxu0 0
      %1550 = vmatmul.mubr.bf16.gmra.mrb[0].mxu0 %v741
      %v1551 = vpop.f32.mrb[0].mxu0
      %v1552 = vadd.f32 0.0, %v1551
      %v1553 = vpop.f32.mrb[0].mxu0
      %v1554 = vpop.f32.mrb[0].mxu0
      %v1555 = vadd.f32 0.0, %v1554
      %v1556 = vpop.f32.mrb[0].mxu0
      %1557 = vmatprep.mubr.bf16.mxu0 0
      %1558 = vmatmul.mubr.bf16.gmra.mrb[0].mxu0 %v744
      %v1559 = vpop.f32.mrb[0].mxu0
      %v1560 = vadd.f32 0.0, %v1559
      %v1561 = vpop.f32.mrb[0].mxu0
      %v1562 = vpop.f32.mrb[0].mxu0
      %v1563 = vadd.f32 0.0, %v1562
      %v1564 = vpop.f32.mrb[0].mxu0
      %1565 = vmatprep.mubr.bf16.mxu0 0
      %1566 = vmatmul.mubr.bf16.gmra.mrb[0].mxu0 %v747
      %v1567 = vpop.f32.mrb[0].mxu0
      %v1568 = vadd.f32 0.0, %v1567
      %v1569 = vpop.f32.mrb[0].mxu0
      %v1570 = vpop.f32.mrb[0].mxu0
      %v1571 = vadd.f32 0.0, %v1570
      %v1572 = vpop.f32.mrb[0].mxu0
      %1573 = vmatprep.mubr.bf16.mxu0 0
      %1574 = vmatmul.mubr.bf16.gmra.mrb[0].mxu0 %v750
      %v1575 = vpop.f32.mrb[0].mxu0
      %v1576 = vadd.f32 0.0, %v1575
      %v1577 = vpop.f32.mrb[0].mxu0
      %v1578 = vpop.f32.mrb[0].mxu0
      %v1579 = vadd.f32 0.0, %v1578
      %v1580 = vpop.f32.mrb[0].mxu0
      %1581 = vmatprep.mubr.bf16.mxu0 0
      %1582 = vmatmul.mubr.bf16.gmra.mrb[0].mxu0 %v753
      %v1583 = vpop.f32.mrb[0].mxu0
      %v1584 = vadd.f32 0.0, %v1583
      %v1585 = vpop.f32.mrb[0].mxu0
      %v1586 = vpop.f32.mrb[0].mxu0
      %v1587 = vadd.f32 0.0, %v1586
      %v1588 = vpop.f32.mrb[0].mxu0
      %1589 = vmatprep.mubr.bf16.mxu0 0
      %1590 = vmatmul.mubr.bf16.gmra.mrb[0].mxu0 %v756
      %v1591 = vpop.f32.mrb[0].mxu0
      %v1592 = vadd.f32 0.0, %v1591
      %v1593 = vpop.f32.mrb[0].mxu0
      %v1594 = vpop.f32.mrb[0].mxu0
      %v1595 = vadd.f32 0.0, %v1594
      %v1596 = vpop.f32.mrb[0].mxu0
      %1597 = vmatprep.mubr.bf16.mxu0 0
      %1598 = vmatmul.mubr.bf16.gmra.mrb[0].mxu0 %v759
      %v1599 = vpop.f32.mrb[0].mxu0
      %v1600 = vadd.f32 0.0, %v1599
      %v1601 = vpop.f32.mrb[0].mxu0
      %v1602 = vpop.f32.mrb[0].mxu0
      %v1603 = vadd.f32 0.0, %v1602
      %v1604 = vpop.f32.mrb[0].mxu0
      %1605 = vmatprep.mubr.bf16.mxu0 0
      %1606 = vmatmul.mubr.bf16.gmra.mrb[0].mxu0 %v762
      %v1607 = vpop.f32.mrb[0].mxu0
      %v1608 = vadd.f32 0.0, %v1607
      %v1609 = vpop.f32.mrb[0].mxu0
      %v1610 = vpop.f32.mrb[0].mxu0
      %v1611 = vadd.f32 0.0, %v1610
      %v1612 = vpop.f32.mrb[0].mxu0
      %1613 = vmatprep.mubr.bf16.mxu0 0
      %1614 = vmatmul.mubr.bf16.gmra.mrb[0].mxu0 %v765
      %v1615 = vpop.f32.mrb[0].mxu0
      %v1616 = vadd.f32 0.0, %v1615
      %v1617 = vpop.f32.mrb[0].mxu0
      %v1618 = vpop.f32.mrb[0].mxu0
      %v1619 = vadd.f32 0.0, %v1618
      %v1620 = vpop.f32.mrb[0].mxu0
      %1621 = vmatprep.mubr.bf16.mxu0 0
      %1622 = vmatmul.mubr.bf16.gmra.mrb[0].mxu0 %v768
      %v1623 = vpop.f32.mrb[0].mxu0
      %v1624 = vadd.f32 0.0, %v1623
      %v1625 = vpop.f32.mrb[0].mxu0
      %v1626 = vpop.f32.mrb[0].mxu0
      %v1627 = vadd.f32 0.0, %v1626
      %v1628 = vpop.f32.mrb[0].mxu0
      %1629 = vmatprep.mubr.bf16.mxu0 0
      %1630 = vmatmul.mubr.bf16.gmra.mrb[0].mxu0 %v771
      %v1631 = vpop.f32.mrb[0].mxu0
      %v1632 = vadd.f32 0.0, %v1631
      %v1633 = vpop.f32.mrb[0].mxu0
      %v1634 = vpop.f32.mrb[0].mxu0
      %v1635 = vadd.f32 0.0, %v1634
      %v1636 = vpop.f32.mrb[0].mxu0
      %1637 = vmatprep.mubr.bf16.mxu0 0
      %1638 = vmatmul.mubr.bf16.gmra.mrb[0].mxu0 %v774
      %v1639 = vpop.f32.mrb[0].mxu0
      %v1640 = vadd.f32 0.0, %v1639
      %v1641 = vpop.f32.mrb[0].mxu0
      %v1642 = vpop.f32.mrb[0].mxu0
      %v1643 = vadd.f32 0.0, %v1642
      %v1644 = vpop.f32.mrb[0].mxu0
      %1645 = vmatprep.mubr.bf16.mxu0 0
      %1646 = vmatmul.mubr.bf16.gmra.mrb[0].mxu0 %v777
      %v1647 = vpop.f32.mrb[0].mxu0
      %v1648 = vadd.f32 0.0, %v1647
      %v1649 = vpop.f32.mrb[0].mxu0
      %v1650 = vpop.f32.mrb[0].mxu0
      %v1651 = vadd.f32 0.0, %v1650
      %v1652 = vpop.f32.mrb[0].mxu0
      %1653 = vmatprep.mubr.bf16.mxu0 0
      %1654 = vmatmul.mubr.bf16.gmra.mrb[0].mxu0 %v780
      %v1655 = vpop.f32.mrb[0].mxu0
      %v1656 = vadd.f32 0.0, %v1655
      %v1657 = vpop.f32.mrb[0].mxu0
      %v1658 = vpop.f32.mrb[0].mxu0
      %v1659 = vadd.f32 0.0, %v1658
      %v1660 = vpop.f32.mrb[0].mxu0
      %1661 = vmatprep.mubr.bf16.mxu0 0
      %1662 = vmatmul.mubr.bf16.gmra.mrb[0].mxu0 %v1507
      %v1663 = vpop.f32.mrb[0].mxu0
      %v1664 = vadd.f32 0.0, %v1663
      %v1665 = vpop.f32.mrb[0].mxu0
      %v1666 = vpop.f32.mrb[0].mxu0
      %v1667 = vadd.f32 0.0, %v1666
      %v1668 = vpop.f32.mrb[0].mxu0
      %1669 = vdwg.mxu0
      %v1670 = vadd.f32 %v1430, %v1544
      %v1671 = vadd.f32 %v1431, %v1547
      %v1672 = vadd.f32 %v1432, %v1552
      %v1673 = vadd.f32 %v1433, %v1555
      %v1674 = vadd.f32 %v1434, %v1560
      %v1675 = vadd.f32 %v1435, %v1563
      %v1676 = vadd.f32 %v1436, %v1568
      %v1677 = vadd.f32 %v1437, %v1571
      %v1678 = vadd.f32 %v1438, %v1576
      %v1679 = vadd.f32 %v1439, %v1579
      %v1680 = vadd.f32 %v1440, %v1584
      %v1681 = vadd.f32 %v1441, %v1587
      %v1682 = vadd.f32 %v1442, %v1592
      %v1683 = vadd.f32 %v1443, %v1595
      %v1684 = vadd.f32 %v1444, %v1600
      %v1685 = vadd.f32 %v1445, %v1603
      %v1686 = vadd.f32 %v1446, %v1608
      %v1687 = vadd.f32 %v1447, %v1611
      %v1688 = vadd.f32 %v1448, %v1616
      %v1689 = vadd.f32 %v1449, %v1619
      %v1690 = vadd.f32 %v1450, %v1624
      %v1691 = vadd.f32 %v1451, %v1627
      %v1692 = vadd.f32 %v1452, %v1632
      %v1693 = vadd.f32 %v1453, %v1635
      %v1694 = vadd.f32 %v1454, %v1640
      %v1695 = vadd.f32 %v1455, %v1643
      %v1696 = vadd.f32 %v1456, %v1648
      %v1697 = vadd.f32 %v1457, %v1651
      %v1698 = vadd.f32 %v1458, %v1656
      %v1699 = vadd.f32 %v1459, %v1659
      %v1700 = vadd.f32 %v1460, %v1664
      %v1701 = vadd.f32 %v1461, %v1667
      %v1702 = vld [vmem:[%s2] sm:$0x1]
      %v1704 = vlaneseq
      %v1705 = vshrl.u32 %v1704, 7
      %v1706 = vsub.s32 0, %v1705
      %v1707 = vrot.slane %v1702, %v1706
      %v1709 = vadd.f32 %v1670, %v1707
      %v1710 = vadd.f32 %v1671, %v1707
      %v1711 = vadd.f32 %v1672, %v1707
      %v1712 = vadd.f32 %v1673, %v1707
      %v1713 = vadd.f32 %v1674, %v1707
      %v1714 = vadd.f32 %v1675, %v1707
      %v1715 = vadd.f32 %v1676, %v1707
      %v1716 = vadd.f32 %v1677, %v1707
      %v1717 = vadd.f32 %v1678, %v1707
      %v1718 = vadd.f32 %v1679, %v1707
      %v1719 = vadd.f32 %v1680, %v1707
      %v1720 = vadd.f32 %v1681, %v1707
      %v1721 = vadd.f32 %v1682, %v1707
      %v1722 = vadd.f32 %v1683, %v1707
      %v1723 = vadd.f32 %v1684, %v1707
      %v1724 = vadd.f32 %v1685, %v1707
      %v1725 = vadd.f32 %v1686, %v1707
      %v1726 = vadd.f32 %v1687, %v1707
      %v1727 = vadd.f32 %v1688, %v1707
      %v1728 = vadd.f32 %v1689, %v1707
      %v1729 = vadd.f32 %v1690, %v1707
      %v1730 = vadd.f32 %v1691, %v1707
      %v1731 = vadd.f32 %v1692, %v1707
      %v1732 = vadd.f32 %v1693, %v1707
      %v1733 = vadd.f32 %v1694, %v1707
      %v1734 = vadd.f32 %v1695, %v1707
      %v1735 = vadd.f32 %v1696, %v1707
      %v1736 = vadd.f32 %v1697, %v1707
      %v1737 = vadd.f32 %v1698, %v1707
      %v1738 = vadd.f32 %v1699, %v1707
      %v1739 = vadd.f32 %v1700, %v1707
      %v1740 = vadd.f32 %v1701, %v1707
      %vm1741 = vcmask 27648
      %1742 = vst.msk [vmem:[#allocation2] sm:$0xf] %vm1741, 0
      %1743 = vst.msk [vmem:[#allocation2 + $0x4] sm:$0xf] %vm1741, 0
      %vm1744 = vcmask 24576
      %1745 = vst.msk [vmem:[#allocation2 + $0x8] sm:$0x1] %vm1744, 0
      %1746 = vst.msk [vmem:[#allocation2 + $0xc] sm:$0xf] %vm1741, 0
      %1747 = vst.msk [vmem:[#allocation2 + $0x10] sm:$0xf] %vm1741, 0
      %1748 = vst.msk [vmem:[#allocation2 + $0x14] sm:$0x1] %vm1744, 0
      %1749 = vst.msk [vmem:[#allocation2 + $0x18] sm:$0xf] %vm1741, 0
      %1750 = vst.msk [vmem:[#allocation2 + $0x1c] sm:$0xf] %vm1741, 0
      %1751 = vst.msk [vmem:[#allocation2 + $0x20] sm:$0x1] %vm1744, 0
      %1752 = vst.msk [vmem:[#allocation2 + $0x24] sm:$0xf] %vm1741, 0
      %1753 = vst.msk [vmem:[#allocation2 + $0x28] sm:$0xf] %vm1741, 0
      %1754 = vst.msk [vmem:[#allocation2 + $0x2c] sm:$0x1] %vm1744, 0
      %1755 = vst.msk [vmem:[#allocation2 + $0x30] sm:$0xf] %vm1741, 0
      %1756 = vst.msk [vmem:[#allocation2 + $0x34] sm:$0xf] %vm1741, 0
      %1757 = vst.msk [vmem:[#allocation2 + $0x38] sm:$0x1] %vm1744, 0
      %1758 = vst.msk [vmem:[#allocation2 + $0x3c] sm:$0xf] %vm1741, 0
      %1759 = vst.msk [vmem:[#allocation2 + $0x40] sm:$0xf] %vm1741, 0
      %1760 = vst.msk [vmem:[#allocation2 + $0x44] sm:$0x1] %vm1744, 0
      %1761 = vst.msk [vmem:[#allocation2 + $0x48] sm:$0xf] %vm1741, 0
      %1762 = vst.msk [vmem:[#allocation2 + $0x4c] sm:$0xf] %vm1741, 0
      %1763 = vst.msk [vmem:[#allocation2 + $0x50] sm:$0x1] %vm1744, 0
      %1764 = vst.msk [vmem:[#allocation2 + $0x54] sm:$0xf] %vm1741, 0
      %1765 = vst.msk [vmem:[#allocation2 + $0x58] sm:$0xf] %vm1741, 0
      %1766 = vst.msk [vmem:[#allocation2 + $0x5c] sm:$0x1] %vm1744, 0
      %1767 = vst.msk [vmem:[#allocation2 + $0x60] sm:$0xf] %vm1741, 0
      %1768 = vst.msk [vmem:[#allocation2 + $0x64] sm:$0xf] %vm1741, 0
      %1769 = vst.msk [vmem:[#allocation2 + $0x68] sm:$0x1] %vm1744, 0
      %1770 = vst.msk [vmem:[#allocation2 + $0x6c] sm:$0xf] %vm1741, 0
      %1771 = vst.msk [vmem:[#allocation2 + $0x70] sm:$0xf] %vm1741, 0
      %1772 = vst.msk [vmem:[#allocation2 + $0x74] sm:$0x1] %vm1744, 0
      %1773 = vst.msk [vmem:[#allocation2 + $0x78] sm:$0xf] %vm1741, 0
      %1774 = vst.msk [vmem:[#allocation2 + $0x7c] sm:$0xf] %vm1741, 0
      %1775 = vst.msk [vmem:[#allocation2 + $0x80] sm:$0x1] %vm1744, 0
      %1776 = vst.msk [vmem:[#allocation2 + $0x84] sm:$0xf] %vm1741, 0
      %1777 = vst.msk [vmem:[#allocation2 + $0x88] sm:$0xf] %vm1741, 0
      %1778 = vst.msk [vmem:[#allocation2 + $0x8c] sm:$0x1] %vm1744, 0
      %1779 = vst.msk [vmem:[#allocation2 + $0x90] sm:$0xf] %vm1741, 0
      %1780 = vst.msk [vmem:[#allocation2 + $0x94] sm:$0xf] %vm1741, 0
      %1781 = vst.msk [vmem:[#allocation2 + $0x98] sm:$0x1] %vm1744, 0
      %1782 = vst.msk [vmem:[#allocation2 + $0x9c] sm:$0xf] %vm1741, 0
      %1783 = vst.msk [vmem:[#allocation2 + $0xa0] sm:$0xf] %vm1741, 0
      %1784 = vst.msk [vmem:[#allocation2 + $0xa4] sm:$0x1] %vm1744, 0
      %1785 = vst.msk [vmem:[#allocation2 + $0xa8] sm:$0xf] %vm1741, 0
      %1786 = vst.msk [vmem:[#allocation2 + $0xac] sm:$0xf] %vm1741, 0
      %1787 = vst.msk [vmem:[#allocation2 + $0xb0] sm:$0x1] %vm1744, 0
      %1788 = vst.msk [vmem:[#allocation2 + $0xb4] sm:$0xf] %vm1741, 0
      %1789 = vst.msk [vmem:[#allocation2 + $0xb8] sm:$0xf] %vm1741, 0
      %1790 = vst.msk [vmem:[#allocation2 + $0xbc] sm:$0x1] %vm1744, 0
      %1791 = vst.msk [vmem:[#allocation2 + $0xc0] sm:$0xf] %vm1741, 0
      %1792 = vst.msk [vmem:[#allocation2 + $0xc4] sm:$0xf] %vm1741, 0
      %1793 = vst.msk [vmem:[#allocation2 + $0xc8] sm:$0x1] %vm1744, 0
      %1794 = vst.msk [vmem:[#allocation2 + $0xcc] sm:$0xf] %vm1741, 0
      %1795 = vst.msk [vmem:[#allocation2 + $0xd0] sm:$0xf] %vm1741, 0
      %1796 = vst.msk [vmem:[#allocation2 + $0xd4] sm:$0x1] %vm1744, 0
      %v1797 = vpack.c.bf16 %v1710, %v1709
      %v1798 = vpack.c.bf16 %v1712, %v1711
      %v1799 = vpack.c.bf16 %v1714, %v1713
      %v1800 = vpack.c.bf16 %v1716, %v1715
      %v1801 = vpack.c.bf16 %v1718, %v1717
      %v1802 = vpack.c.bf16 %v1720, %v1719
      %v1803 = vpack.c.bf16 %v1722, %v1721
      %v1804 = vpack.c.bf16 %v1724, %v1723
      %v1805 = vpack.c.bf16 %v1726, %v1725
      %v1806 = vpack.c.bf16 %v1728, %v1727
      %v1807 = vpack.c.bf16 %v1730, %v1729
      %v1808 = vpack.c.bf16 %v1732, %v1731
      %v1809 = vpack.c.bf16 %v1734, %v1733
      %v1810 = vpack.c.bf16 %v1736, %v1735
      %v1811 = vpack.c.bf16 %v1738, %v1737
      %v1812 = vpack.c.bf16 %v1740, %v1739
      %v1829 = vunpack.c.l.b16 %v1797
      %v1830 = vunpack.c.h.b16 %v1797
      %v1831 = vunpack.c.l.b16 %v1798
      %v1832 = vunpack.c.h.b16 %v1798
      %v1833 = vunpack.c.l.b16 %v1799
      %v1834 = vunpack.c.h.b16 %v1799
      %v1835 = vunpack.c.l.b16 %v1800
      %v1836 = vunpack.c.h.b16 %v1800
      %v1837 = vunpack.c.l.b16 %v1801
      %v1838 = vunpack.c.h.b16 %v1801
      %v1839 = vunpack.c.l.b16 %v1802
      %v1840 = vunpack.c.h.b16 %v1802
      %v1841 = vunpack.c.l.b16 %v1803
      %v1842 = vunpack.c.h.b16 %v1803
      %v1843 = vunpack.c.l.b16 %v1804
      %v1844 = vunpack.c.h.b16 %v1804
      %v1845 = vunpack.c.l.b16 %v1805
      %v1846 = vunpack.c.h.b16 %v1805
      %v1847 = vunpack.c.l.b16 %v1806
      %v1848 = vunpack.c.h.b16 %v1806
      %v1849 = vunpack.c.l.b16 %v1807
      %v1850 = vunpack.c.h.b16 %v1807
      %v1851 = vunpack.c.l.b16 %v1808
      %v1852 = vunpack.c.h.b16 %v1808
      %v1853 = vunpack.c.l.b16 %v1809
      %v1854 = vunpack.c.h.b16 %v1809
      %v1855 = vunpack.c.l.b16 %v1810
      %v1856 = vunpack.c.h.b16 %v1810
      %v1857 = vunpack.c.l.b16 %v1811
      %v1858 = vunpack.c.h.b16 %v1811
      %v1859 = vunpack.c.l.b16 %v1812
      %v1860 = vunpack.c.h.b16 %v1812
      %v1861 = vpack.c.b16 %v1829, %v1829
      %v1862 = vpack.c.b16 %v1830, %v1830
      %v1863 = vpack.c.b16 %v1831, %v1831
      %v1864 = vpack.c.b16 %v1832, %v1832
      %v1865 = vpack.c.b16 %v1833, %v1833
      %v1866 = vpack.c.b16 %v1834, %v1834
      %v1867 = vpack.c.b16 %v1835, %v1835
      %v1868 = vpack.c.b16 %v1836, %v1836
      %v1869 = vpack.c.b16 %v1837, %v1837
      %v1870 = vpack.c.b16 %v1838, %v1838
      %v1871 = vpack.c.b16 %v1839, %v1839
      %v1872 = vpack.c.b16 %v1840, %v1840
      %v1873 = vpack.c.b16 %v1841, %v1841
      %v1874 = vpack.c.b16 %v1842, %v1842
      %v1875 = vpack.c.b16 %v1843, %v1843
      %v1876 = vpack.c.b16 %v1844, %v1844
      %v1877 = vpack.c.b16 %v1845, %v1845
      %v1878 = vpack.c.b16 %v1846, %v1846
      %v1879 = vpack.c.b16 %v1847, %v1847
      %v1880 = vpack.c.b16 %v1848, %v1848
      %v1881 = vpack.c.b16 %v1849, %v1849
      %v1882 = vpack.c.b16 %v1850, %v1850
      %v1883 = vpack.c.b16 %v1851, %v1851
      %v1884 = vpack.c.b16 %v1852, %v1852
      %v1885 = vpack.c.b16 %v1853, %v1853
      %v1886 = vpack.c.b16 %v1854, %v1854
      %v1887 = vpack.c.b16 %v1855, %v1855
      %v1888 = vpack.c.b16 %v1856, %v1856
      %v1889 = vpack.c.b16 %v1857, %v1857
      %v1890 = vpack.c.b16 %v1858, %v1858
      %v1891 = vpack.c.b16 %v1859, %v1859
      %v1892 = vpack.c.b16 %v1860, %v1860
      %vm1893 = vsmask.f32 256
      %vm1894 = vsmask.f32 4368
      %vm1895 = vmor %vm1893, %vm1894
      %v1897 = vshrl.u32 %v1861, 16
      %v1899 = vrot.slane %v1897, 7
      %v1900 = vshll.u32 %v1861, 16
      %v1902 = vor.u32 %v1899, %v1900
      %v1903 = vrot.slane %v1899, 4
      %v1905 = vshrl.u32 %v1862, 16
      %v1907 = vrot.slane %v1905, 7
      %v1908 = vshll.u32 %v1862, 16
      %v1910 = vor.u32 %v1907, %v1908
      %v1911 = vsel %vm1895, %v1903, %v1910
      %v1912 = vrot.slane %v1907, 4
      %v1914 = vshrl.u32 %v1863, 16
      %v1916 = vrot.slane %v1914, 7
      %v1917 = vshll.u32 %v1863, 16
      %v1919 = vor.u32 %v1916, %v1917
      %v1920 = vrot.slane %v1916, 4
      %v1922 = vshrl.u32 %v1864, 16
      %v1924 = vrot.slane %v1922, 7
      %v1925 = vshll.u32 %v1864, 16
      %v1927 = vor.u32 %v1924, %v1925
      %v1928 = vsel %vm1895, %v1920, %v1927
      %v1929 = vrot.slane %v1924, 4
      %v1931 = vshrl.u32 %v1865, 16
      %v1933 = vrot.slane %v1931, 7
      %v1934 = vshll.u32 %v1865, 16
      %v1936 = vor.u32 %v1933, %v1934
      %v1937 = vrot.slane %v1933, 4
      %v1939 = vshrl.u32 %v1866, 16
      %v1941 = vrot.slane %v1939, 7
      %v1942 = vshll.u32 %v1866, 16
      %v1944 = vor.u32 %v1941, %v1942
      %v1945 = vsel %vm1895, %v1937, %v1944
      %v1946 = vrot.slane %v1941, 4
      %v1948 = vshrl.u32 %v1867, 16
      %v1950 = vrot.slane %v1948, 7
      %v1951 = vshll.u32 %v1867, 16
      %v1953 = vor.u32 %v1950, %v1951
      %v1954 = vrot.slane %v1950, 4
      %v1956 = vshrl.u32 %v1868, 16
      %v1958 = vrot.slane %v1956, 7
      %v1959 = vshll.u32 %v1868, 16
      %v1961 = vor.u32 %v1958, %v1959
      %v1962 = vsel %vm1895, %v1954, %v1961
      %v1963 = vrot.slane %v1958, 4
      %v1965 = vshrl.u32 %v1869, 16
      %v1967 = vrot.slane %v1965, 7
      %v1968 = vshll.u32 %v1869, 16
      %v1970 = vor.u32 %v1967, %v1968
      %v1971 = vrot.slane %v1967, 4
      %v1973 = vshrl.u32 %v1870, 16
      %v1975 = vrot.slane %v1973, 7
      %v1976 = vshll.u32 %v1870, 16
      %v1978 = vor.u32 %v1975, %v1976
      %v1979 = vsel %vm1895, %v1971, %v1978
      %v1980 = vrot.slane %v1975, 4
      %v1982 = vshrl.u32 %v1871, 16
      %v1984 = vrot.slane %v1982, 7
      %v1985 = vshll.u32 %v1871, 16
      %v1987 = vor.u32 %v1984, %v1985
      %v1988 = vrot.slane %v1984, 4
      %v1990 = vshrl.u32 %v1872, 16
      %v1992 = vrot.slane %v1990, 7
      %v1993 = vshll.u32 %v1872, 16
      %v1995 = vor.u32 %v1992, %v1993
      %v1996 = vsel %vm1895, %v1988, %v1995
      %v1997 = vrot.slane %v1992, 4
      %v1999 = vshrl.u32 %v1873, 16
      %v2001 = vrot.slane %v1999, 7
      %v2002 = vshll.u32 %v1873, 16
      %v2004 = vor.u32 %v2001, %v2002
      %v2005 = vrot.slane %v2001, 4
      %v2007 = vshrl.u32 %v1874, 16
      %v2009 = vrot.slane %v2007, 7
      %v2010 = vshll.u32 %v1874, 16
      %v2012 = vor.u32 %v2009, %v2010
      %v2013 = vsel %vm1895, %v2005, %v2012
      %v2014 = vrot.slane %v2009, 4
      %v2016 = vshrl.u32 %v1875, 16
      %v2018 = vrot.slane %v2016, 7
      %v2019 = vshll.u32 %v1875, 16
      %v2021 = vor.u32 %v2018, %v2019
      %v2022 = vrot.slane %v2018, 4
      %v2024 = vshrl.u32 %v1876, 16
      %v2026 = vrot.slane %v2024, 7
      %v2027 = vshll.u32 %v1876, 16
      %v2029 = vor.u32 %v2026, %v2027
      %v2030 = vsel %vm1895, %v2022, %v2029
      %v2031 = vrot.slane %v2026, 4
      %v2033 = vshrl.u32 %v1877, 16
      %v2035 = vrot.slane %v2033, 7
      %v2036 = vshll.u32 %v1877, 16
      %v2038 = vor.u32 %v2035, %v2036
      %v2039 = vrot.slane %v2035, 4
      %v2041 = vshrl.u32 %v1878, 16
      %v2043 = vrot.slane %v2041, 7
      %v2044 = vshll.u32 %v1878, 16
      %v2046 = vor.u32 %v2043, %v2044
      %v2047 = vsel %vm1895, %v2039, %v2046
      %v2048 = vrot.slane %v2043, 4
      %v2050 = vshrl.u32 %v1879, 16
      %v2052 = vrot.slane %v2050, 7
      %v2053 = vshll.u32 %v1879, 16
      %v2055 = vor.u32 %v2052, %v2053
      %v2056 = vrot.slane %v2052, 4
      %v2058 = vshrl.u32 %v1880, 16
      %v2060 = vrot.slane %v2058, 7
      %v2061 = vshll.u32 %v1880, 16
      %v2063 = vor.u32 %v2060, %v2061
      %v2064 = vsel %vm1895, %v2056, %v2063
      %v2065 = vrot.slane %v2060, 4
      %v2067 = vshrl.u32 %v1881, 16
      %v2069 = vrot.slane %v2067, 7
      %v2070 = vshll.u32 %v1881, 16
      %v2072 = vor.u32 %v2069, %v2070
      %v2073 = vrot.slane %v2069, 4
      %v2075 = vshrl.u32 %v1882, 16
      %v2077 = vrot.slane %v2075, 7
      %v2078 = vshll.u32 %v1882, 16
      %v2080 = vor.u32 %v2077, %v2078
      %v2081 = vsel %vm1895, %v2073, %v2080
      %v2082 = vrot.slane %v2077, 4
      %v2084 = vshrl.u32 %v1883, 16
      %v2086 = vrot.slane %v2084, 7
      %v2087 = vshll.u32 %v1883, 16
      %v2089 = vor.u32 %v2086, %v2087
      %v2090 = vrot.slane %v2086, 4
      %v2092 = vshrl.u32 %v1884, 16
      %v2094 = vrot.slane %v2092, 7
      %v2095 = vshll.u32 %v1884, 16
      %v2097 = vor.u32 %v2094, %v2095
      %v2098 = vsel %vm1895, %v2090, %v2097
      %v2099 = vrot.slane %v2094, 4
      %v2101 = vshrl.u32 %v1885, 16
      %v2103 = vrot.slane %v2101, 7
      %v2104 = vshll.u32 %v1885, 16
      %v2106 = vor.u32 %v2103, %v2104
      %v2107 = vrot.slane %v2103, 4
      %v2109 = vshrl.u32 %v1886, 16
      %v2111 = vrot.slane %v2109, 7
      %v2112 = vshll.u32 %v1886, 16
      %v2114 = vor.u32 %v2111, %v2112
      %v2115 = vsel %vm1895, %v2107, %v2114
      %v2116 = vrot.slane %v2111, 4
      %v2118 = vshrl.u32 %v1887, 16
      %v2120 = vrot.slane %v2118, 7
      %v2121 = vshll.u32 %v1887, 16
      %v2123 = vor.u32 %v2120, %v2121
      %v2124 = vrot.slane %v2120, 4
      %v2126 = vshrl.u32 %v1888, 16
      %v2128 = vrot.slane %v2126, 7
      %v2129 = vshll.u32 %v1888, 16
      %v2131 = vor.u32 %v2128, %v2129
      %v2132 = vsel %vm1895, %v2124, %v2131
      %v2133 = vrot.slane %v2128, 4
      %v2135 = vshrl.u32 %v1889, 16
      %v2137 = vrot.slane %v2135, 7
      %v2138 = vshll.u32 %v1889, 16
      %v2140 = vor.u32 %v2137, %v2138
      %v2141 = vrot.slane %v2137, 4
      %v2143 = vshrl.u32 %v1890, 16
      %v2145 = vrot.slane %v2143, 7
      %v2146 = vshll.u32 %v1890, 16
      %v2148 = vor.u32 %v2145, %v2146
      %v2149 = vsel %vm1895, %v2141, %v2148
      %v2150 = vrot.slane %v2145, 4
      %v2152 = vshrl.u32 %v1891, 16
      %v2154 = vrot.slane %v2152, 7
      %v2155 = vshll.u32 %v1891, 16
      %v2157 = vor.u32 %v2154, %v2155
      %v2158 = vrot.slane %v2154, 4
      %v2160 = vshrl.u32 %v1892, 16
      %v2162 = vrot.slane %v2160, 7
      %v2163 = vshll.u32 %v1892, 16
      %v2165 = vor.u32 %v2162, %v2163
      %v2166 = vsel %vm1895, %v2158, %v2165
      %v2167 = vrot.slane %v2162, 4
      %s2216 = scalar_lea.vmem [#allocation2], 12
      %vm2217 = vcmask 27648
      %vm2218 = vsmask.f32 7938
      %vm2219 = vmand %vm2217, %vm2218
      %v2220 = vld [vmem:[%s2216] sm:$0xf]
      %v2221 = vsel %vm2219, %v1902, %v2220
      %2222 = vst [vmem:[%s2216] sm:$0xf] %v2221
      %2223 = vst.msk [vmem:[%s2216 + $0x4] sm:$0xf] %vm1741, %v1911
      %vm2224 = vcmask 24576
      %vm2225 = vmand %vm2224, %vm1893
      %v2226 = vld [vmem:[%s2216 + $0x8] sm:$0x1]
      %v2227 = vsel %vm2225, %v1912, %v2226
      %2228 = vst [vmem:[%s2216 + $0x8] sm:$0x1] %v2227
      %v2229 = vld [vmem:[%s2216 + $0xc] sm:$0xf]
      %v2230 = vsel %vm2219, %v1919, %v2229
      %2231 = vst [vmem:[%s2216 + $0xc] sm:$0xf] %v2230
      %2232 = vst.msk [vmem:[%s2216 + $0x10] sm:$0xf] %vm1741, %v1928
      %v2233 = vld [vmem:[%s2216 + $0x14] sm:$0x1]
      %v2234 = vsel %vm2225, %v1929, %v2233
      %2235 = vst [vmem:[%s2216 + $0x14] sm:$0x1] %v2234
      %v2236 = vld [vmem:[%s2216 + $0x18] sm:$0xf]
      %v2237 = vsel %vm2219, %v1936, %v2236
      %2238 = vst [vmem:[%s2216 + $0x18] sm:$0xf] %v2237
      %2239 = vst.msk [vmem:[%s2216 + $0x1c] sm:$0xf] %vm1741, %v1945
      %v2240 = vld [vmem:[%s2216 + $0x20] sm:$0x1]
      %v2241 = vsel %vm2225, %v1946, %v2240
      %2242 = vst [vmem:[%s2216 + $0x20] sm:$0x1] %v2241
      %v2243 = vld [vmem:[%s2216 + $0x24] sm:$0xf]
      %v2244 = vsel %vm2219, %v1953, %v2243
      %2245 = vst [vmem:[%s2216 + $0x24] sm:$0xf] %v2244
      %2246 = vst.msk [vmem:[%s2216 + $0x28] sm:$0xf] %vm1741, %v1962
      %v2247 = vld [vmem:[%s2216 + $0x2c] sm:$0x1]
      %v2248 = vsel %vm2225, %v1963, %v2247
      %2249 = vst [vmem:[%s2216 + $0x2c] sm:$0x1] %v2248
      %v2250 = vld [vmem:[%s2216 + $0x30] sm:$0xf]
      %v2251 = vsel %vm2219, %v1970, %v2250
      %2252 = vst [vmem:[%s2216 + $0x30] sm:$0xf] %v2251
      %2253 = vst.msk [vmem:[%s2216 + $0x34] sm:$0xf] %vm1741, %v1979
      %v2254 = vld [vmem:[%s2216 + $0x38] sm:$0x1]
      %v2255 = vsel %vm2225, %v1980, %v2254
      %2256 = vst [vmem:[%s2216 + $0x38] sm:$0x1] %v2255
      %v2257 = vld [vmem:[%s2216 + $0x3c] sm:$0xf]
      %v2258 = vsel %vm2219, %v1987, %v2257
      %2259 = vst [vmem:[%s2216 + $0x3c] sm:$0xf] %v2258
      %2260 = vst.msk [vmem:[%s2216 + $0x40] sm:$0xf] %vm1741, %v1996
      %v2261 = vld [vmem:[%s2216 + $0x44] sm:$0x1]
      %v2262 = vsel %vm2225, %v1997, %v2261
      %2263 = vst [vmem:[%s2216 + $0x44] sm:$0x1] %v2262
      %v2264 = vld [vmem:[%s2216 + $0x48] sm:$0xf]
      %v2265 = vsel %vm2219, %v2004, %v2264
      %2266 = vst [vmem:[%s2216 + $0x48] sm:$0xf] %v2265
      %2267 = vst.msk [vmem:[%s2216 + $0x4c] sm:$0xf] %vm1741, %v2013
      %v2268 = vld [vmem:[%s2216 + $0x50] sm:$0x1]
      %v2269 = vsel %vm2225, %v2014, %v2268
      %2270 = vst [vmem:[%s2216 + $0x50] sm:$0x1] %v2269
      %v2271 = vld [vmem:[%s2216 + $0x54] sm:$0xf]
      %v2272 = vsel %vm2219, %v2021, %v2271
      %2273 = vst [vmem:[%s2216 + $0x54] sm:$0xf] %v2272
      %2274 = vst.msk [vmem:[%s2216 + $0x58] sm:$0xf] %vm1741, %v2030
      %v2275 = vld [vmem:[%s2216 + $0x5c] sm:$0x1]
      %v2276 = vsel %vm2225, %v2031, %v2275
      %2277 = vst [vmem:[%s2216 + $0x5c] sm:$0x1] %v2276
      %v2278 = vld [vmem:[%s2216 + $0x60] sm:$0xf]
      %v2279 = vsel %vm2219, %v2038, %v2278
      %2280 = vst [vmem:[%s2216 + $0x60] sm:$0xf] %v2279
      %2281 = vst.msk [vmem:[%s2216 + $0x64] sm:$0xf] %vm1741, %v2047
      %v2282 = vld [vmem:[%s2216 + $0x68] sm:$0x1]
      %v2283 = vsel %vm2225, %v2048, %v2282
      %2284 = vst [vmem:[%s2216 + $0x68] sm:$0x1] %v2283
      %v2285 = vld [vmem:[%s2216 + $0x6c] sm:$0xf]
      %v2286 = vsel %vm2219, %v2055, %v2285
      %2287 = vst [vmem:[%s2216 + $0x6c] sm:$0xf] %v2286
      %2288 = vst.msk [vmem:[%s2216 + $0x70] sm:$0xf] %vm1741, %v2064
      %v2289 = vld [vmem:[%s2216 + $0x74] sm:$0x1]
      %v2290 = vsel %vm2225, %v2065, %v2289
      %2291 = vst [vmem:[%s2216 + $0x74] sm:$0x1] %v2290
      %v2292 = vld [vmem:[%s2216 + $0x78] sm:$0xf]
      %v2293 = vsel %vm2219, %v2072, %v2292
      %2294 = vst [vmem:[%s2216 + $0x78] sm:$0xf] %v2293
      %2295 = vst.msk [vmem:[%s2216 + $0x7c] sm:$0xf] %vm1741, %v2081
      %v2296 = vld [vmem:[%s2216 + $0x80] sm:$0x1]
      %v2297 = vsel %vm2225, %v2082, %v2296
      %2298 = vst [vmem:[%s2216 + $0x80] sm:$0x1] %v2297
      %v2299 = vld [vmem:[%s2216 + $0x84] sm:$0xf]
      %v2300 = vsel %vm2219, %v2089, %v2299
      %2301 = vst [vmem:[%s2216 + $0x84] sm:$0xf] %v2300
      %2302 = vst.msk [vmem:[%s2216 + $0x88] sm:$0xf] %vm1741, %v2098
      %v2303 = vld [vmem:[%s2216 + $0x8c] sm:$0x1]
      %v2304 = vsel %vm2225, %v2099, %v2303
      %2305 = vst [vmem:[%s2216 + $0x8c] sm:$0x1] %v2304
      %v2306 = vld [vmem:[%s2216 + $0x90] sm:$0xf]
      %v2307 = vsel %vm2219, %v2106, %v2306
      %2308 = vst [vmem:[%s2216 + $0x90] sm:$0xf] %v2307
      %2309 = vst.msk [vmem:[%s2216 + $0x94] sm:$0xf] %vm1741, %v2115
      %v2310 = vld [vmem:[%s2216 + $0x98] sm:$0x1]
      %v2311 = vsel %vm2225, %v2116, %v2310
      %2312 = vst [vmem:[%s2216 + $0x98] sm:$0x1] %v2311
      %v2313 = vld [vmem:[%s2216 + $0x9c] sm:$0xf]
      %v2314 = vsel %vm2219, %v2123, %v2313
      %2315 = vst [vmem:[%s2216 + $0x9c] sm:$0xf] %v2314
      %2316 = vst.msk [vmem:[%s2216 + $0xa0] sm:$0xf] %vm1741, %v2132
      %v2317 = vld [vmem:[%s2216 + $0xa4] sm:$0x1]
      %v2318 = vsel %vm2225, %v2133, %v2317
      %2319 = vst [vmem:[%s2216 + $0xa4] sm:$0x1] %v2318
      %v2320 = vld [vmem:[%s2216 + $0xa8] sm:$0xf]
      %v2321 = vsel %vm2219, %v2140, %v2320
      %2322 = vst [vmem:[%s2216 + $0xa8] sm:$0xf] %v2321
      %2323 = vst.msk [vmem:[%s2216 + $0xac] sm:$0xf] %vm1741, %v2149
      %v2324 = vld [vmem:[%s2216 + $0xb0] sm:$0x1]
      %v2325 = vsel %vm2225, %v2150, %v2324
      %2326 = vst [vmem:[%s2216 + $0xb0] sm:$0x1] %v2325
      %v2327 = vld [vmem:[%s2216 + $0xb4] sm:$0xf]
      %v2328 = vsel %vm2219, %v2157, %v2327
      %2329 = vst [vmem:[%s2216 + $0xb4] sm:$0xf] %v2328
      %2330 = vst.msk [vmem:[%s2216 + $0xb8] sm:$0xf] %vm1741, %v2166
      %v2331 = vld [vmem:[%s2216 + $0xbc] sm:$0x1]
      %v2332 = vsel %vm2225, %v2167, %v2331
      %2333 = vst [vmem:[%s2216 + $0xbc] sm:$0x1] %v2332
      %v2334 = vld [vmem:[#allocation2] sm:$0xf]
      %v2335 = vld [vmem:[#allocation2 + $0x4] sm:$0xf]
      %v2336 = vld [vmem:[#allocation2 + $0xc] sm:$0xf]
      %v2337 = vld [vmem:[#allocation2 + $0x10] sm:$0xf]
      %v2338 = vld [vmem:[#allocation2 + $0x18] sm:$0xf]
      %v2339 = vld [vmem:[#allocation2 + $0x1c] sm:$0xf]
      %v2340 = vld [vmem:[#allocation2 + $0x24] sm:$0xf]
      %v2341 = vld [vmem:[#allocation2 + $0x28] sm:$0xf]
      %v2342 = vld [vmem:[#allocation2 + $0x30] sm:$0xf]
      %v2343 = vld [vmem:[#allocation2 + $0x34] sm:$0xf]
      %v2344 = vld [vmem:[#allocation2 + $0x3c] sm:$0xf]
      %v2345 = vld [vmem:[#allocation2 + $0x40] sm:$0xf]
      %v2346 = vld [vmem:[#allocation2 + $0x48] sm:$0xf]
      %v2347 = vld [vmem:[#allocation2 + $0x4c] sm:$0xf]
      %v2348 = vld [vmem:[#allocation2 + $0x54] sm:$0xf]
      %v2349 = vld [vmem:[#allocation2 + $0x58] sm:$0xf]
      %v2350 = vld [vmem:[#allocation2 + $0x60] sm:$0xf]
      %v2351 = vld [vmem:[#allocation2 + $0x64] sm:$0xf]
      %v2352 = vld [vmem:[#allocation2 + $0x6c] sm:$0xf]
      %v2353 = vld [vmem:[#allocation2 + $0x70] sm:$0xf]
      %v2354 = vld [vmem:[#allocation2 + $0x78] sm:$0xf]
      %v2355 = vld [vmem:[#allocation2 + $0x7c] sm:$0xf]
      %v2356 = vld [vmem:[#allocation2 + $0x84] sm:$0xf]
      %v2357 = vld [vmem:[#allocation2 + $0x88] sm:$0xf]
      %v2358 = vld [vmem:[#allocation2 + $0x90] sm:$0xf]
      %v2359 = vld [vmem:[#allocation2 + $0x94] sm:$0xf]
      %v2360 = vld [vmem:[#allocation2 + $0x9c] sm:$0xf]
      %v2361 = vld [vmem:[#allocation2 + $0xa0] sm:$0xf]
      %v2362 = vld [vmem:[#allocation2 + $0xa8] sm:$0xf]
      %v2363 = vld [vmem:[#allocation2 + $0xac] sm:$0xf]
      %v2364 = vld [vmem:[#allocation2 + $0xb4] sm:$0xf]
      %v2365 = vld [vmem:[#allocation2 + $0xb8] sm:$0xf]
      %v2366 = vld [vmem:[%s3] sm:$0x3]
      %v2367 = vld [vmem:[#allocation2 + $0x8] sm:$0x1]
      %v2368 = vld [vmem:[#allocation2 + $0x14] sm:$0x1]
      %v2369 = vld [vmem:[#allocation2 + $0x20] sm:$0x1]
      %v2370 = vld [vmem:[#allocation2 + $0x2c] sm:$0x1]
      %v2371 = vld [vmem:[#allocation2 + $0x38] sm:$0x1]
      %v2372 = vld [vmem:[#allocation2 + $0x44] sm:$0x1]
      %v2373 = vld [vmem:[#allocation2 + $0x50] sm:$0x1]
      %v2374 = vld [vmem:[#allocation2 + $0x5c] sm:$0x1]
      %v2375 = vld [vmem:[#allocation2 + $0x68] sm:$0x1]
      %v2376 = vld [vmem:[#allocation2 + $0x74] sm:$0x1]
      %v2377 = vld [vmem:[#allocation2 + $0x80] sm:$0x1]
      %v2378 = vld [vmem:[#allocation2 + $0x8c] sm:$0x1]
      %v2379 = vld [vmem:[#allocation2 + $0x98] sm:$0x1]
      %v2380 = vld [vmem:[#allocation2 + $0xa4] sm:$0x1]
      %v2381 = vld [vmem:[#allocation2 + $0xb0] sm:$0x1]
      %v2382 = vld [vmem:[#allocation2 + $0xbc] sm:$0x1]
      %v2384 = vshrl.u32 %v2334, 16
      %v2386 = vrot.slane %v2384, 4
      %v2387 = vshll.u32 %v2334, 16
      %v2389 = vrot.slane %v2387, 5
      %v2390 = vor.u32 %v2386, %v2389
      %v2391 = vrot.slane %v2390, 4
      %v2393 = vshll.u32 %v2335, 16
      %v2395 = vrot.slane %v2393, 5
      %v2396 = vsel %vm283, %v2391, %v2395
      %v2397 = vshrl.u32 %v2335, 16
      %v2399 = vrot.slane %v2397, 4
      %v2400 = vor.u32 %v2399, %v2395
      %v2401 = vrot.slane %v2400, 4
      %v2403 = vshll.u32 %v2367, 16
      %v2405 = vrot.slane %v2403, 5
      %v2406 = vsel %vm283, %v2401, %v2405
      %v2408 = vshrl.u32 %v2336, 16
      %v2410 = vrot.slane %v2408, 4
      %v2411 = vshll.u32 %v2336, 16
      %v2413 = vrot.slane %v2411, 5
      %v2414 = vor.u32 %v2410, %v2413
      %v2415 = vrot.slane %v2414, 4
      %v2417 = vshll.u32 %v2337, 16
      %v2419 = vrot.slane %v2417, 5
      %v2420 = vsel %vm283, %v2415, %v2419
      %v2421 = vshrl.u32 %v2337, 16
      %v2423 = vrot.slane %v2421, 4
      %v2424 = vor.u32 %v2423, %v2419
      %v2425 = vrot.slane %v2424, 4
      %v2427 = vshll.u32 %v2368, 16
      %v2429 = vrot.slane %v2427, 5
      %v2430 = vsel %vm283, %v2425, %v2429
      %v2432 = vshrl.u32 %v2338, 16
      %v2434 = vrot.slane %v2432, 4
      %v2435 = vshll.u32 %v2338, 16
      %v2437 = vrot.slane %v2435, 5
      %v2438 = vor.u32 %v2434, %v2437
      %v2439 = vrot.slane %v2438, 4
      %v2441 = vshll.u32 %v2339, 16
      %v2443 = vrot.slane %v2441, 5
      %v2444 = vsel %vm283, %v2439, %v2443
      %v2445 = vshrl.u32 %v2339, 16
      %v2447 = vrot.slane %v2445, 4
      %v2448 = vor.u32 %v2447, %v2443
      %v2449 = vrot.slane %v2448, 4
      %v2451 = vshll.u32 %v2369, 16
      %v2453 = vrot.slane %v2451, 5
      %v2454 = vsel %vm283, %v2449, %v2453
      %v2456 = vshrl.u32 %v2340, 16
      %v2458 = vrot.slane %v2456, 4
      %v2459 = vshll.u32 %v2340, 16
      %v2461 = vrot.slane %v2459, 5
      %v2462 = vor.u32 %v2458, %v2461
      %v2463 = vrot.slane %v2462, 4
      %v2465 = vshll.u32 %v2341, 16
      %v2467 = vrot.slane %v2465, 5
      %v2468 = vsel %vm283, %v2463, %v2467
      %v2469 = vshrl.u32 %v2341, 16
      %v2471 = vrot.slane %v2469, 4
      %v2472 = vor.u32 %v2471, %v2467
      %v2473 = vrot.slane %v2472, 4
      %v2475 = vshll.u32 %v2370, 16
      %v2477 = vrot.slane %v2475, 5
      %v2478 = vsel %vm283, %v2473, %v2477
      %v2480 = vshrl.u32 %v2342, 16
      %v2482 = vrot.slane %v2480, 4
      %v2483 = vshll.u32 %v2342, 16
      %v2485 = vrot.slane %v2483, 5
      %v2486 = vor.u32 %v2482, %v2485
      %v2487 = vrot.slane %v2486, 4
      %v2489 = vshll.u32 %v2343, 16
      %v2491 = vrot.slane %v2489, 5
      %v2492 = vsel %vm283, %v2487, %v2491
      %v2493 = vshrl.u32 %v2343, 16
      %v2495 = vrot.slane %v2493, 4
      %v2496 = vor.u32 %v2495, %v2491
      %v2497 = vrot.slane %v2496, 4
      %v2499 = vshll.u32 %v2371, 16
      %v2501 = vrot.slane %v2499, 5
      %v2502 = vsel %vm283, %v2497, %v2501
      %v2504 = vshrl.u32 %v2344, 16
      %v2506 = vrot.slane %v2504, 4
      %v2507 = vshll.u32 %v2344, 16
      %v2509 = vrot.slane %v2507, 5
      %v2510 = vor.u32 %v2506, %v2509
      %v2511 = vrot.slane %v2510, 4
      %v2513 = vshll.u32 %v2345, 16
      %v2515 = vrot.slane %v2513, 5
      %v2516 = vsel %vm283, %v2511, %v2515
      %v2517 = vshrl.u32 %v2345, 16
      %v2519 = vrot.slane %v2517, 4
      %v2520 = vor.u32 %v2519, %v2515
      %v2521 = vrot.slane %v2520, 4
      %v2523 = vshll.u32 %v2372, 16
      %v2525 = vrot.slane %v2523, 5
      %v2526 = vsel %vm283, %v2521, %v2525
      %v2528 = vshrl.u32 %v2346, 16
      %v2530 = vrot.slane %v2528, 4
      %v2531 = vshll.u32 %v2346, 16
      %v2533 = vrot.slane %v2531, 5
      %v2534 = vor.u32 %v2530, %v2533
      %v2535 = vrot.slane %v2534, 4
      %v2537 = vshll.u32 %v2347, 16
      %v2539 = vrot.slane %v2537, 5
      %v2540 = vsel %vm283, %v2535, %v2539
      %v2541 = vshrl.u32 %v2347, 16
      %v2543 = vrot.slane %v2541, 4
      %v2544 = vor.u32 %v2543, %v2539
      %v2545 = vrot.slane %v2544, 4
      %v2547 = vshll.u32 %v2373, 16
      %v2549 = vrot.slane %v2547, 5
      %v2550 = vsel %vm283, %v2545, %v2549
      %v2552 = vshrl.u32 %v2348, 16
      %v2554 = vrot.slane %v2552, 4
      %v2555 = vshll.u32 %v2348, 16
      %v2557 = vrot.slane %v2555, 5
      %v2558 = vor.u32 %v2554, %v2557
      %v2559 = vrot.slane %v2558, 4
      %v2561 = vshll.u32 %v2349, 16
      %v2563 = vrot.slane %v2561, 5
      %v2564 = vsel %vm283, %v2559, %v2563
      %v2565 = vshrl.u32 %v2349, 16
      %v2567 = vrot.slane %v2565, 4
      %v2568 = vor.u32 %v2567, %v2563
      %v2569 = vrot.slane %v2568, 4
      %v2571 = vshll.u32 %v2374, 16
      %v2573 = vrot.slane %v2571, 5
      %v2574 = vsel %vm283, %v2569, %v2573
      %v2576 = vshrl.u32 %v2350, 16
      %v2578 = vrot.slane %v2576, 4
      %v2579 = vshll.u32 %v2350, 16
      %v2581 = vrot.slane %v2579, 5
      %v2582 = vor.u32 %v2578, %v2581
      %v2583 = vrot.slane %v2582, 4
      %v2585 = vshll.u32 %v2351, 16
      %v2587 = vrot.slane %v2585, 5
      %v2588 = vsel %vm283, %v2583, %v2587
      %v2589 = vshrl.u32 %v2351, 16
      %v2591 = vrot.slane %v2589, 4
      %v2592 = vor.u32 %v2591, %v2587
      %v2593 = vrot.slane %v2592, 4
      %v2595 = vshll.u32 %v2375, 16
      %v2597 = vrot.slane %v2595, 5
      %v2598 = vsel %vm283, %v2593, %v2597
      %v2600 = vshrl.u32 %v2352, 16
      %v2602 = vrot.slane %v2600, 4
      %v2603 = vshll.u32 %v2352, 16
      %v2605 = vrot.slane %v2603, 5
      %v2606 = vor.u32 %v2602, %v2605
      %v2607 = vrot.slane %v2606, 4
      %v2609 = vshll.u32 %v2353, 16
      %v2611 = vrot.slane %v2609, 5
      %v2612 = vsel %vm283, %v2607, %v2611
      %v2613 = vshrl.u32 %v2353, 16
      %v2615 = vrot.slane %v2613, 4
      %v2616 = vor.u32 %v2615, %v2611
      %v2617 = vrot.slane %v2616, 4
      %v2619 = vshll.u32 %v2376, 16
      %v2621 = vrot.slane %v2619, 5
      %v2622 = vsel %vm283, %v2617, %v2621
      %v2624 = vshrl.u32 %v2354, 16
      %v2626 = vrot.slane %v2624, 4
      %v2627 = vshll.u32 %v2354, 16
      %v2629 = vrot.slane %v2627, 5
      %v2630 = vor.u32 %v2626, %v2629
      %v2631 = vrot.slane %v2630, 4
      %v2633 = vshll.u32 %v2355, 16
      %v2635 = vrot.slane %v2633, 5
      %v2636 = vsel %vm283, %v2631, %v2635
      %v2637 = vshrl.u32 %v2355, 16
      %v2639 = vrot.slane %v2637, 4
      %v2640 = vor.u32 %v2639, %v2635
      %v2641 = vrot.slane %v2640, 4
      %v2643 = vshll.u32 %v2377, 16
      %v2645 = vrot.slane %v2643, 5
      %v2646 = vsel %vm283, %v2641, %v2645
      %v2648 = vshrl.u32 %v2356, 16
      %v2650 = vrot.slane %v2648, 4
      %v2651 = vshll.u32 %v2356, 16
      %v2653 = vrot.slane %v2651, 5
      %v2654 = vor.u32 %v2650, %v2653
      %v2655 = vrot.slane %v2654, 4
      %v2657 = vshll.u32 %v2357, 16
      %v2659 = vrot.slane %v2657, 5
      %v2660 = vsel %vm283, %v2655, %v2659
      %v2661 = vshrl.u32 %v2357, 16
      %v2663 = vrot.slane %v2661, 4
      %v2664 = vor.u32 %v2663, %v2659
      %v2665 = vrot.slane %v2664, 4
      %v2667 = vshll.u32 %v2378, 16
      %v2669 = vrot.slane %v2667, 5
      %v2670 = vsel %vm283, %v2665, %v2669
      %v2672 = vshrl.u32 %v2358, 16
      %v2674 = vrot.slane %v2672, 4
      %v2675 = vshll.u32 %v2358, 16
      %v2677 = vrot.slane %v2675, 5
      %v2678 = vor.u32 %v2674, %v2677
      %v2679 = vrot.slane %v2678, 4
      %v2681 = vshll.u32 %v2359, 16
      %v2683 = vrot.slane %v2681, 5
      %v2684 = vsel %vm283, %v2679, %v2683
      %v2685 = vshrl.u32 %v2359, 16
      %v2687 = vrot.slane %v2685, 4
      %v2688 = vor.u32 %v2687, %v2683
      %v2689 = vrot.slane %v2688, 4
      %v2691 = vshll.u32 %v2379, 16
      %v2693 = vrot.slane %v2691, 5
      %v2694 = vsel %vm283, %v2689, %v2693
      %v2696 = vshrl.u32 %v2360, 16
      %v2698 = vrot.slane %v2696, 4
      %v2699 = vshll.u32 %v2360, 16
      %v2701 = vrot.slane %v2699, 5
      %v2702 = vor.u32 %v2698, %v2701
      %v2703 = vrot.slane %v2702, 4
      %v2705 = vshll.u32 %v2361, 16
      %v2707 = vrot.slane %v2705, 5
      %v2708 = vsel %vm283, %v2703, %v2707
      %v2709 = vshrl.u32 %v2361, 16
      %v2711 = vrot.slane %v2709, 4
      %v2712 = vor.u32 %v2711, %v2707
      %v2713 = vrot.slane %v2712, 4
      %v2715 = vshll.u32 %v2380, 16
      %v2717 = vrot.slane %v2715, 5
      %v2718 = vsel %vm283, %v2713, %v2717
      %v2720 = vshrl.u32 %v2362, 16
      %v2722 = vrot.slane %v2720, 4
      %v2723 = vshll.u32 %v2362, 16
      %v2725 = vrot.slane %v2723, 5
      %v2726 = vor.u32 %v2722, %v2725
      %v2727 = vrot.slane %v2726, 4
      %v2729 = vshll.u32 %v2363, 16
      %v2731 = vrot.slane %v2729, 5
      %v2732 = vsel %vm283, %v2727, %v2731
      %v2733 = vshrl.u32 %v2363, 16
      %v2735 = vrot.slane %v2733, 4
      %v2736 = vor.u32 %v2735, %v2731
      %v2737 = vrot.slane %v2736, 4
      %v2739 = vshll.u32 %v2381, 16
      %v2741 = vrot.slane %v2739, 5
      %v2742 = vsel %vm283, %v2737, %v2741
      %v2744 = vshrl.u32 %v2364, 16
      %v2746 = vrot.slane %v2744, 4
      %v2747 = vshll.u32 %v2364, 16
      %v2749 = vrot.slane %v2747, 5
      %v2750 = vor.u32 %v2746, %v2749
      %v2751 = vrot.slane %v2750, 4
      %v2753 = vshll.u32 %v2365, 16
      %v2755 = vrot.slane %v2753, 5
      %v2756 = vsel %vm283, %v2751, %v2755
      %v2757 = vshrl.u32 %v2365, 16
      %v2759 = vrot.slane %v2757, 4
      %v2760 = vor.u32 %v2759, %v2755
      %v2761 = vrot.slane %v2760, 4
      %v2763 = vshll.u32 %v2382, 16
      %v2765 = vrot.slane %v2763, 5
      %v2766 = vsel %vm283, %v2761, %v2765
      %s2767 = scalar_lea.vmem %s3, 2
      %v2768 = vld [vmem:[%s2767] sm:$0x3]
      %v2769 = vunpack.c.l.b16 %v2396
      %v2770 = vunpack.c.l.b16 %v2406
      %v2771 = vunpack.c.l.b16 %v2420
      %v2772 = vunpack.c.l.b16 %v2430
      %v2773 = vunpack.c.l.b16 %v2444
      %v2774 = vunpack.c.l.b16 %v2454
      %v2775 = vunpack.c.l.b16 %v2468
      %v2776 = vunpack.c.l.b16 %v2478
      %v2777 = vunpack.c.l.b16 %v2492
      %v2778 = vunpack.c.l.b16 %v2502
      %v2779 = vunpack.c.l.b16 %v2516
      %v2780 = vunpack.c.l.b16 %v2526
      %v2781 = vunpack.c.l.b16 %v2540
      %v2782 = vunpack.c.l.b16 %v2550
      %v2783 = vunpack.c.l.b16 %v2564
      %v2784 = vunpack.c.l.b16 %v2574
      %v2785 = vunpack.c.l.b16 %v2588
      %v2786 = vunpack.c.l.b16 %v2598
      %v2787 = vunpack.c.l.b16 %v2612
      %v2788 = vunpack.c.l.b16 %v2622
      %v2789 = vunpack.c.l.b16 %v2636
      %v2790 = vunpack.c.l.b16 %v2646
      %v2791 = vunpack.c.l.b16 %v2660
      %v2792 = vunpack.c.l.b16 %v2670
      %v2793 = vunpack.c.l.b16 %v2684
      %v2794 = vunpack.c.l.b16 %v2694
      %v2795 = vunpack.c.l.b16 %v2708
      %v2796 = vunpack.c.l.b16 %v2718
      %v2797 = vunpack.c.l.b16 %v2732
      %v2798 = vunpack.c.l.b16 %v2742
      %v2799 = vunpack.c.l.b16 %v2756
      %v2800 = vunpack.c.l.b16 %v2766
      %v2801 = vpack.c.b16 %v2770, %v2769
      %v2802 = vpack.c.b16 %v2772, %v2771
      %v2803 = vpack.c.b16 %v2774, %v2773
      %v2804 = vpack.c.b16 %v2776, %v2775
      %v2805 = vpack.c.b16 %v2778, %v2777
      %v2806 = vpack.c.b16 %v2780, %v2779
      %v2807 = vpack.c.b16 %v2782, %v2781
      %v2808 = vpack.c.b16 %v2784, %v2783
      %v2809 = vpack.c.b16 %v2786, %v2785
      %v2810 = vpack.c.b16 %v2788, %v2787
      %v2811 = vpack.c.b16 %v2790, %v2789
      %v2812 = vpack.c.b16 %v2792, %v2791
      %v2813 = vpack.c.b16 %v2794, %v2793
      %v2814 = vpack.c.b16 %v2796, %v2795
      %v2815 = vpack.c.b16 %v2798, %v2797
      %v2816 = vpack.c.b16 %v2800, %v2799
      %vm2817 = vcmask 31744
      %v2819 = vsel %vm2817, %v2801, 0
      %v2822 = vsel %vm2817, %v2802, 0
      %v2825 = vsel %vm2817, %v2803, 0
      %v2828 = vsel %vm2817, %v2804, 0
      %v2831 = vsel %vm2817, %v2805, 0
      %v2834 = vsel %vm2817, %v2806, 0
      %v2837 = vsel %vm2817, %v2807, 0
      %v2840 = vsel %vm2817, %v2808, 0
      %v2843 = vsel %vm2817, %v2809, 0
      %v2846 = vsel %vm2817, %v2810, 0
      %v2849 = vsel %vm2817, %v2811, 0
      %v2852 = vsel %vm2817, %v2812, 0
      %v2855 = vsel %vm2817, %v2813, 0
      %v2858 = vsel %vm2817, %v2814, 0
      %v2861 = vsel %vm2817, %v2815, 0
      %v2864 = vsel %vm2817, %v2816, 0
      %vm2866 = vcmask 1041408
      %v2868 = vsel %vm2866, %v2768, 0
      %2870 = vmatprep.subr.bf16.mxu0 0
      %2871 = vmatpush1.bf16.msra.mxu0 %v2868
      %2872 = vmatprep.subr.bf16.mxu0 0
      %2873 = vmatpush1.bf16.msra.mxu0 0
      %2874 = vmatprep.subr.bf16.mxu0 0
      %2875 = vmatpush1.bf16.msra.mxu0 0
      %2876 = vmatprep.subr.bf16.mxu0 0
      %2877 = vmatpush1.bf16.msra.mxu0 0
      %2878 = vmatprep.subr.bf16.mxu0 0
      %2879 = vmatpush1.bf16.msra.mxu0 0
      %2880 = vmatprep.subr.bf16.mxu0 0
      %2881 = vmatpush1.bf16.msra.mxu0 0
      %2882 = vmatprep.subr.bf16.mxu0 0
      %2883 = vmatpush1.bf16.msra.mxu0 0
      %2884 = vmatprep.subr.bf16.mxu0 0
      %2885 = vmatpush1.bf16.msra.mxu0 0
      %2886 = vmatprep.subr.bf16.mxu0 0
      %2887 = vmatpush1.bf16.msra.mxu0 0
      %2888 = vmatprep.subr.bf16.mxu0 0
      %2889 = vmatpush1.bf16.msra.mxu0 0
      %2890 = vmatprep.subr.bf16.mxu0 0
      %2891 = vmatpush1.bf16.msra.mxu0 0
      %2892 = vmatprep.subr.bf16.mxu0 0
      %2893 = vmatpush1.bf16.msra.mxu0 0
      %2894 = vmatprep.subr.bf16.mxu0 0
      %2895 = vmatpush1.bf16.msra.mxu0 0
      %2896 = vmatprep.subr.bf16.mxu0 0
      %2897 = vmatpush1.bf16.msra.mxu0 0
      %2898 = vmatprep.subr.bf16.mxu0 0
      %2899 = vmatpush1.bf16.msra.mxu0 0
      %2900 = vmatprep.subr.bf16.mxu0 0
      %2901 = vmatpush1.bf16.msra.mxu0 0
      %2902 = vmatprep.mubr.bf16.mxu0 0
      %2903 = vmatmul.mubr.bf16.gmra.mrb[0].mxu0 %v2819
      %v2904 = vpop.f32.mrb[0].mxu0
      %v2905 = vadd.f32 0.0, %v2904
      %v2906 = vpop.f32.mrb[0].mxu0
      %v2907 = vpop.f32.mrb[0].mxu0
      %v2908 = vadd.f32 0.0, %v2907
      %v2909 = vpop.f32.mrb[0].mxu0
      %2910 = vmatprep.mubr.bf16.mxu0 0
      %2911 = vmatmul.mubr.bf16.gmra.mrb[0].mxu0 %v2822
      %v2912 = vpop.f32.mrb[0].mxu0
      %v2913 = vadd.f32 0.0, %v2912
      %v2914 = vpop.f32.mrb[0].mxu0
      %v2915 = vpop.f32.mrb[0].mxu0
      %v2916 = vadd.f32 0.0, %v2915
      %v2917 = vpop.f32.mrb[0].mxu0
      %2918 = vmatprep.mubr.bf16.mxu0 0
      %2919 = vmatmul.mubr.bf16.gmra.mrb[0].mxu0 %v2825
      %v2920 = vpop.f32.mrb[0].mxu0
      %v2921 = vadd.f32 0.0, %v2920
      %v2922 = vpop.f32.mrb[0].mxu0
      %v2923 = vpop.f32.mrb[0].mxu0
      %v2924 = vadd.f32 0.0, %v2923
      %v2925 = vpop.f32.mrb[0].mxu0
      %2926 = vmatprep.mubr.bf16.mxu0 0
      %2927 = vmatmul.mubr.bf16.gmra.mrb[0].mxu0 %v2828
      %v2928 = vpop.f32.mrb[0].mxu0
      %v2929 = vadd.f32 0.0, %v2928
      %v2930 = vpop.f32.mrb[0].mxu0
      %v2931 = vpop.f32.mrb[0].mxu0
      %v2932 = vadd.f32 0.0, %v2931
      %v2933 = vpop.f32.mrb[0].mxu0
      %2934 = vmatprep.mubr.bf16.mxu0 0
      %2935 = vmatmul.mubr.bf16.gmra.mrb[0].mxu0 %v2831
      %v2936 = vpop.f32.mrb[0].mxu0
      %v2937 = vadd.f32 0.0, %v2936
      %v2938 = vpop.f32.mrb[0].mxu0
      %v2939 = vpop.f32.mrb[0].mxu0
      %v2940 = vadd.f32 0.0, %v2939
      %v2941 = vpop.f32.mrb[0].mxu0
      %2942 = vmatprep.mubr.bf16.mxu0 0
      %2943 = vmatmul.mubr.bf16.gmra.mrb[0].mxu0 %v2834
      %v2944 = vpop.f32.mrb[0].mxu0
      %v2945 = vadd.f32 0.0, %v2944
      %v2946 = vpop.f32.mrb[0].mxu0
      %v2947 = vpop.f32.mrb[0].mxu0
      %v2948 = vadd.f32 0.0, %v2947
      %v2949 = vpop.f32.mrb[0].mxu0
      %2950 = vmatprep.mubr.bf16.mxu0 0
      %2951 = vmatmul.mubr.bf16.gmra.mrb[0].mxu0 %v2837
      %v2952 = vpop.f32.mrb[0].mxu0
      %v2953 = vadd.f32 0.0, %v2952
      %v2954 = vpop.f32.mrb[0].mxu0
      %v2955 = vpop.f32.mrb[0].mxu0
      %v2956 = vadd.f32 0.0, %v2955
      %v2957 = vpop.f32.mrb[0].mxu0
      %2958 = vmatprep.mubr.bf16.mxu0 0
      %2959 = vmatmul.mubr.bf16.gmra.mrb[0].mxu0 %v2840
      %v2960 = vpop.f32.mrb[0].mxu0
      %v2961 = vadd.f32 0.0, %v2960
      %v2962 = vpop.f32.mrb[0].mxu0
      %v2963 = vpop.f32.mrb[0].mxu0
      %v2964 = vadd.f32 0.0, %v2963
      %v2965 = vpop.f32.mrb[0].mxu0
      %2966 = vmatprep.mubr.bf16.mxu0 0
      %2967 = vmatmul.mubr.bf16.gmra.mrb[0].mxu0 %v2843
      %v2968 = vpop.f32.mrb[0].mxu0
      %v2969 = vadd.f32 0.0, %v2968
      %v2970 = vpop.f32.mrb[0].mxu0
      %v2971 = vpop.f32.mrb[0].mxu0
      %v2972 = vadd.f32 0.0, %v2971
      %v2973 = vpop.f32.mrb[0].mxu0
      %2974 = vmatprep.mubr.bf16.mxu0 0
      %2975 = vmatmul.mubr.bf16.gmra.mrb[0].mxu0 %v2846
      %v2976 = vpop.f32.mrb[0].mxu0
      %v2977 = vadd.f32 0.0, %v2976
      %v2978 = vpop.f32.mrb[0].mxu0
      %v2979 = vpop.f32.mrb[0].mxu0
      %v2980 = vadd.f32 0.0, %v2979
      %v2981 = vpop.f32.mrb[0].mxu0
      %2982 = vmatprep.mubr.bf16.mxu0 0
      %2983 = vmatmul.mubr.bf16.gmra.mrb[0].mxu0 %v2849
      %v2984 = vpop.f32.mrb[0].mxu0
      %v2985 = vadd.f32 0.0, %v2984
      %v2986 = vpop.f32.mrb[0].mxu0
      %v2987 = vpop.f32.mrb[0].mxu0
      %v2988 = vadd.f32 0.0, %v2987
      %v2989 = vpop.f32.mrb[0].mxu0
      %2990 = vmatprep.mubr.bf16.mxu0 0
      %2991 = vmatmul.mubr.bf16.gmra.mrb[0].mxu0 %v2852
      %v2992 = vpop.f32.mrb[0].mxu0
      %v2993 = vadd.f32 0.0, %v2992
      %v2994 = vpop.f32.mrb[0].mxu0
      %v2995 = vpop.f32.mrb[0].mxu0
      %v2996 = vadd.f32 0.0, %v2995
      %v2997 = vpop.f32.mrb[0].mxu0
      %2998 = vmatprep.mubr.bf16.mxu0 0
      %2999 = vmatmul.mubr.bf16.gmra.mrb[0].mxu0 %v2855
      %v3000 = vpop.f32.mrb[0].mxu0
      %v3001 = vadd.f32 0.0, %v3000
      %v3002 = vpop.f32.mrb[0].mxu0
      %v3003 = vpop.f32.mrb[0].mxu0
      %v3004 = vadd.f32 0.0, %v3003
      %v3005 = vpop.f32.mrb[0].mxu0
      %3006 = vmatprep.mubr.bf16.mxu0 0
      %3007 = vmatmul.mubr.bf16.gmra.mrb[0].mxu0 %v2858
      %v3008 = vpop.f32.mrb[0].mxu0
      %v3009 = vadd.f32 0.0, %v3008
      %v3010 = vpop.f32.mrb[0].mxu0
      %v3011 = vpop.f32.mrb[0].mxu0
      %v3012 = vadd.f32 0.0, %v3011
      %v3013 = vpop.f32.mrb[0].mxu0
      %3014 = vmatprep.mubr.bf16.mxu0 0
      %3015 = vmatmul.mubr.bf16.gmra.mrb[0].mxu0 %v2861
      %v3016 = vpop.f32.mrb[0].mxu0
      %v3017 = vadd.f32 0.0, %v3016
      %v3018 = vpop.f32.mrb[0].mxu0
      %v3019 = vpop.f32.mrb[0].mxu0
      %v3020 = vadd.f32 0.0, %v3019
      %v3021 = vpop.f32.mrb[0].mxu0
      %3022 = vmatprep.mubr.bf16.mxu0 0
      %3023 = vmatmul.mubr.bf16.gmra.mrb[0].mxu0 %v2864
      %v3024 = vpop.f32.mrb[0].mxu0
      %v3025 = vadd.f32 0.0, %v3024
      %v3026 = vpop.f32.mrb[0].mxu0
      %v3027 = vpop.f32.mrb[0].mxu0
      %v3028 = vadd.f32 0.0, %v3027
      %v3029 = vpop.f32.mrb[0].mxu0
      %3030 = vdwg.mxu0
      %v3063 = vunpack.c.l.b16 %v2334
      %v3064 = vunpack.c.l.b16 %v2335
      %v3065 = vunpack.c.l.b16 %v2336
      %v3066 = vunpack.c.l.b16 %v2337
      %v3067 = vunpack.c.l.b16 %v2338
      %v3068 = vunpack.c.l.b16 %v2339
      %v3069 = vunpack.c.l.b16 %v2340
      %v3070 = vunpack.c.l.b16 %v2341
      %v3071 = vunpack.c.l.b16 %v2342
      %v3072 = vunpack.c.l.b16 %v2343
      %v3073 = vunpack.c.l.b16 %v2344
      %v3074 = vunpack.c.l.b16 %v2345
      %v3075 = vunpack.c.l.b16 %v2346
      %v3076 = vunpack.c.l.b16 %v2347
      %v3077 = vunpack.c.l.b16 %v2348
      %v3078 = vunpack.c.l.b16 %v2349
      %v3079 = vunpack.c.l.b16 %v2350
      %v3080 = vunpack.c.l.b16 %v2351
      %v3081 = vunpack.c.l.b16 %v2352
      %v3082 = vunpack.c.l.b16 %v2353
      %v3083 = vunpack.c.l.b16 %v2354
      %v3084 = vunpack.c.l.b16 %v2355
      %v3085 = vunpack.c.l.b16 %v2356
      %v3086 = vunpack.c.l.b16 %v2357
      %v3087 = vunpack.c.l.b16 %v2358
      %v3088 = vunpack.c.l.b16 %v2359
      %v3089 = vunpack.c.l.b16 %v2360
      %v3090 = vunpack.c.l.b16 %v2361
      %v3091 = vunpack.c.l.b16 %v2362
      %v3092 = vunpack.c.l.b16 %v2363
      %v3093 = vunpack.c.l.b16 %v2364
      %v3094 = vunpack.c.l.b16 %v2365
      %v3095 = vpack.c.b16 %v3064, %v3063
      %v3096 = vpack.c.b16 %v3066, %v3065
      %v3097 = vpack.c.b16 %v3068, %v3067
      %v3098 = vpack.c.b16 %v3070, %v3069
      %v3099 = vpack.c.b16 %v3072, %v3071
      %v3100 = vpack.c.b16 %v3074, %v3073
      %v3101 = vpack.c.b16 %v3076, %v3075
      %v3102 = vpack.c.b16 %v3078, %v3077
      %v3103 = vpack.c.b16 %v3080, %v3079
      %v3104 = vpack.c.b16 %v3082, %v3081
      %v3105 = vpack.c.b16 %v3084, %v3083
      %v3106 = vpack.c.b16 %v3086, %v3085
      %v3107 = vpack.c.b16 %v3088, %v3087
      %v3108 = vpack.c.b16 %v3090, %v3089
      %v3109 = vpack.c.b16 %v3092, %v3091
      %v3110 = vpack.c.b16 %v3094, %v3093
      %v3112 = vsel %vm2817, %v3095, 0
      %v3115 = vsel %vm2817, %v3096, 0
      %v3118 = vsel %vm2817, %v3097, 0
      %v3121 = vsel %vm2817, %v3098, 0
      %v3124 = vsel %vm2817, %v3099, 0
      %v3127 = vsel %vm2817, %v3100, 0
      %v3130 = vsel %vm2817, %v3101, 0
      %v3133 = vsel %vm2817, %v3102, 0
      %v3136 = vsel %vm2817, %v3103, 0
      %v3139 = vsel %vm2817, %v3104, 0
      %v3142 = vsel %vm2817, %v3105, 0
      %v3145 = vsel %vm2817, %v3106, 0
      %v3148 = vsel %vm2817, %v3107, 0
      %v3151 = vsel %vm2817, %v3108, 0
      %v3154 = vsel %vm2817, %v3109, 0
      %v3157 = vsel %vm2817, %v3110, 0
      %v3160 = vsel %vm2866, %v2366, 0
      %3162 = vmatprep.subr.bf16.mxu0 0
      %3163 = vmatpush1.bf16.msra.mxu0 %v3160
      %3164 = vmatprep.subr.bf16.mxu0 0
      %3165 = vmatpush1.bf16.msra.mxu0 0
      %3166 = vmatprep.subr.bf16.mxu0 0
      %3167 = vmatpush1.bf16.msra.mxu0 0
      %3168 = vmatprep.subr.bf16.mxu0 0
      %3169 = vmatpush1.bf16.msra.mxu0 0
      %3170 = vmatprep.subr.bf16.mxu0 0
      %3171 = vmatpush1.bf16.msra.mxu0 0
      %3172 = vmatprep.subr.bf16.mxu0 0
      %3173 = vmatpush1.bf16.msra.mxu0 0
      %3174 = vmatprep.subr.bf16.mxu0 0
      %3175 = vmatpush1.bf16.msra.mxu0 0
      %3176 = vmatprep.subr.bf16.mxu0 0
      %3177 = vmatpush1.bf16.msra.mxu0 0
      %3178 = vmatprep.subr.bf16.mxu0 0
      %3179 = vmatpush1.bf16.msra.mxu0 0
      %3180 = vmatprep.subr.bf16.mxu0 0
      %3181 = vmatpush1.bf16.msra.mxu0 0
      %3182 = vmatprep.subr.bf16.mxu0 0
      %3183 = vmatpush1.bf16.msra.mxu0 0
      %3184 = vmatprep.subr.bf16.mxu0 0
      %3185 = vmatpush1.bf16.msra.mxu0 0
      %3186 = vmatprep.subr.bf16.mxu0 0
      %3187 = vmatpush1.bf16.msra.mxu0 0
      %3188 = vmatprep.subr.bf16.mxu0 0
      %3189 = vmatpush1.bf16.msra.mxu0 0
      %3190 = vmatprep.subr.bf16.mxu0 0
      %3191 = vmatpush1.bf16.msra.mxu0 0
      %3192 = vmatprep.subr.bf16.mxu0 0
      %3193 = vmatpush1.bf16.msra.mxu0 0
      %3194 = vmatprep.mubr.bf16.mxu0 0
      %3195 = vmatmul.mubr.bf16.gmra.mrb[0].mxu0 %v3112
      %v3196 = vpop.f32.mrb[0].mxu0
      %v3197 = vadd.f32 %v2905, %v3196
      %v3198 = vpop.f32.mrb[0].mxu0
      %v3199 = vpop.f32.mrb[0].mxu0
      %v3200 = vadd.f32 %v2908, %v3199
      %v3201 = vpop.f32.mrb[0].mxu0
      %3202 = vmatprep.mubr.bf16.mxu0 0
      %3203 = vmatmul.mubr.bf16.gmra.mrb[0].mxu0 %v3115
      %v3204 = vpop.f32.mrb[0].mxu0
      %v3205 = vadd.f32 %v2913, %v3204
      %v3206 = vpop.f32.mrb[0].mxu0
      %v3207 = vpop.f32.mrb[0].mxu0
      %v3208 = vadd.f32 %v2916, %v3207
      %v3209 = vpop.f32.mrb[0].mxu0
      %3210 = vmatprep.mubr.bf16.mxu0 0
      %3211 = vmatmul.mubr.bf16.gmra.mrb[0].mxu0 %v3118
      %v3212 = vpop.f32.mrb[0].mxu0
      %v3213 = vadd.f32 %v2921, %v3212
      %v3214 = vpop.f32.mrb[0].mxu0
      %v3215 = vpop.f32.mrb[0].mxu0
      %v3216 = vadd.f32 %v2924, %v3215
      %v3217 = vpop.f32.mrb[0].mxu0
      %3218 = vmatprep.mubr.bf16.mxu0 0
      %3219 = vmatmul.mubr.bf16.gmra.mrb[0].mxu0 %v3121
      %v3220 = vpop.f32.mrb[0].mxu0
      %v3221 = vadd.f32 %v2929, %v3220
      %v3222 = vpop.f32.mrb[0].mxu0
      %v3223 = vpop.f32.mrb[0].mxu0
      %v3224 = vadd.f32 %v2932, %v3223
      %v3225 = vpop.f32.mrb[0].mxu0
      %3226 = vmatprep.mubr.bf16.mxu0 0
      %3227 = vmatmul.mubr.bf16.gmra.mrb[0].mxu0 %v3124
      %v3228 = vpop.f32.mrb[0].mxu0
      %v3229 = vadd.f32 %v2937, %v3228
      %v3230 = vpop.f32.mrb[0].mxu0
      %v3231 = vpop.f32.mrb[0].mxu0
      %v3232 = vadd.f32 %v2940, %v3231
      %v3233 = vpop.f32.mrb[0].mxu0
      %3234 = vmatprep.mubr.bf16.mxu0 0
      %3235 = vmatmul.mubr.bf16.gmra.mrb[0].mxu0 %v3127
      %v3236 = vpop.f32.mrb[0].mxu0
      %v3237 = vadd.f32 %v2945, %v3236
      %v3238 = vpop.f32.mrb[0].mxu0
      %v3239 = vpop.f32.mrb[0].mxu0
      %v3240 = vadd.f32 %v2948, %v3239
      %v3241 = vpop.f32.mrb[0].mxu0
      %3242 = vmatprep.mubr.bf16.mxu0 0
      %3243 = vmatmul.mubr.bf16.gmra.mrb[0].mxu0 %v3130
      %v3244 = vpop.f32.mrb[0].mxu0
      %v3245 = vadd.f32 %v2953, %v3244
      %v3246 = vpop.f32.mrb[0].mxu0
      %v3247 = vpop.f32.mrb[0].mxu0
      %v3248 = vadd.f32 %v2956, %v3247
      %v3249 = vpop.f32.mrb[0].mxu0
      %3250 = vmatprep.mubr.bf16.mxu0 0
      %3251 = vmatmul.mubr.bf16.gmra.mrb[0].mxu0 %v3133
      %v3252 = vpop.f32.mrb[0].mxu0
      %v3253 = vadd.f32 %v2961, %v3252
      %v3254 = vpop.f32.mrb[0].mxu0
      %v3255 = vpop.f32.mrb[0].mxu0
      %v3256 = vadd.f32 %v2964, %v3255
      %v3257 = vpop.f32.mrb[0].mxu0
      %3258 = vmatprep.mubr.bf16.mxu0 0
      %3259 = vmatmul.mubr.bf16.gmra.mrb[0].mxu0 %v3136
      %v3260 = vpop.f32.mrb[0].mxu0
      %v3261 = vadd.f32 %v2969, %v3260
      %v3262 = vpop.f32.mrb[0].mxu0
      %v3263 = vpop.f32.mrb[0].mxu0
      %v3264 = vadd.f32 %v2972, %v3263
      %v3265 = vpop.f32.mrb[0].mxu0
      %3266 = vmatprep.mubr.bf16.mxu0 0
      %3267 = vmatmul.mubr.bf16.gmra.mrb[0].mxu0 %v3139
      %v3268 = vpop.f32.mrb[0].mxu0
      %v3269 = vadd.f32 %v2977, %v3268
      %v3270 = vpop.f32.mrb[0].mxu0
      %v3271 = vpop.f32.mrb[0].mxu0
      %v3272 = vadd.f32 %v2980, %v3271
      %v3273 = vpop.f32.mrb[0].mxu0
      %3274 = vmatprep.mubr.bf16.mxu0 0
      %3275 = vmatmul.mubr.bf16.gmra.mrb[0].mxu0 %v3142
      %v3276 = vpop.f32.mrb[0].mxu0
      %v3277 = vadd.f32 %v2985, %v3276
      %v3278 = vpop.f32.mrb[0].mxu0
      %v3279 = vpop.f32.mrb[0].mxu0
      %v3280 = vadd.f32 %v2988, %v3279
      %v3281 = vpop.f32.mrb[0].mxu0
      %3282 = vmatprep.mubr.bf16.mxu0 0
      %3283 = vmatmul.mubr.bf16.gmra.mrb[0].mxu0 %v3145
      %v3284 = vpop.f32.mrb[0].mxu0
      %v3285 = vadd.f32 %v2993, %v3284
      %v3286 = vpop.f32.mrb[0].mxu0
      %v3287 = vpop.f32.mrb[0].mxu0
      %v3288 = vadd.f32 %v2996, %v3287
      %v3289 = vpop.f32.mrb[0].mxu0
      %3290 = vmatprep.mubr.bf16.mxu0 0
      %3291 = vmatmul.mubr.bf16.gmra.mrb[0].mxu0 %v3148
      %v3292 = vpop.f32.mrb[0].mxu0
      %v3293 = vadd.f32 %v3001, %v3292
      %v3294 = vpop.f32.mrb[0].mxu0
      %v3295 = vpop.f32.mrb[0].mxu0
      %v3296 = vadd.f32 %v3004, %v3295
      %v3297 = vpop.f32.mrb[0].mxu0
      %3298 = vmatprep.mubr.bf16.mxu0 0
      %3299 = vmatmul.mubr.bf16.gmra.mrb[0].mxu0 %v3151
      %v3300 = vpop.f32.mrb[0].mxu0
      %v3301 = vadd.f32 %v3009, %v3300
      %v3302 = vpop.f32.mrb[0].mxu0
      %v3303 = vpop.f32.mrb[0].mxu0
      %v3304 = vadd.f32 %v3012, %v3303
      %v3305 = vpop.f32.mrb[0].mxu0
      %3306 = vmatprep.mubr.bf16.mxu0 0
      %3307 = vmatmul.mubr.bf16.gmra.mrb[0].mxu0 %v3154
      %v3308 = vpop.f32.mrb[0].mxu0
      %v3309 = vadd.f32 %v3017, %v3308
      %v3310 = vpop.f32.mrb[0].mxu0
      %v3311 = vpop.f32.mrb[0].mxu0
      %v3312 = vadd.f32 %v3020, %v3311
      %v3313 = vpop.f32.mrb[0].mxu0
      %3314 = vmatprep.mubr.bf16.mxu0 0
      %3315 = vmatmul.mubr.bf16.gmra.mrb[0].mxu0 %v3157
      %v3316 = vpop.f32.mrb[0].mxu0
      %v3317 = vadd.f32 %v3025, %v3316
      %v3318 = vpop.f32.mrb[0].mxu0
      %v3319 = vpop.f32.mrb[0].mxu0
      %v3320 = vadd.f32 %v3028, %v3319
      %v3321 = vpop.f32.mrb[0].mxu0
      %3322 = vdwg.mxu0
      %v3323 = vld [vmem:[#allocation2] sm:$0xe]
      %v3324 = vld [vmem:[#allocation2 + $0xc] sm:$0xe]
      %v3325 = vld [vmem:[#allocation2 + $0x18] sm:$0xe]
      %v3326 = vld [vmem:[#allocation2 + $0x24] sm:$0xe]
      %v3327 = vld [vmem:[#allocation2 + $0x30] sm:$0xe]
      %v3328 = vld [vmem:[#allocation2 + $0x3c] sm:$0xe]
      %v3329 = vld [vmem:[#allocation2 + $0x48] sm:$0xe]
      %v3330 = vld [vmem:[#allocation2 + $0x54] sm:$0xe]
      %v3331 = vld [vmem:[#allocation2 + $0x60] sm:$0xe]
      %v3332 = vld [vmem:[#allocation2 + $0x6c] sm:$0xe]
      %v3333 = vld [vmem:[#allocation2 + $0x78] sm:$0xe]
      %v3334 = vld [vmem:[#allocation2 + $0x84] sm:$0xe]
      %v3335 = vld [vmem:[#allocation2 + $0x90] sm:$0xe]
      %v3336 = vld [vmem:[#allocation2 + $0x9c] sm:$0xe]
      %v3337 = vld [vmem:[#allocation2 + $0xa8] sm:$0xe]
      %v3338 = vld [vmem:[#allocation2 + $0xb4] sm:$0xe]
      %vm3371 = vcmask 1042432
      %vm3372 = vcmask 1046532
      %vm3373 = vmor %vm3371, %vm3372
      %v3374 = vrot.slane %v3323, 5
      %v3375 = vrot.slane %v3374, 4
      %v3376 = vrot.slane %v2335, 5
      %v3377 = vsel %vm3373, %v3375, %v3376
      %v3378 = vrot.slane %v3376, 4
      %v3379 = vrot.slane %v2367, 5
      %v3380 = vsel %vm3373, %v3378, %v3379
      %v3381 = vrot.slane %v3324, 5
      %v3382 = vrot.slane %v3381, 4
      %v3383 = vrot.slane %v2337, 5
      %v3384 = vsel %vm3373, %v3382, %v3383
      %v3385 = vrot.slane %v3383, 4
      %v3386 = vrot.slane %v2368, 5
      %v3387 = vsel %vm3373, %v3385, %v3386
      %v3388 = vrot.slane %v3325, 5
      %v3389 = vrot.slane %v3388, 4
      %v3390 = vrot.slane %v2339, 5
      %v3391 = vsel %vm3373, %v3389, %v3390
      %v3392 = vrot.slane %v3390, 4
      %v3393 = vrot.slane %v2369, 5
      %v3394 = vsel %vm3373, %v3392, %v3393
      %v3395 = vrot.slane %v3326, 5
      %v3396 = vrot.slane %v3395, 4
      %v3397 = vrot.slane %v2341, 5
      %v3398 = vsel %vm3373, %v3396, %v3397
      %v3399 = vrot.slane %v3397, 4
      %v3400 = vrot.slane %v2370, 5
      %v3401 = vsel %vm3373, %v3399, %v3400
      %v3402 = vrot.slane %v3327, 5
      %v3403 = vrot.slane %v3402, 4
      %v3404 = vrot.slane %v2343, 5
      %v3405 = vsel %vm3373, %v3403, %v3404
      %v3406 = vrot.slane %v3404, 4
      %v3407 = vrot.slane %v2371, 5
      %v3408 = vsel %vm3373, %v3406, %v3407
      %v3409 = vrot.slane %v3328, 5
      %v3410 = vrot.slane %v3409, 4
      %v3411 = vrot.slane %v2345, 5
      %v3412 = vsel %vm3373, %v3410, %v3411
      %v3413 = vrot.slane %v3411, 4
      %v3414 = vrot.slane %v2372, 5
      %v3415 = vsel %vm3373, %v3413, %v3414
      %v3416 = vrot.slane %v3329, 5
      %v3417 = vrot.slane %v3416, 4
      %v3418 = vrot.slane %v2347, 5
      %v3419 = vsel %vm3373, %v3417, %v3418
      %v3420 = vrot.slane %v3418, 4
      %v3421 = vrot.slane %v2373, 5
      %v3422 = vsel %vm3373, %v3420, %v3421
      %v3423 = vrot.slane %v3330, 5
      %v3424 = vrot.slane %v3423, 4
      %v3425 = vrot.slane %v2349, 5
      %v3426 = vsel %vm3373, %v3424, %v3425
      %v3427 = vrot.slane %v3425, 4
      %v3428 = vrot.slane %v2374, 5
      %v3429 = vsel %vm3373, %v3427, %v3428
      %v3430 = vrot.slane %v3331, 5
      %v3431 = vrot.slane %v3430, 4
      %v3432 = vrot.slane %v2351, 5
      %v3433 = vsel %vm3373, %v3431, %v3432
      %v3434 = vrot.slane %v3432, 4
      %v3435 = vrot.slane %v2375, 5
      %v3436 = vsel %vm3373, %v3434, %v3435
      %v3437 = vrot.slane %v3332, 5
      %v3438 = vrot.slane %v3437, 4
      %v3439 = vrot.slane %v2353, 5
      %v3440 = vsel %vm3373, %v3438, %v3439
      %v3441 = vrot.slane %v3439, 4
      %v3442 = vrot.slane %v2376, 5
      %v3443 = vsel %vm3373, %v3441, %v3442
      %v3444 = vrot.slane %v3333, 5
      %v3445 = vrot.slane %v3444, 4
      %v3446 = vrot.slane %v2355, 5
      %v3447 = vsel %vm3373, %v3445, %v3446
      %v3448 = vrot.slane %v3446, 4
      %v3449 = vrot.slane %v2377, 5
      %v3450 = vsel %vm3373, %v3448, %v3449
      %v3451 = vrot.slane %v3334, 5
      %v3452 = vrot.slane %v3451, 4
      %v3453 = vrot.slane %v2357, 5
      %v3454 = vsel %vm3373, %v3452, %v3453
      %v3455 = vrot.slane %v3453, 4
      %v3456 = vrot.slane %v2378, 5
      %v3457 = vsel %vm3373, %v3455, %v3456
      %v3458 = vrot.slane %v3335, 5
      %v3459 = vrot.slane %v3458, 4
      %v3460 = vrot.slane %v2359, 5
      %v3461 = vsel %vm3373, %v3459, %v3460
      %v3462 = vrot.slane %v3460, 4
      %v3463 = vrot.slane %v2379, 5
      %v3464 = vsel %vm3373, %v3462, %v3463
      %v3465 = vrot.slane %v3336, 5
      %v3466 = vrot.slane %v3465, 4
      %v3467 = vrot.slane %v2361, 5
      %v3468 = vsel %vm3373, %v3466, %v3467
      %v3469 = vrot.slane %v3467, 4
      %v3470 = vrot.slane %v2380, 5
      %v3471 = vsel %vm3373, %v3469, %v3470
      %v3472 = vrot.slane %v3337, 5
      %v3473 = vrot.slane %v3472, 4
      %v3474 = vrot.slane %v2363, 5
      %v3475 = vsel %vm3373, %v3473, %v3474
      %v3476 = vrot.slane %v3474, 4
      %v3477 = vrot.slane %v2381, 5
      %v3478 = vsel %vm3373, %v3476, %v3477
      %v3479 = vrot.slane %v3338, 5
      %v3480 = vrot.slane %v3479, 4
      %v3481 = vrot.slane %v2365, 5
      %v3482 = vsel %vm3373, %v3480, %v3481
      %v3483 = vrot.slane %v3481, 4
      %v3484 = vrot.slane %v2382, 5
      %v3485 = vsel %vm3373, %v3483, %v3484
      %s3486 = scalar_lea.vmem %s3, 4
      %v3487 = vld [vmem:[%s3486] sm:$0x3]
      %v3488 = vunpack.c.l.b16 %v3377
      %v3489 = vunpack.c.l.b16 %v3380
      %v3490 = vunpack.c.l.b16 %v3384
      %v3491 = vunpack.c.l.b16 %v3387
      %v3492 = vunpack.c.l.b16 %v3391
      %v3493 = vunpack.c.l.b16 %v3394
      %v3494 = vunpack.c.l.b16 %v3398
      %v3495 = vunpack.c.l.b16 %v3401
      %v3496 = vunpack.c.l.b16 %v3405
      %v3497 = vunpack.c.l.b16 %v3408
      %v3498 = vunpack.c.l.b16 %v3412
      %v3499 = vunpack.c.l.b16 %v3415
      %v3500 = vunpack.c.l.b16 %v3419
      %v3501 = vunpack.c.l.b16 %v3422
      %v3502 = vunpack.c.l.b16 %v3426
      %v3503 = vunpack.c.l.b16 %v3429
      %v3504 = vunpack.c.l.b16 %v3433
      %v3505 = vunpack.c.l.b16 %v3436
      %v3506 = vunpack.c.l.b16 %v3440
      %v3507 = vunpack.c.l.b16 %v3443
      %v3508 = vunpack.c.l.b16 %v3447
      %v3509 = vunpack.c.l.b16 %v3450
      %v3510 = vunpack.c.l.b16 %v3454
      %v3511 = vunpack.c.l.b16 %v3457
      %v3512 = vunpack.c.l.b16 %v3461
      %v3513 = vunpack.c.l.b16 %v3464
      %v3514 = vunpack.c.l.b16 %v3468
      %v3515 = vunpack.c.l.b16 %v3471
      %v3516 = vunpack.c.l.b16 %v3475
      %v3517 = vunpack.c.l.b16 %v3478
      %v3518 = vunpack.c.l.b16 %v3482
      %v3519 = vunpack.c.l.b16 %v3485
      %v3520 = vpack.c.b16 %v3489, %v3488
      %v3521 = vpack.c.b16 %v3491, %v3490
      %v3522 = vpack.c.b16 %v3493, %v3492
      %v3523 = vpack.c.b16 %v3495, %v3494
      %v3524 = vpack.c.b16 %v3497, %v3496
      %v3525 = vpack.c.b16 %v3499, %v3498
      %v3526 = vpack.c.b16 %v3501, %v3500
      %v3527 = vpack.c.b16 %v3503, %v3502
      %v3528 = vpack.c.b16 %v3505, %v3504
      %v3529 = vpack.c.b16 %v3507, %v3506
      %v3530 = vpack.c.b16 %v3509, %v3508
      %v3531 = vpack.c.b16 %v3511, %v3510
      %v3532 = vpack.c.b16 %v3513, %v3512
      %v3533 = vpack.c.b16 %v3515, %v3514
      %v3534 = vpack.c.b16 %v3517, %v3516
      %v3535 = vpack.c.b16 %v3519, %v3518
      %v3537 = vsel %vm2817, %v3520, 0
      %v3540 = vsel %vm2817, %v3521, 0
      %v3543 = vsel %vm2817, %v3522, 0
      %v3546 = vsel %vm2817, %v3523, 0
      %v3549 = vsel %vm2817, %v3524, 0
      %v3552 = vsel %vm2817, %v3525, 0
      %v3555 = vsel %vm2817, %v3526, 0
      %v3558 = vsel %vm2817, %v3527, 0
      %v3561 = vsel %vm2817, %v3528, 0
      %v3564 = vsel %vm2817, %v3529, 0
      %v3567 = vsel %vm2817, %v3530, 0
      %v3570 = vsel %vm2817, %v3531, 0
      %v3573 = vsel %vm2817, %v3532, 0
      %v3576 = vsel %vm2817, %v3533, 0
      %v3579 = vsel %vm2817, %v3534, 0
      %v3582 = vsel %vm2817, %v3535, 0
      %v3585 = vsel %vm2866, %v3487, 0
      %3587 = vmatprep.subr.bf16.mxu0 0
      %3588 = vmatpush1.bf16.msra.mxu0 %v3585
      %3589 = vmatprep.subr.bf16.mxu0 0
      %3590 = vmatpush1.bf16.msra.mxu0 0
      %3591 = vmatprep.subr.bf16.mxu0 0
      %3592 = vmatpush1.bf16.msra.mxu0 0
      %3593 = vmatprep.subr.bf16.mxu0 0
      %3594 = vmatpush1.bf16.msra.mxu0 0
      %3595 = vmatprep.subr.bf16.mxu0 0
      %3596 = vmatpush1.bf16.msra.mxu0 0
      %3597 = vmatprep.subr.bf16.mxu0 0
      %3598 = vmatpush1.bf16.msra.mxu0 0
      %3599 = vmatprep.subr.bf16.mxu0 0
      %3600 = vmatpush1.bf16.msra.mxu0 0
      %3601 = vmatprep.subr.bf16.mxu0 0
      %3602 = vmatpush1.bf16.msra.mxu0 0
      %3603 = vmatprep.subr.bf16.mxu0 0
      %3604 = vmatpush1.bf16.msra.mxu0 0
      %3605 = vmatprep.subr.bf16.mxu0 0
      %3606 = vmatpush1.bf16.msra.mxu0 0
      %3607 = vmatprep.subr.bf16.mxu0 0
      %3608 = vmatpush1.bf16.msra.mxu0 0
      %3609 = vmatprep.subr.bf16.mxu0 0
      %3610 = vmatpush1.bf16.msra.mxu0 0
      %3611 = vmatprep.subr.bf16.mxu0 0
      %3612 = vmatpush1.bf16.msra.mxu0 0
      %3613 = vmatprep.subr.bf16.mxu0 0
      %3614 = vmatpush1.bf16.msra.mxu0 0
      %3615 = vmatprep.subr.bf16.mxu0 0
      %3616 = vmatpush1.bf16.msra.mxu0 0
      %3617 = vmatprep.subr.bf16.mxu0 0
      %3618 = vmatpush1.bf16.msra.mxu0 0
      %3619 = vmatprep.mubr.bf16.mxu0 0
      %3620 = vmatmul.mubr.bf16.gmra.mrb[0].mxu0 %v3537
      %v3621 = vpop.f32.mrb[0].mxu0
      %v3622 = vadd.f32 0.0, %v3621
      %v3623 = vpop.f32.mrb[0].mxu0
      %v3624 = vpop.f32.mrb[0].mxu0
      %v3625 = vadd.f32 0.0, %v3624
      %v3626 = vpop.f32.mrb[0].mxu0
      %3627 = vmatprep.mubr.bf16.mxu0 0
      %3628 = vmatmul.mubr.bf16.gmra.mrb[0].mxu0 %v3540
      %v3629 = vpop.f32.mrb[0].mxu0
      %v3630 = vadd.f32 0.0, %v3629
      %v3631 = vpop.f32.mrb[0].mxu0
      %v3632 = vpop.f32.mrb[0].mxu0
      %v3633 = vadd.f32 0.0, %v3632
      %v3634 = vpop.f32.mrb[0].mxu0
      %3635 = vmatprep.mubr.bf16.mxu0 0
      %3636 = vmatmul.mubr.bf16.gmra.mrb[0].mxu0 %v3543
      %v3637 = vpop.f32.mrb[0].mxu0
      %v3638 = vadd.f32 0.0, %v3637
      %v3639 = vpop.f32.mrb[0].mxu0
      %v3640 = vpop.f32.mrb[0].mxu0
      %v3641 = vadd.f32 0.0, %v3640
      %v3642 = vpop.f32.mrb[0].mxu0
      %3643 = vmatprep.mubr.bf16.mxu0 0
      %3644 = vmatmul.mubr.bf16.gmra.mrb[0].mxu0 %v3546
      %v3645 = vpop.f32.mrb[0].mxu0
      %v3646 = vadd.f32 0.0, %v3645
      %v3647 = vpop.f32.mrb[0].mxu0
      %v3648 = vpop.f32.mrb[0].mxu0
      %v3649 = vadd.f32 0.0, %v3648
      %v3650 = vpop.f32.mrb[0].mxu0
      %3651 = vmatprep.mubr.bf16.mxu0 0
      %3652 = vmatmul.mubr.bf16.gmra.mrb[0].mxu0 %v3549
      %v3653 = vpop.f32.mrb[0].mxu0
      %v3654 = vadd.f32 0.0, %v3653
      %v3655 = vpop.f32.mrb[0].mxu0
      %v3656 = vpop.f32.mrb[0].mxu0
      %v3657 = vadd.f32 0.0, %v3656
      %v3658 = vpop.f32.mrb[0].mxu0
      %3659 = vmatprep.mubr.bf16.mxu0 0
      %3660 = vmatmul.mubr.bf16.gmra.mrb[0].mxu0 %v3552
      %v3661 = vpop.f32.mrb[0].mxu0
      %v3662 = vadd.f32 0.0, %v3661
      %v3663 = vpop.f32.mrb[0].mxu0
      %v3664 = vpop.f32.mrb[0].mxu0
      %v3665 = vadd.f32 0.0, %v3664
      %v3666 = vpop.f32.mrb[0].mxu0
      %3667 = vmatprep.mubr.bf16.mxu0 0
      %3668 = vmatmul.mubr.bf16.gmra.mrb[0].mxu0 %v3555
      %v3669 = vpop.f32.mrb[0].mxu0
      %v3670 = vadd.f32 0.0, %v3669
      %v3671 = vpop.f32.mrb[0].mxu0
      %v3672 = vpop.f32.mrb[0].mxu0
      %v3673 = vadd.f32 0.0, %v3672
      %v3674 = vpop.f32.mrb[0].mxu0
      %3675 = vmatprep.mubr.bf16.mxu0 0
      %3676 = vmatmul.mubr.bf16.gmra.mrb[0].mxu0 %v3558
      %v3677 = vpop.f32.mrb[0].mxu0
      %v3678 = vadd.f32 0.0, %v3677
      %v3679 = vpop.f32.mrb[0].mxu0
      %v3680 = vpop.f32.mrb[0].mxu0
      %v3681 = vadd.f32 0.0, %v3680
      %v3682 = vpop.f32.mrb[0].mxu0
      %3683 = vmatprep.mubr.bf16.mxu0 0
      %3684 = vmatmul.mubr.bf16.gmra.mrb[0].mxu0 %v3561
      %v3685 = vpop.f32.mrb[0].mxu0
      %v3686 = vadd.f32 0.0, %v3685
      %v3687 = vpop.f32.mrb[0].mxu0
      %v3688 = vpop.f32.mrb[0].mxu0
      %v3689 = vadd.f32 0.0, %v3688
      %v3690 = vpop.f32.mrb[0].mxu0
      %3691 = vmatprep.mubr.bf16.mxu0 0
      %3692 = vmatmul.mubr.bf16.gmra.mrb[0].mxu0 %v3564
      %v3693 = vpop.f32.mrb[0].mxu0
      %v3694 = vadd.f32 0.0, %v3693
      %v3695 = vpop.f32.mrb[0].mxu0
      %v3696 = vpop.f32.mrb[0].mxu0
      %v3697 = vadd.f32 0.0, %v3696
      %v3698 = vpop.f32.mrb[0].mxu0
      %3699 = vmatprep.mubr.bf16.mxu0 0
      %3700 = vmatmul.mubr.bf16.gmra.mrb[0].mxu0 %v3567
      %v3701 = vpop.f32.mrb[0].mxu0
      %v3702 = vadd.f32 0.0, %v3701
      %v3703 = vpop.f32.mrb[0].mxu0
      %v3704 = vpop.f32.mrb[0].mxu0
      %v3705 = vadd.f32 0.0, %v3704
      %v3706 = vpop.f32.mrb[0].mxu0
      %3707 = vmatprep.mubr.bf16.mxu0 0
      %3708 = vmatmul.mubr.bf16.gmra.mrb[0].mxu0 %v3570
      %v3709 = vpop.f32.mrb[0].mxu0
      %v3710 = vadd.f32 0.0, %v3709
      %v3711 = vpop.f32.mrb[0].mxu0
      %v3712 = vpop.f32.mrb[0].mxu0
      %v3713 = vadd.f32 0.0, %v3712
      %v3714 = vpop.f32.mrb[0].mxu0
      %3715 = vmatprep.mubr.bf16.mxu0 0
      %3716 = vmatmul.mubr.bf16.gmra.mrb[0].mxu0 %v3573
      %v3717 = vpop.f32.mrb[0].mxu0
      %v3718 = vadd.f32 0.0, %v3717
      %v3719 = vpop.f32.mrb[0].mxu0
      %v3720 = vpop.f32.mrb[0].mxu0
      %v3721 = vadd.f32 0.0, %v3720
      %v3722 = vpop.f32.mrb[0].mxu0
      %3723 = vmatprep.mubr.bf16.mxu0 0
      %3724 = vmatmul.mubr.bf16.gmra.mrb[0].mxu0 %v3576
      %v3725 = vpop.f32.mrb[0].mxu0
      %v3726 = vadd.f32 0.0, %v3725
      %v3727 = vpop.f32.mrb[0].mxu0
      %v3728 = vpop.f32.mrb[0].mxu0
      %v3729 = vadd.f32 0.0, %v3728
      %v3730 = vpop.f32.mrb[0].mxu0
      %3731 = vmatprep.mubr.bf16.mxu0 0
      %3732 = vmatmul.mubr.bf16.gmra.mrb[0].mxu0 %v3579
      %v3733 = vpop.f32.mrb[0].mxu0
      %v3734 = vadd.f32 0.0, %v3733
      %v3735 = vpop.f32.mrb[0].mxu0
      %v3736 = vpop.f32.mrb[0].mxu0
      %v3737 = vadd.f32 0.0, %v3736
      %v3738 = vpop.f32.mrb[0].mxu0
      %3739 = vmatprep.mubr.bf16.mxu0 0
      %3740 = vmatmul.mubr.bf16.gmra.mrb[0].mxu0 %v3582
      %v3741 = vpop.f32.mrb[0].mxu0
      %v3742 = vadd.f32 0.0, %v3741
      %v3743 = vpop.f32.mrb[0].mxu0
      %v3744 = vpop.f32.mrb[0].mxu0
      %v3745 = vadd.f32 0.0, %v3744
      %v3746 = vpop.f32.mrb[0].mxu0
      %3747 = vdwg.mxu0
      %v3748 = vadd.f32 %v3197, %v3622
      %v3749 = vadd.f32 %v3200, %v3625
      %v3750 = vadd.f32 %v3205, %v3630
      %v3751 = vadd.f32 %v3208, %v3633
      %v3752 = vadd.f32 %v3213, %v3638
      %v3753 = vadd.f32 %v3216, %v3641
      %v3754 = vadd.f32 %v3221, %v3646
      %v3755 = vadd.f32 %v3224, %v3649
      %v3756 = vadd.f32 %v3229, %v3654
      %v3757 = vadd.f32 %v3232, %v3657
      %v3758 = vadd.f32 %v3237, %v3662
      %v3759 = vadd.f32 %v3240, %v3665
      %v3760 = vadd.f32 %v3245, %v3670
      %v3761 = vadd.f32 %v3248, %v3673
      %v3762 = vadd.f32 %v3253, %v3678
      %v3763 = vadd.f32 %v3256, %v3681
      %v3764 = vadd.f32 %v3261, %v3686
      %v3765 = vadd.f32 %v3264, %v3689
      %v3766 = vadd.f32 %v3269, %v3694
      %v3767 = vadd.f32 %v3272, %v3697
      %v3768 = vadd.f32 %v3277, %v3702
      %v3769 = vadd.f32 %v3280, %v3705
      %v3770 = vadd.f32 %v3285, %v3710
      %v3771 = vadd.f32 %v3288, %v3713
      %v3772 = vadd.f32 %v3293, %v3718
      %v3773 = vadd.f32 %v3296, %v3721
      %v3774 = vadd.f32 %v3301, %v3726
      %v3775 = vadd.f32 %v3304, %v3729
      %v3776 = vadd.f32 %v3309, %v3734
      %v3777 = vadd.f32 %v3312, %v3737
      %v3778 = vadd.f32 %v3317, %v3742
      %v3779 = vadd.f32 %v3320, %v3745
      %v3780 = vld [vmem:[%s2216] sm:$0xf]
      %v3781 = vld [vmem:[%s2216 + $0x4] sm:$0xf]
      %v3782 = vld [vmem:[%s2216 + $0xc] sm:$0xf]
      %v3783 = vld [vmem:[%s2216 + $0x10] sm:$0xf]
      %v3784 = vld [vmem:[%s2216 + $0x18] sm:$0xf]
      %v3785 = vld [vmem:[%s2216 + $0x1c] sm:$0xf]
      %v3786 = vld [vmem:[%s2216 + $0x24] sm:$0xf]
      %v3787 = vld [vmem:[%s2216 + $0x28] sm:$0xf]
      %v3788 = vld [vmem:[%s2216 + $0x30] sm:$0xf]
      %v3789 = vld [vmem:[%s2216 + $0x34] sm:$0xf]
      %v3790 = vld [vmem:[%s2216 + $0x3c] sm:$0xf]
      %v3791 = vld [vmem:[%s2216 + $0x40] sm:$0xf]
      %v3792 = vld [vmem:[%s2216 + $0x48] sm:$0xf]
      %v3793 = vld [vmem:[%s2216 + $0x4c] sm:$0xf]
      %v3794 = vld [vmem:[%s2216 + $0x54] sm:$0xf]
      %v3795 = vld [vmem:[%s2216 + $0x58] sm:$0xf]
      %v3796 = vld [vmem:[%s2216 + $0x60] sm:$0xf]
      %v3797 = vld [vmem:[%s2216 + $0x64] sm:$0xf]
      %v3798 = vld [vmem:[%s2216 + $0x6c] sm:$0xf]
      %v3799 = vld [vmem:[%s2216 + $0x70] sm:$0xf]
      %v3800 = vld [vmem:[%s2216 + $0x78] sm:$0xf]
      %v3801 = vld [vmem:[%s2216 + $0x7c] sm:$0xf]
      %v3802 = vld [vmem:[%s2216 + $0x84] sm:$0xf]
      %v3803 = vld [vmem:[%s2216 + $0x88] sm:$0xf]
      %v3804 = vld [vmem:[%s2216 + $0x90] sm:$0xf]
      %v3805 = vld [vmem:[%s2216 + $0x94] sm:$0xf]
      %v3806 = vld [vmem:[%s2216 + $0x9c] sm:$0xf]
      %v3807 = vld [vmem:[%s2216 + $0xa0] sm:$0xf]
      %v3808 = vld [vmem:[%s2216 + $0xa8] sm:$0xf]
      %v3809 = vld [vmem:[%s2216 + $0xac] sm:$0xf]
      %v3810 = vld [vmem:[%s2216 + $0xb4] sm:$0xf]
      %v3811 = vld [vmem:[%s2216 + $0xb8] sm:$0xf]
      %s3812 = scalar_lea.vmem %s3, 6
      %v3813 = vld [vmem:[%s3812] sm:$0x3]
      %v3846 = vunpack.c.l.b16 %v3780
      %v3847 = vunpack.c.l.b16 %v3781
      %v3848 = vunpack.c.l.b16 %v3782
      %v3849 = vunpack.c.l.b16 %v3783
      %v3850 = vunpack.c.l.b16 %v3784
      %v3851 = vunpack.c.l.b16 %v3785
      %v3852 = vunpack.c.l.b16 %v3786
      %v3853 = vunpack.c.l.b16 %v3787
      %v3854 = vunpack.c.l.b16 %v3788
      %v3855 = vunpack.c.l.b16 %v3789
      %v3856 = vunpack.c.l.b16 %v3790
      %v3857 = vunpack.c.l.b16 %v3791
      %v3858 = vunpack.c.l.b16 %v3792
      %v3859 = vunpack.c.l.b16 %v3793
      %v3860 = vunpack.c.l.b16 %v3794
      %v3861 = vunpack.c.l.b16 %v3795
      %v3862 = vunpack.c.l.b16 %v3796
      %v3863 = vunpack.c.l.b16 %v3797
      %v3864 = vunpack.c.l.b16 %v3798
      %v3865 = vunpack.c.l.b16 %v3799
      %v3866 = vunpack.c.l.b16 %v3800
      %v3867 = vunpack.c.l.b16 %v3801
      %v3868 = vunpack.c.l.b16 %v3802
      %v3869 = vunpack.c.l.b16 %v3803
      %v3870 = vunpack.c.l.b16 %v3804
      %v3871 = vunpack.c.l.b16 %v3805
      %v3872 = vunpack.c.l.b16 %v3806
      %v3873 = vunpack.c.l.b16 %v3807
      %v3874 = vunpack.c.l.b16 %v3808
      %v3875 = vunpack.c.l.b16 %v3809
      %v3876 = vunpack.c.l.b16 %v3810
      %v3877 = vunpack.c.l.b16 %v3811
      %v3878 = vpack.c.b16 %v3847, %v3846
      %v3879 = vpack.c.b16 %v3849, %v3848
      %v3880 = vpack.c.b16 %v3851, %v3850
      %v3881 = vpack.c.b16 %v3853, %v3852
      %v3882 = vpack.c.b16 %v3855, %v3854
      %v3883 = vpack.c.b16 %v3857, %v3856
      %v3884 = vpack.c.b16 %v3859, %v3858
      %v3885 = vpack.c.b16 %v3861, %v3860
      %v3886 = vpack.c.b16 %v3863, %v3862
      %v3887 = vpack.c.b16 %v3865, %v3864
      %v3888 = vpack.c.b16 %v3867, %v3866
      %v3889 = vpack.c.b16 %v3869, %v3868
      %v3890 = vpack.c.b16 %v3871, %v3870
      %v3891 = vpack.c.b16 %v3873, %v3872
      %v3892 = vpack.c.b16 %v3875, %v3874
      %v3893 = vpack.c.b16 %v3877, %v3876
      %v3895 = vsel %vm2817, %v3878, 0
      %v3898 = vsel %vm2817, %v3879, 0
      %v3901 = vsel %vm2817, %v3880, 0
      %v3904 = vsel %vm2817, %v3881, 0
      %v3907 = vsel %vm2817, %v3882, 0
      %v3910 = vsel %vm2817, %v3883, 0
      %v3913 = vsel %vm2817, %v3884, 0
      %v3916 = vsel %vm2817, %v3885, 0
      %v3919 = vsel %vm2817, %v3886, 0
      %v3922 = vsel %vm2817, %v3887, 0
      %v3925 = vsel %vm2817, %v3888, 0
      %v3928 = vsel %vm2817, %v3889, 0
      %v3931 = vsel %vm2817, %v3890, 0
      %v3934 = vsel %vm2817, %v3891, 0
      %v3937 = vsel %vm2817, %v3892, 0
      %v3940 = vsel %vm2817, %v3893, 0
      %v3943 = vsel %vm2866, %v3813, 0
      %3945 = vmatprep.subr.bf16.mxu0 0
      %3946 = vmatpush1.bf16.msra.mxu0 %v3943
      %3947 = vmatprep.subr.bf16.mxu0 0
      %3948 = vmatpush1.bf16.msra.mxu0 0
      %3949 = vmatprep.subr.bf16.mxu0 0
      %3950 = vmatpush1.bf16.msra.mxu0 0
      %3951 = vmatprep.subr.bf16.mxu0 0
      %3952 = vmatpush1.bf16.msra.mxu0 0
      %3953 = vmatprep.subr.bf16.mxu0 0
      %3954 = vmatpush1.bf16.msra.mxu0 0
      %3955 = vmatprep.subr.bf16.mxu0 0
      %3956 = vmatpush1.bf16.msra.mxu0 0
      %3957 = vmatprep.subr.bf16.mxu0 0
      %3958 = vmatpush1.bf16.msra.mxu0 0
      %3959 = vmatprep.subr.bf16.mxu0 0
      %3960 = vmatpush1.bf16.msra.mxu0 0
      %3961 = vmatprep.subr.bf16.mxu0 0
      %3962 = vmatpush1.bf16.msra.mxu0 0
      %3963 = vmatprep.subr.bf16.mxu0 0
      %3964 = vmatpush1.bf16.msra.mxu0 0
      %3965 = vmatprep.subr.bf16.mxu0 0
      %3966 = vmatpush1.bf16.msra.mxu0 0
      %3967 = vmatprep.subr.bf16.mxu0 0
      %3968 = vmatpush1.bf16.msra.mxu0 0
      %3969 = vmatprep.subr.bf16.mxu0 0
      %3970 = vmatpush1.bf16.msra.mxu0 0
      %3971 = vmatprep.subr.bf16.mxu0 0
      %3972 = vmatpush1.bf16.msra.mxu0 0
      %3973 = vmatprep.subr.bf16.mxu0 0
      %3974 = vmatpush1.bf16.msra.mxu0 0
      %3975 = vmatprep.subr.bf16.mxu0 0
      %3976 = vmatpush1.bf16.msra.mxu0 0
      %3977 = vmatprep.mubr.bf16.mxu0 0
      %3978 = vmatmul.mubr.bf16.gmra.mrb[0].mxu0 %v3895
      %v3979 = vpop.f32.mrb[0].mxu0
      %v3980 = vadd.f32 0.0, %v3979
      %v3981 = vpop.f32.mrb[0].mxu0
      %v3982 = vpop.f32.mrb[0].mxu0
      %v3983 = vadd.f32 0.0, %v3982
      %v3984 = vpop.f32.mrb[0].mxu0
      %3985 = vmatprep.mubr.bf16.mxu0 0
      %3986 = vmatmul.mubr.bf16.gmra.mrb[0].mxu0 %v3898
      %v3987 = vpop.f32.mrb[0].mxu0
      %v3988 = vadd.f32 0.0, %v3987
      %v3989 = vpop.f32.mrb[0].mxu0
      %v3990 = vpop.f32.mrb[0].mxu0
      %v3991 = vadd.f32 0.0, %v3990
      %v3992 = vpop.f32.mrb[0].mxu0
      %3993 = vmatprep.mubr.bf16.mxu0 0
      %3994 = vmatmul.mubr.bf16.gmra.mrb[0].mxu0 %v3901
      %v3995 = vpop.f32.mrb[0].mxu0
      %v3996 = vadd.f32 0.0, %v3995
      %v3997 = vpop.f32.mrb[0].mxu0
      %v3998 = vpop.f32.mrb[0].mxu0
      %v3999 = vadd.f32 0.0, %v3998
      %v4000 = vpop.f32.mrb[0].mxu0
      %4001 = vmatprep.mubr.bf16.mxu0 0
      %4002 = vmatmul.mubr.bf16.gmra.mrb[0].mxu0 %v3904
      %v4003 = vpop.f32.mrb[0].mxu0
      %v4004 = vadd.f32 0.0, %v4003
      %v4005 = vpop.f32.mrb[0].mxu0
      %v4006 = vpop.f32.mrb[0].mxu0
      %v4007 = vadd.f32 0.0, %v4006
      %v4008 = vpop.f32.mrb[0].mxu0
      %4009 = vmatprep.mubr.bf16.mxu0 0
      %4010 = vmatmul.mubr.bf16.gmra.mrb[0].mxu0 %v3907
      %v4011 = vpop.f32.mrb[0].mxu0
      %v4012 = vadd.f32 0.0, %v4011
      %v4013 = vpop.f32.mrb[0].mxu0
      %v4014 = vpop.f32.mrb[0].mxu0
      %v4015 = vadd.f32 0.0, %v4014
      %v4016 = vpop.f32.mrb[0].mxu0
      %4017 = vmatprep.mubr.bf16.mxu0 0
      %4018 = vmatmul.mubr.bf16.gmra.mrb[0].mxu0 %v3910
      %v4019 = vpop.f32.mrb[0].mxu0
      %v4020 = vadd.f32 0.0, %v4019
      %v4021 = vpop.f32.mrb[0].mxu0
      %v4022 = vpop.f32.mrb[0].mxu0
      %v4023 = vadd.f32 0.0, %v4022
      %v4024 = vpop.f32.mrb[0].mxu0
      %4025 = vmatprep.mubr.bf16.mxu0 0
      %4026 = vmatmul.mubr.bf16.gmra.mrb[0].mxu0 %v3913
      %v4027 = vpop.f32.mrb[0].mxu0
      %v4028 = vadd.f32 0.0, %v4027
      %v4029 = vpop.f32.mrb[0].mxu0
      %v4030 = vpop.f32.mrb[0].mxu0
      %v4031 = vadd.f32 0.0, %v4030
      %v4032 = vpop.f32.mrb[0].mxu0
      %4033 = vmatprep.mubr.bf16.mxu0 0
      %4034 = vmatmul.mubr.bf16.gmra.mrb[0].mxu0 %v3916
      %v4035 = vpop.f32.mrb[0].mxu0
      %v4036 = vadd.f32 0.0, %v4035
      %v4037 = vpop.f32.mrb[0].mxu0
      %v4038 = vpop.f32.mrb[0].mxu0
      %v4039 = vadd.f32 0.0, %v4038
      %v4040 = vpop.f32.mrb[0].mxu0
      %4041 = vmatprep.mubr.bf16.mxu0 0
      %4042 = vmatmul.mubr.bf16.gmra.mrb[0].mxu0 %v3919
      %v4043 = vpop.f32.mrb[0].mxu0
      %v4044 = vadd.f32 0.0, %v4043
      %v4045 = vpop.f32.mrb[0].mxu0
      %v4046 = vpop.f32.mrb[0].mxu0
      %v4047 = vadd.f32 0.0, %v4046
      %v4048 = vpop.f32.mrb[0].mxu0
      %4049 = vmatprep.mubr.bf16.mxu0 0
      %4050 = vmatmul.mubr.bf16.gmra.mrb[0].mxu0 %v3922
      %v4051 = vpop.f32.mrb[0].mxu0
      %v4052 = vadd.f32 0.0, %v4051
      %v4053 = vpop.f32.mrb[0].mxu0
      %v4054 = vpop.f32.mrb[0].mxu0
      %v4055 = vadd.f32 0.0, %v4054
      %v4056 = vpop.f32.mrb[0].mxu0
      %4057 = vmatprep.mubr.bf16.mxu0 0
      %4058 = vmatmul.mubr.bf16.gmra.mrb[0].mxu0 %v3925
      %v4059 = vpop.f32.mrb[0].mxu0
      %v4060 = vadd.f32 0.0, %v4059
      %v4061 = vpop.f32.mrb[0].mxu0
      %v4062 = vpop.f32.mrb[0].mxu0
      %v4063 = vadd.f32 0.0, %v4062
      %v4064 = vpop.f32.mrb[0].mxu0
      %4065 = vmatprep.mubr.bf16.mxu0 0
      %4066 = vmatmul.mubr.bf16.gmra.mrb[0].mxu0 %v3928
      %v4067 = vpop.f32.mrb[0].mxu0
      %v4068 = vadd.f32 0.0, %v4067
      %v4069 = vpop.f32.mrb[0].mxu0
      %v4070 = vpop.f32.mrb[0].mxu0
      %v4071 = vadd.f32 0.0, %v4070
      %v4072 = vpop.f32.mrb[0].mxu0
      %4073 = vmatprep.mubr.bf16.mxu0 0
      %4074 = vmatmul.mubr.bf16.gmra.mrb[0].mxu0 %v3931
      %v4075 = vpop.f32.mrb[0].mxu0
      %v4076 = vadd.f32 0.0, %v4075
      %v4077 = vpop.f32.mrb[0].mxu0
      %v4078 = vpop.f32.mrb[0].mxu0
      %v4079 = vadd.f32 0.0, %v4078
      %v4080 = vpop.f32.mrb[0].mxu0
      %4081 = vmatprep.mubr.bf16.mxu0 0
      %4082 = vmatmul.mubr.bf16.gmra.mrb[0].mxu0 %v3934
      %v4083 = vpop.f32.mrb[0].mxu0
      %v4084 = vadd.f32 0.0, %v4083
      %v4085 = vpop.f32.mrb[0].mxu0
      %v4086 = vpop.f32.mrb[0].mxu0
      %v4087 = vadd.f32 0.0, %v4086
      %v4088 = vpop.f32.mrb[0].mxu0
      %4089 = vmatprep.mubr.bf16.mxu0 0
      %4090 = vmatmul.mubr.bf16.gmra.mrb[0].mxu0 %v3937
      %v4091 = vpop.f32.mrb[0].mxu0
      %v4092 = vadd.f32 0.0, %v4091
      %v4093 = vpop.f32.mrb[0].mxu0
      %v4094 = vpop.f32.mrb[0].mxu0
      %v4095 = vadd.f32 0.0, %v4094
      %v4096 = vpop.f32.mrb[0].mxu0
      %4097 = vmatprep.mubr.bf16.mxu0 0
      %4098 = vmatmul.mubr.bf16.gmra.mrb[0].mxu0 %v3940
      %v4099 = vpop.f32.mrb[0].mxu0
      %v4100 = vadd.f32 0.0, %v4099
      %v4101 = vpop.f32.mrb[0].mxu0
      %v4102 = vpop.f32.mrb[0].mxu0
      %v4103 = vadd.f32 0.0, %v4102
      %v4104 = vpop.f32.mrb[0].mxu0
      %4105 = vdwg.mxu0
      %v4106 = vadd.f32 %v3748, %v3980
      %v4107 = vadd.f32 %v3749, %v3983
      %v4108 = vadd.f32 %v3750, %v3988
      %v4109 = vadd.f32 %v3751, %v3991
      %v4110 = vadd.f32 %v3752, %v3996
      %v4111 = vadd.f32 %v3753, %v3999
      %v4112 = vadd.f32 %v3754, %v4004
      %v4113 = vadd.f32 %v3755, %v4007
      %v4114 = vadd.f32 %v3756, %v4012
      %v4115 = vadd.f32 %v3757, %v4015
      %v4116 = vadd.f32 %v3758, %v4020
      %v4117 = vadd.f32 %v3759, %v4023
      %v4118 = vadd.f32 %v3760, %v4028
      %v4119 = vadd.f32 %v3761, %v4031
      %v4120 = vadd.f32 %v3762, %v4036
      %v4121 = vadd.f32 %v3763, %v4039
      %v4122 = vadd.f32 %v3764, %v4044
      %v4123 = vadd.f32 %v3765, %v4047
      %v4124 = vadd.f32 %v3766, %v4052
      %v4125 = vadd.f32 %v3767, %v4055
      %v4126 = vadd.f32 %v3768, %v4060
      %v4127 = vadd.f32 %v3769, %v4063
      %v4128 = vadd.f32 %v3770, %v4068
      %v4129 = vadd.f32 %v3771, %v4071
      %v4130 = vadd.f32 %v3772, %v4076
      %v4131 = vadd.f32 %v3773, %v4079
      %v4132 = vadd.f32 %v3774, %v4084
      %v4133 = vadd.f32 %v3775, %v4087
      %v4134 = vadd.f32 %v3776, %v4092
      %v4135 = vadd.f32 %v3777, %v4095
      %v4136 = vadd.f32 %v3778, %v4100
      %v4137 = vadd.f32 %v3779, %v4103
      %v4138 = vld [vmem:[%s2216] sm:$0xf]
      %v4139 = vld [vmem:[%s2216 + $0x4] sm:$0xf]
      %v4140 = vld [vmem:[%s2216 + $0x8] sm:$0x1]
      %v4141 = vld [vmem:[%s2216 + $0xc] sm:$0xf]
      %v4142 = vld [vmem:[%s2216 + $0x10] sm:$0xf]
      %v4143 = vld [vmem:[%s2216 + $0x14] sm:$0x1]
      %v4144 = vld [vmem:[%s2216 + $0x18] sm:$0xf]
      %v4145 = vld [vmem:[%s2216 + $0x1c] sm:$0xf]
      %v4146 = vld [vmem:[%s2216 + $0x20] sm:$0x1]
      %v4147 = vld [vmem:[%s2216 + $0x24] sm:$0xf]
      %v4148 = vld [vmem:[%s2216 + $0x28] sm:$0xf]
      %v4149 = vld [vmem:[%s2216 + $0x2c] sm:$0x1]
      %v4150 = vld [vmem:[%s2216 + $0x30] sm:$0xf]
      %v4151 = vld [vmem:[%s2216 + $0x34] sm:$0xf]
      %v4152 = vld [vmem:[%s2216 + $0x38] sm:$0x1]
      %v4153 = vld [vmem:[%s2216 + $0x3c] sm:$0xf]
      %v4154 = vld [vmem:[%s2216 + $0x40] sm:$0xf]
      %v4155 = vld [vmem:[%s2216 + $0x44] sm:$0x1]
      %v4156 = vld [vmem:[%s2216 + $0x48] sm:$0xf]
      %v4157 = vld [vmem:[%s2216 + $0x4c] sm:$0xf]
      %v4158 = vld [vmem:[%s2216 + $0x50] sm:$0x1]
      %v4159 = vld [vmem:[%s2216 + $0x54] sm:$0xf]
      %v4160 = vld [vmem:[%s2216 + $0x58] sm:$0xf]
      %v4161 = vld [vmem:[%s2216 + $0x5c] sm:$0x1]
      %v4162 = vld [vmem:[%s2216 + $0x60] sm:$0xf]
      %v4163 = vld [vmem:[%s2216 + $0x64] sm:$0xf]
      %v4164 = vld [vmem:[%s2216 + $0x68] sm:$0x1]
      %v4165 = vld [vmem:[%s2216 + $0x6c] sm:$0xf]
      %v4166 = vld [vmem:[%s2216 + $0x70] sm:$0xf]
      %v4167 = vld [vmem:[%s2216 + $0x74] sm:$0x1]
      %v4168 = vld [vmem:[%s2216 + $0x78] sm:$0xf]
      %v4169 = vld [vmem:[%s2216 + $0x7c] sm:$0xf]
      %v4170 = vld [vmem:[%s2216 + $0x80] sm:$0x1]
      %v4171 = vld [vmem:[%s2216 + $0x84] sm:$0xf]
      %v4172 = vld [vmem:[%s2216 + $0x88] sm:$0xf]
      %v4173 = vld [vmem:[%s2216 + $0x8c] sm:$0x1]
      %v4174 = vld [vmem:[%s2216 + $0x90] sm:$0xf]
      %v4175 = vld [vmem:[%s2216 + $0x94] sm:$0xf]
      %v4176 = vld [vmem:[%s2216 + $0x98] sm:$0x1]
      %v4177 = vld [vmem:[%s2216 + $0x9c] sm:$0xf]
      %v4178 = vld [vmem:[%s2216 + $0xa0] sm:$0xf]
      %v4179 = vld [vmem:[%s2216 + $0xa4] sm:$0x1]
      %v4180 = vld [vmem:[%s2216 + $0xa8] sm:$0xf]
      %v4181 = vld [vmem:[%s2216 + $0xac] sm:$0xf]
      %v4182 = vld [vmem:[%s2216 + $0xb0] sm:$0x1]
      %v4183 = vld [vmem:[%s2216 + $0xb4] sm:$0xf]
      %v4184 = vld [vmem:[%s2216 + $0xb8] sm:$0xf]
      %v4185 = vld [vmem:[%s2216 + $0xbc] sm:$0x1]
      %v4187 = vshrl.u32 %v4138, 16
      %v4189 = vrot.slane %v4187, 4
      %v4190 = vshll.u32 %v4138, 16
      %v4192 = vrot.slane %v4190, 5
      %v4193 = vor.u32 %v4189, %v4192
      %v4194 = vrot.slane %v4193, 4
      %v4196 = vshll.u32 %v4139, 16
      %v4198 = vrot.slane %v4196, 5
      %v4199 = vsel %vm283, %v4194, %v4198
      %v4200 = vshrl.u32 %v4139, 16
      %v4202 = vrot.slane %v4200, 4
      %v4203 = vor.u32 %v4202, %v4198
      %v4204 = vrot.slane %v4203, 4
      %v4206 = vshll.u32 %v4140, 16
      %v4208 = vrot.slane %v4206, 5
      %v4209 = vsel %vm283, %v4204, %v4208
      %v4211 = vshrl.u32 %v4141, 16
      %v4213 = vrot.slane %v4211, 4
      %v4214 = vshll.u32 %v4141, 16
      %v4216 = vrot.slane %v4214, 5
      %v4217 = vor.u32 %v4213, %v4216
      %v4218 = vrot.slane %v4217, 4
      %v4220 = vshll.u32 %v4142, 16
      %v4222 = vrot.slane %v4220, 5
      %v4223 = vsel %vm283, %v4218, %v4222
      %v4224 = vshrl.u32 %v4142, 16
      %v4226 = vrot.slane %v4224, 4
      %v4227 = vor.u32 %v4226, %v4222
      %v4228 = vrot.slane %v4227, 4
      %v4230 = vshll.u32 %v4143, 16
      %v4232 = vrot.slane %v4230, 5
      %v4233 = vsel %vm283, %v4228, %v4232
      %v4235 = vshrl.u32 %v4144, 16
      %v4237 = vrot.slane %v4235, 4
      %v4238 = vshll.u32 %v4144, 16
      %v4240 = vrot.slane %v4238, 5
      %v4241 = vor.u32 %v4237, %v4240
      %v4242 = vrot.slane %v4241, 4
      %v4244 = vshll.u32 %v4145, 16
      %v4246 = vrot.slane %v4244, 5
      %v4247 = vsel %vm283, %v4242, %v4246
      %v4248 = vshrl.u32 %v4145, 16
      %v4250 = vrot.slane %v4248, 4
      %v4251 = vor.u32 %v4250, %v4246
      %v4252 = vrot.slane %v4251, 4
      %v4254 = vshll.u32 %v4146, 16
      %v4256 = vrot.slane %v4254, 5
      %v4257 = vsel %vm283, %v4252, %v4256
      %v4259 = vshrl.u32 %v4147, 16
      %v4261 = vrot.slane %v4259, 4
      %v4262 = vshll.u32 %v4147, 16
      %v4264 = vrot.slane %v4262, 5
      %v4265 = vor.u32 %v4261, %v4264
      %v4266 = vrot.slane %v4265, 4
      %v4268 = vshll.u32 %v4148, 16
      %v4270 = vrot.slane %v4268, 5
      %v4271 = vsel %vm283, %v4266, %v4270
      %v4272 = vshrl.u32 %v4148, 16
      %v4274 = vrot.slane %v4272, 4
      %v4275 = vor.u32 %v4274, %v4270
      %v4276 = vrot.slane %v4275, 4
      %v4278 = vshll.u32 %v4149, 16
      %v4280 = vrot.slane %v4278, 5
      %v4281 = vsel %vm283, %v4276, %v4280
      %v4283 = vshrl.u32 %v4150, 16
      %v4285 = vrot.slane %v4283, 4
      %v4286 = vshll.u32 %v4150, 16
      %v4288 = vrot.slane %v4286, 5
      %v4289 = vor.u32 %v4285, %v4288
      %v4290 = vrot.slane %v4289, 4
      %v4292 = vshll.u32 %v4151, 16
      %v4294 = vrot.slane %v4292, 5
      %v4295 = vsel %vm283, %v4290, %v4294
      %v4296 = vshrl.u32 %v4151, 16
      %v4298 = vrot.slane %v4296, 4
      %v4299 = vor.u32 %v4298, %v4294
      %v4300 = vrot.slane %v4299, 4
      %v4302 = vshll.u32 %v4152, 16
      %v4304 = vrot.slane %v4302, 5
      %v4305 = vsel %vm283, %v4300, %v4304
      %v4307 = vshrl.u32 %v4153, 16
      %v4309 = vrot.slane %v4307, 4
      %v4310 = vshll.u32 %v4153, 16
      %v4312 = vrot.slane %v4310, 5
      %v4313 = vor.u32 %v4309, %v4312
      %v4314 = vrot.slane %v4313, 4
      %v4316 = vshll.u32 %v4154, 16
      %v4318 = vrot.slane %v4316, 5
      %v4319 = vsel %vm283, %v4314, %v4318
      %v4320 = vshrl.u32 %v4154, 16
      %v4322 = vrot.slane %v4320, 4
      %v4323 = vor.u32 %v4322, %v4318
      %v4324 = vrot.slane %v4323, 4
      %v4326 = vshll.u32 %v4155, 16
      %v4328 = vrot.slane %v4326, 5
      %v4329 = vsel %vm283, %v4324, %v4328
      %v4331 = vshrl.u32 %v4156, 16
      %v4333 = vrot.slane %v4331, 4
      %v4334 = vshll.u32 %v4156, 16
      %v4336 = vrot.slane %v4334, 5
      %v4337 = vor.u32 %v4333, %v4336
      %v4338 = vrot.slane %v4337, 4
      %v4340 = vshll.u32 %v4157, 16
      %v4342 = vrot.slane %v4340, 5
      %v4343 = vsel %vm283, %v4338, %v4342
      %v4344 = vshrl.u32 %v4157, 16
      %v4346 = vrot.slane %v4344, 4
      %v4347 = vor.u32 %v4346, %v4342
      %v4348 = vrot.slane %v4347, 4
      %v4350 = vshll.u32 %v4158, 16
      %v4352 = vrot.slane %v4350, 5
      %v4353 = vsel %vm283, %v4348, %v4352
      %v4355 = vshrl.u32 %v4159, 16
      %v4357 = vrot.slane %v4355, 4
      %v4358 = vshll.u32 %v4159, 16
      %v4360 = vrot.slane %v4358, 5
      %v4361 = vor.u32 %v4357, %v4360
      %v4362 = vrot.slane %v4361, 4
      %v4364 = vshll.u32 %v4160, 16
      %v4366 = vrot.slane %v4364, 5
      %v4367 = vsel %vm283, %v4362, %v4366
      %v4368 = vshrl.u32 %v4160, 16
      %v4370 = vrot.slane %v4368, 4
      %v4371 = vor.u32 %v4370, %v4366
      %v4372 = vrot.slane %v4371, 4
      %v4374 = vshll.u32 %v4161, 16
      %v4376 = vrot.slane %v4374, 5
      %v4377 = vsel %vm283, %v4372, %v4376
      %v4379 = vshrl.u32 %v4162, 16
      %v4381 = vrot.slane %v4379, 4
      %v4382 = vshll.u32 %v4162, 16
      %v4384 = vrot.slane %v4382, 5
      %v4385 = vor.u32 %v4381, %v4384
      %v4386 = vrot.slane %v4385, 4
      %v4388 = vshll.u32 %v4163, 16
      %v4390 = vrot.slane %v4388, 5
      %v4391 = vsel %vm283, %v4386, %v4390
      %v4392 = vshrl.u32 %v4163, 16
      %v4394 = vrot.slane %v4392, 4
      %v4395 = vor.u32 %v4394, %v4390
      %v4396 = vrot.slane %v4395, 4
      %v4398 = vshll.u32 %v4164, 16
      %v4400 = vrot.slane %v4398, 5
      %v4401 = vsel %vm283, %v4396, %v4400
      %v4403 = vshrl.u32 %v4165, 16
      %v4405 = vrot.slane %v4403, 4
      %v4406 = vshll.u32 %v4165, 16
      %v4408 = vrot.slane %v4406, 5
      %v4409 = vor.u32 %v4405, %v4408
      %v4410 = vrot.slane %v4409, 4
      %v4412 = vshll.u32 %v4166, 16
      %v4414 = vrot.slane %v4412, 5
      %v4415 = vsel %vm283, %v4410, %v4414
      %v4416 = vshrl.u32 %v4166, 16
      %v4418 = vrot.slane %v4416, 4
      %v4419 = vor.u32 %v4418, %v4414
      %v4420 = vrot.slane %v4419, 4
      %v4422 = vshll.u32 %v4167, 16
      %v4424 = vrot.slane %v4422, 5
      %v4425 = vsel %vm283, %v4420, %v4424
      %v4427 = vshrl.u32 %v4168, 16
      %v4429 = vrot.slane %v4427, 4
      %v4430 = vshll.u32 %v4168, 16
      %v4432 = vrot.slane %v4430, 5
      %v4433 = vor.u32 %v4429, %v4432
      %v4434 = vrot.slane %v4433, 4
      %v4436 = vshll.u32 %v4169, 16
      %v4438 = vrot.slane %v4436, 5
      %v4439 = vsel %vm283, %v4434, %v4438
      %v4440 = vshrl.u32 %v4169, 16
      %v4442 = vrot.slane %v4440, 4
      %v4443 = vor.u32 %v4442, %v4438
      %v4444 = vrot.slane %v4443, 4
      %v4446 = vshll.u32 %v4170, 16
      %v4448 = vrot.slane %v4446, 5
      %v4449 = vsel %vm283, %v4444, %v4448
      %v4451 = vshrl.u32 %v4171, 16
      %v4453 = vrot.slane %v4451, 4
      %v4454 = vshll.u32 %v4171, 16
      %v4456 = vrot.slane %v4454, 5
      %v4457 = vor.u32 %v4453, %v4456
      %v4458 = vrot.slane %v4457, 4
      %v4460 = vshll.u32 %v4172, 16
      %v4462 = vrot.slane %v4460, 5
      %v4463 = vsel %vm283, %v4458, %v4462
      %v4464 = vshrl.u32 %v4172, 16
      %v4466 = vrot.slane %v4464, 4
      %v4467 = vor.u32 %v4466, %v4462
      %v4468 = vrot.slane %v4467, 4
      %v4470 = vshll.u32 %v4173, 16
      %v4472 = vrot.slane %v4470, 5
      %v4473 = vsel %vm283, %v4468, %v4472
      %v4475 = vshrl.u32 %v4174, 16
      %v4477 = vrot.slane %v4475, 4
      %v4478 = vshll.u32 %v4174, 16
      %v4480 = vrot.slane %v4478, 5
      %v4481 = vor.u32 %v4477, %v4480
      %v4482 = vrot.slane %v4481, 4
      %v4484 = vshll.u32 %v4175, 16
      %v4486 = vrot.slane %v4484, 5
      %v4487 = vsel %vm283, %v4482, %v4486
      %v4488 = vshrl.u32 %v4175, 16
      %v4490 = vrot.slane %v4488, 4
      %v4491 = vor.u32 %v4490, %v4486
      %v4492 = vrot.slane %v4491, 4
      %v4494 = vshll.u32 %v4176, 16
      %v4496 = vrot.slane %v4494, 5
      %v4497 = vsel %vm283, %v4492, %v4496
      %v4499 = vshrl.u32 %v4177, 16
      %v4501 = vrot.slane %v4499, 4
      %v4502 = vshll.u32 %v4177, 16
      %v4504 = vrot.slane %v4502, 5
      %v4505 = vor.u32 %v4501, %v4504
      %v4506 = vrot.slane %v4505, 4
      %v4508 = vshll.u32 %v4178, 16
      %v4510 = vrot.slane %v4508, 5
      %v4511 = vsel %vm283, %v4506, %v4510
      %v4512 = vshrl.u32 %v4178, 16
      %v4514 = vrot.slane %v4512, 4
      %v4515 = vor.u32 %v4514, %v4510
      %v4516 = vrot.slane %v4515, 4
      %v4518 = vshll.u32 %v4179, 16
      %v4520 = vrot.slane %v4518, 5
      %v4521 = vsel %vm283, %v4516, %v4520
      %v4523 = vshrl.u32 %v4180, 16
      %v4525 = vrot.slane %v4523, 4
      %v4526 = vshll.u32 %v4180, 16
      %v4528 = vrot.slane %v4526, 5
      %v4529 = vor.u32 %v4525, %v4528
      %v4530 = vrot.slane %v4529, 4
      %v4532 = vshll.u32 %v4181, 16
      %v4534 = vrot.slane %v4532, 5
      %v4535 = vsel %vm283, %v4530, %v4534
      %v4536 = vshrl.u32 %v4181, 16
      %v4538 = vrot.slane %v4536, 4
      %v4539 = vor.u32 %v4538, %v4534
      %v4540 = vrot.slane %v4539, 4
      %v4542 = vshll.u32 %v4182, 16
      %v4544 = vrot.slane %v4542, 5
      %v4545 = vsel %vm283, %v4540, %v4544
      %v4547 = vshrl.u32 %v4183, 16
      %v4549 = vrot.slane %v4547, 4
      %v4550 = vshll.u32 %v4183, 16
      %v4552 = vrot.slane %v4550, 5
      %v4553 = vor.u32 %v4549, %v4552
      %v4554 = vrot.slane %v4553, 4
      %v4556 = vshll.u32 %v4184, 16
      %v4558 = vrot.slane %v4556, 5
      %v4559 = vsel %vm283, %v4554, %v4558
      %v4560 = vshrl.u32 %v4184, 16
      %v4562 = vrot.slane %v4560, 4
      %v4563 = vor.u32 %v4562, %v4558
      %v4564 = vrot.slane %v4563, 4
      %v4566 = vshll.u32 %v4185, 16
      %v4568 = vrot.slane %v4566, 5
      %v4569 = vsel %vm283, %v4564, %v4568
      %s4570 = scalar_lea.vmem %s3, 8
      %v4571 = vld [vmem:[%s4570] sm:$0x3]
      %v4572 = vunpack.c.l.b16 %v4199
      %v4573 = vunpack.c.l.b16 %v4209
      %v4574 = vunpack.c.l.b16 %v4223
      %v4575 = vunpack.c.l.b16 %v4233
      %v4576 = vunpack.c.l.b16 %v4247
      %v4577 = vunpack.c.l.b16 %v4257
      %v4578 = vunpack.c.l.b16 %v4271
      %v4579 = vunpack.c.l.b16 %v4281
      %v4580 = vunpack.c.l.b16 %v4295
      %v4581 = vunpack.c.l.b16 %v4305
      %v4582 = vunpack.c.l.b16 %v4319
      %v4583 = vunpack.c.l.b16 %v4329
      %v4584 = vunpack.c.l.b16 %v4343
      %v4585 = vunpack.c.l.b16 %v4353
      %v4586 = vunpack.c.l.b16 %v4367
      %v4587 = vunpack.c.l.b16 %v4377
      %v4588 = vunpack.c.l.b16 %v4391
      %v4589 = vunpack.c.l.b16 %v4401
      %v4590 = vunpack.c.l.b16 %v4415
      %v4591 = vunpack.c.l.b16 %v4425
      %v4592 = vunpack.c.l.b16 %v4439
      %v4593 = vunpack.c.l.b16 %v4449
      %v4594 = vunpack.c.l.b16 %v4463
      %v4595 = vunpack.c.l.b16 %v4473
      %v4596 = vunpack.c.l.b16 %v4487
      %v4597 = vunpack.c.l.b16 %v4497
      %v4598 = vunpack.c.l.b16 %v4511
      %v4599 = vunpack.c.l.b16 %v4521
      %v4600 = vunpack.c.l.b16 %v4535
      %v4601 = vunpack.c.l.b16 %v4545
      %v4602 = vunpack.c.l.b16 %v4559
      %v4603 = vunpack.c.l.b16 %v4569
      %v4604 = vpack.c.b16 %v4573, %v4572
      %v4605 = vpack.c.b16 %v4575, %v4574
      %v4606 = vpack.c.b16 %v4577, %v4576
      %v4607 = vpack.c.b16 %v4579, %v4578
      %v4608 = vpack.c.b16 %v4581, %v4580
      %v4609 = vpack.c.b16 %v4583, %v4582
      %v4610 = vpack.c.b16 %v4585, %v4584
      %v4611 = vpack.c.b16 %v4587, %v4586
      %v4612 = vpack.c.b16 %v4589, %v4588
      %v4613 = vpack.c.b16 %v4591, %v4590
      %v4614 = vpack.c.b16 %v4593, %v4592
      %v4615 = vpack.c.b16 %v4595, %v4594
      %v4616 = vpack.c.b16 %v4597, %v4596
      %v4617 = vpack.c.b16 %v4599, %v4598
      %v4618 = vpack.c.b16 %v4601, %v4600
      %v4619 = vpack.c.b16 %v4603, %v4602
      %v4621 = vsel %vm2817, %v4604, 0
      %v4624 = vsel %vm2817, %v4605, 0
      %v4627 = vsel %vm2817, %v4606, 0
      %v4630 = vsel %vm2817, %v4607, 0
      %v4633 = vsel %vm2817, %v4608, 0
      %v4636 = vsel %vm2817, %v4609, 0
      %v4639 = vsel %vm2817, %v4610, 0
      %v4642 = vsel %vm2817, %v4611, 0
      %v4645 = vsel %vm2817, %v4612, 0
      %v4648 = vsel %vm2817, %v4613, 0
      %v4651 = vsel %vm2817, %v4614, 0
      %v4654 = vsel %vm2817, %v4615, 0
      %v4657 = vsel %vm2817, %v4616, 0
      %v4660 = vsel %vm2817, %v4617, 0
      %v4663 = vsel %vm2817, %v4618, 0
      %v4666 = vsel %vm2817, %v4619, 0
      %v4669 = vsel %vm2866, %v4571, 0
      %4671 = vmatprep.subr.bf16.mxu0 0
      %4672 = vmatpush1.bf16.msra.mxu0 %v4669
      %4673 = vmatprep.subr.bf16.mxu0 0
      %4674 = vmatpush1.bf16.msra.mxu0 0
      %4675 = vmatprep.subr.bf16.mxu0 0
      %4676 = vmatpush1.bf16.msra.mxu0 0
      %4677 = vmatprep.subr.bf16.mxu0 0
      %4678 = vmatpush1.bf16.msra.mxu0 0
      %4679 = vmatprep.subr.bf16.mxu0 0
      %4680 = vmatpush1.bf16.msra.mxu0 0
      %4681 = vmatprep.subr.bf16.mxu0 0
      %4682 = vmatpush1.bf16.msra.mxu0 0
      %4683 = vmatprep.subr.bf16.mxu0 0
      %4684 = vmatpush1.bf16.msra.mxu0 0
      %4685 = vmatprep.subr.bf16.mxu0 0
      %4686 = vmatpush1.bf16.msra.mxu0 0
      %4687 = vmatprep.subr.bf16.mxu0 0
      %4688 = vmatpush1.bf16.msra.mxu0 0
      %4689 = vmatprep.subr.bf16.mxu0 0
      %4690 = vmatpush1.bf16.msra.mxu0 0
      %4691 = vmatprep.subr.bf16.mxu0 0
      %4692 = vmatpush1.bf16.msra.mxu0 0
      %4693 = vmatprep.subr.bf16.mxu0 0
      %4694 = vmatpush1.bf16.msra.mxu0 0
      %4695 = vmatprep.subr.bf16.mxu0 0
      %4696 = vmatpush1.bf16.msra.mxu0 0
      %4697 = vmatprep.subr.bf16.mxu0 0
      %4698 = vmatpush1.bf16.msra.mxu0 0
      %4699 = vmatprep.subr.bf16.mxu0 0
      %4700 = vmatpush1.bf16.msra.mxu0 0
      %4701 = vmatprep.subr.bf16.mxu0 0
      %4702 = vmatpush1.bf16.msra.mxu0 0
      %4703 = vmatprep.mubr.bf16.mxu0 0
      %4704 = vmatmul.mubr.bf16.gmra.mrb[0].mxu0 %v4621
      %v4705 = vpop.f32.mrb[0].mxu0
      %v4706 = vadd.f32 0.0, %v4705
      %v4707 = vpop.f32.mrb[0].mxu0
      %v4708 = vpop.f32.mrb[0].mxu0
      %v4709 = vadd.f32 0.0, %v4708
      %v4710 = vpop.f32.mrb[0].mxu0
      %4711 = vmatprep.mubr.bf16.mxu0 0
      %4712 = vmatmul.mubr.bf16.gmra.mrb[0].mxu0 %v4624
      %v4713 = vpop.f32.mrb[0].mxu0
      %v4714 = vadd.f32 0.0, %v4713
      %v4715 = vpop.f32.mrb[0].mxu0
      %v4716 = vpop.f32.mrb[0].mxu0
      %v4717 = vadd.f32 0.0, %v4716
      %v4718 = vpop.f32.mrb[0].mxu0
      %4719 = vmatprep.mubr.bf16.mxu0 0
      %4720 = vmatmul.mubr.bf16.gmra.mrb[0].mxu0 %v4627
      %v4721 = vpop.f32.mrb[0].mxu0
      %v4722 = vadd.f32 0.0, %v4721
      %v4723 = vpop.f32.mrb[0].mxu0
      %v4724 = vpop.f32.mrb[0].mxu0
      %v4725 = vadd.f32 0.0, %v4724
      %v4726 = vpop.f32.mrb[0].mxu0
      %4727 = vmatprep.mubr.bf16.mxu0 0
      %4728 = vmatmul.mubr.bf16.gmra.mrb[0].mxu0 %v4630
      %v4729 = vpop.f32.mrb[0].mxu0
      %v4730 = vadd.f32 0.0, %v4729
      %v4731 = vpop.f32.mrb[0].mxu0
      %v4732 = vpop.f32.mrb[0].mxu0
      %v4733 = vadd.f32 0.0, %v4732
      %v4734 = vpop.f32.mrb[0].mxu0
      %4735 = vmatprep.mubr.bf16.mxu0 0
      %4736 = vmatmul.mubr.bf16.gmra.mrb[0].mxu0 %v4633
      %v4737 = vpop.f32.mrb[0].mxu0
      %v4738 = vadd.f32 0.0, %v4737
      %v4739 = vpop.f32.mrb[0].mxu0
      %v4740 = vpop.f32.mrb[0].mxu0
      %v4741 = vadd.f32 0.0, %v4740
      %v4742 = vpop.f32.mrb[0].mxu0
      %4743 = vmatprep.mubr.bf16.mxu0 0
      %4744 = vmatmul.mubr.bf16.gmra.mrb[0].mxu0 %v4636
      %v4745 = vpop.f32.mrb[0].mxu0
      %v4746 = vadd.f32 0.0, %v4745
      %v4747 = vpop.f32.mrb[0].mxu0
      %v4748 = vpop.f32.mrb[0].mxu0
      %v4749 = vadd.f32 0.0, %v4748
      %v4750 = vpop.f32.mrb[0].mxu0
      %4751 = vmatprep.mubr.bf16.mxu0 0
      %4752 = vmatmul.mubr.bf16.gmra.mrb[0].mxu0 %v4639
      %v4753 = vpop.f32.mrb[0].mxu0
      %v4754 = vadd.f32 0.0, %v4753
      %v4755 = vpop.f32.mrb[0].mxu0
      %v4756 = vpop.f32.mrb[0].mxu0
      %v4757 = vadd.f32 0.0, %v4756
      %v4758 = vpop.f32.mrb[0].mxu0
      %4759 = vmatprep.mubr.bf16.mxu0 0
      %4760 = vmatmul.mubr.bf16.gmra.mrb[0].mxu0 %v4642
      %v4761 = vpop.f32.mrb[0].mxu0
      %v4762 = vadd.f32 0.0, %v4761
      %v4763 = vpop.f32.mrb[0].mxu0
      %v4764 = vpop.f32.mrb[0].mxu0
      %v4765 = vadd.f32 0.0, %v4764
      %v4766 = vpop.f32.mrb[0].mxu0
      %4767 = vmatprep.mubr.bf16.mxu0 0
      %4768 = vmatmul.mubr.bf16.gmra.mrb[0].mxu0 %v4645
      %v4769 = vpop.f32.mrb[0].mxu0
      %v4770 = vadd.f32 0.0, %v4769
      %v4771 = vpop.f32.mrb[0].mxu0
      %v4772 = vpop.f32.mrb[0].mxu0
      %v4773 = vadd.f32 0.0, %v4772
      %v4774 = vpop.f32.mrb[0].mxu0
      %4775 = vmatprep.mubr.bf16.mxu0 0
      %4776 = vmatmul.mubr.bf16.gmra.mrb[0].mxu0 %v4648
      %v4777 = vpop.f32.mrb[0].mxu0
      %v4778 = vadd.f32 0.0, %v4777
      %v4779 = vpop.f32.mrb[0].mxu0
      %v4780 = vpop.f32.mrb[0].mxu0
      %v4781 = vadd.f32 0.0, %v4780
      %v4782 = vpop.f32.mrb[0].mxu0
      %4783 = vmatprep.mubr.bf16.mxu0 0
      %4784 = vmatmul.mubr.bf16.gmra.mrb[0].mxu0 %v4651
      %v4785 = vpop.f32.mrb[0].mxu0
      %v4786 = vadd.f32 0.0, %v4785
      %v4787 = vpop.f32.mrb[0].mxu0
      %v4788 = vpop.f32.mrb[0].mxu0
      %v4789 = vadd.f32 0.0, %v4788
      %v4790 = vpop.f32.mrb[0].mxu0
      %4791 = vmatprep.mubr.bf16.mxu0 0
      %4792 = vmatmul.mubr.bf16.gmra.mrb[0].mxu0 %v4654
      %v4793 = vpop.f32.mrb[0].mxu0
      %v4794 = vadd.f32 0.0, %v4793
      %v4795 = vpop.f32.mrb[0].mxu0
      %v4796 = vpop.f32.mrb[0].mxu0
      %v4797 = vadd.f32 0.0, %v4796
      %v4798 = vpop.f32.mrb[0].mxu0
      %4799 = vmatprep.mubr.bf16.mxu0 0
      %4800 = vmatmul.mubr.bf16.gmra.mrb[0].mxu0 %v4657
      %v4801 = vpop.f32.mrb[0].mxu0
      %v4802 = vadd.f32 0.0, %v4801
      %v4803 = vpop.f32.mrb[0].mxu0
      %v4804 = vpop.f32.mrb[0].mxu0
      %v4805 = vadd.f32 0.0, %v4804
      %v4806 = vpop.f32.mrb[0].mxu0
      %4807 = vmatprep.mubr.bf16.mxu0 0
      %4808 = vmatmul.mubr.bf16.gmra.mrb[0].mxu0 %v4660
      %v4809 = vpop.f32.mrb[0].mxu0
      %v4810 = vadd.f32 0.0, %v4809
      %v4811 = vpop.f32.mrb[0].mxu0
      %v4812 = vpop.f32.mrb[0].mxu0
      %v4813 = vadd.f32 0.0, %v4812
      %v4814 = vpop.f32.mrb[0].mxu0
      %4815 = vmatprep.mubr.bf16.mxu0 0
      %4816 = vmatmul.mubr.bf16.gmra.mrb[0].mxu0 %v4663
      %v4817 = vpop.f32.mrb[0].mxu0
      %v4818 = vadd.f32 0.0, %v4817
      %v4819 = vpop.f32.mrb[0].mxu0
      %v4820 = vpop.f32.mrb[0].mxu0
      %v4821 = vadd.f32 0.0, %v4820
      %v4822 = vpop.f32.mrb[0].mxu0
      %4823 = vmatprep.mubr.bf16.mxu0 0
      %4824 = vmatmul.mubr.bf16.gmra.mrb[0].mxu0 %v4666
      %v4825 = vpop.f32.mrb[0].mxu0
      %v4826 = vadd.f32 0.0, %v4825
      %v4827 = vpop.f32.mrb[0].mxu0
      %v4828 = vpop.f32.mrb[0].mxu0
      %v4829 = vadd.f32 0.0, %v4828
      %v4830 = vpop.f32.mrb[0].mxu0
      %4831 = vdwg.mxu0
      %v4832 = vadd.f32 %v4106, %v4706
      %v4833 = vadd.f32 %v4107, %v4709
      %v4834 = vadd.f32 %v4108, %v4714
      %v4835 = vadd.f32 %v4109, %v4717
      %v4836 = vadd.f32 %v4110, %v4722
      %v4837 = vadd.f32 %v4111, %v4725
      %v4838 = vadd.f32 %v4112, %v4730
      %v4839 = vadd.f32 %v4113, %v4733
      %v4840 = vadd.f32 %v4114, %v4738
      %v4841 = vadd.f32 %v4115, %v4741
      %v4842 = vadd.f32 %v4116, %v4746
      %v4843 = vadd.f32 %v4117, %v4749
      %v4844 = vadd.f32 %v4118, %v4754
      %v4845 = vadd.f32 %v4119, %v4757
      %v4846 = vadd.f32 %v4120, %v4762
      %v4847 = vadd.f32 %v4121, %v4765
      %v4848 = vadd.f32 %v4122, %v4770
      %v4849 = vadd.f32 %v4123, %v4773
      %v4850 = vadd.f32 %v4124, %v4778
      %v4851 = vadd.f32 %v4125, %v4781
      %v4852 = vadd.f32 %v4126, %v4786
      %v4853 = vadd.f32 %v4127, %v4789
      %v4854 = vadd.f32 %v4128, %v4794
      %v4855 = vadd.f32 %v4129, %v4797
      %v4856 = vadd.f32 %v4130, %v4802
      %v4857 = vadd.f32 %v4131, %v4805
      %v4858 = vadd.f32 %v4132, %v4810
      %v4859 = vadd.f32 %v4133, %v4813
      %v4860 = vadd.f32 %v4134, %v4818
      %v4861 = vadd.f32 %v4135, %v4821
      %v4862 = vadd.f32 %v4136, %v4826
      %v4863 = vadd.f32 %v4137, %v4829
      %v4864 = vld [vmem:[%s2216] sm:$0xe]
      %v4865 = vld [vmem:[%s2216 + $0xc] sm:$0xe]
      %v4866 = vld [vmem:[%s2216 + $0x18] sm:$0xe]
      %v4867 = vld [vmem:[%s2216 + $0x24] sm:$0xe]
      %v4868 = vld [vmem:[%s2216 + $0x30] sm:$0xe]
      %v4869 = vld [vmem:[%s2216 + $0x3c] sm:$0xe]
      %v4870 = vld [vmem:[%s2216 + $0x48] sm:$0xe]
      %v4871 = vld [vmem:[%s2216 + $0x54] sm:$0xe]
      %v4872 = vld [vmem:[%s2216 + $0x60] sm:$0xe]
      %v4873 = vld [vmem:[%s2216 + $0x6c] sm:$0xe]
      %v4874 = vld [vmem:[%s2216 + $0x78] sm:$0xe]
      %v4875 = vld [vmem:[%s2216 + $0x84] sm:$0xe]
      %v4876 = vld [vmem:[%s2216 + $0x90] sm:$0xe]
      %v4877 = vld [vmem:[%s2216 + $0x9c] sm:$0xe]
      %v4878 = vld [vmem:[%s2216 + $0xa8] sm:$0xe]
      %v4879 = vld [vmem:[%s2216 + $0xb4] sm:$0xe]
      %v4928 = vrot.slane %v4864, 5
      %v4929 = vrot.slane %v4928, 4
      %v4930 = vrot.slane %v4139, 5
      %v4931 = vsel %vm3373, %v4929, %v4930
      %v4932 = vrot.slane %v4930, 4
      %v4933 = vrot.slane %v4140, 5
      %v4934 = vsel %vm3373, %v4932, %v4933
      %v4935 = vrot.slane %v4865, 5
      %v4936 = vrot.slane %v4935, 4
      %v4937 = vrot.slane %v4142, 5
      %v4938 = vsel %vm3373, %v4936, %v4937
      %v4939 = vrot.slane %v4937, 4
      %v4940 = vrot.slane %v4143, 5
      %v4941 = vsel %vm3373, %v4939, %v4940
      %v4942 = vrot.slane %v4866, 5
      %v4943 = vrot.slane %v4942, 4
      %v4944 = vrot.slane %v4145, 5
      %v4945 = vsel %vm3373, %v4943, %v4944
      %v4946 = vrot.slane %v4944, 4
      %v4947 = vrot.slane %v4146, 5
      %v4948 = vsel %vm3373, %v4946, %v4947
      %v4949 = vrot.slane %v4867, 5
      %v4950 = vrot.slane %v4949, 4
      %v4951 = vrot.slane %v4148, 5
      %v4952 = vsel %vm3373, %v4950, %v4951
      %v4953 = vrot.slane %v4951, 4
      %v4954 = vrot.slane %v4149, 5
      %v4955 = vsel %vm3373, %v4953, %v4954
      %v4956 = vrot.slane %v4868, 5
      %v4957 = vrot.slane %v4956, 4
      %v4958 = vrot.slane %v4151, 5
      %v4959 = vsel %vm3373, %v4957, %v4958
      %v4960 = vrot.slane %v4958, 4
      %v4961 = vrot.slane %v4152, 5
      %v4962 = vsel %vm3373, %v4960, %v4961
      %v4963 = vrot.slane %v4869, 5
      %v4964 = vrot.slane %v4963, 4
      %v4965 = vrot.slane %v4154, 5
      %v4966 = vsel %vm3373, %v4964, %v4965
      %v4967 = vrot.slane %v4965, 4
      %v4968 = vrot.slane %v4155, 5
      %v4969 = vsel %vm3373, %v4967, %v4968
      %v4970 = vrot.slane %v4870, 5
      %v4971 = vrot.slane %v4970, 4
      %v4972 = vrot.slane %v4157, 5
      %v4973 = vsel %vm3373, %v4971, %v4972
      %v4974 = vrot.slane %v4972, 4
      %v4975 = vrot.slane %v4158, 5
      %v4976 = vsel %vm3373, %v4974, %v4975
      %v4977 = vrot.slane %v4871, 5
      %v4978 = vrot.slane %v4977, 4
      %v4979 = vrot.slane %v4160, 5
      %v4980 = vsel %vm3373, %v4978, %v4979
      %v4981 = vrot.slane %v4979, 4
      %v4982 = vrot.slane %v4161, 5
      %v4983 = vsel %vm3373, %v4981, %v4982
      %v4984 = vrot.slane %v4872, 5
      %v4985 = vrot.slane %v4984, 4
      %v4986 = vrot.slane %v4163, 5
      %v4987 = vsel %vm3373, %v4985, %v4986
      %v4988 = vrot.slane %v4986, 4
      %v4989 = vrot.slane %v4164, 5
      %v4990 = vsel %vm3373, %v4988, %v4989
      %v4991 = vrot.slane %v4873, 5
      %v4992 = vrot.slane %v4991, 4
      %v4993 = vrot.slane %v4166, 5
      %v4994 = vsel %vm3373, %v4992, %v4993
      %v4995 = vrot.slane %v4993, 4
      %v4996 = vrot.slane %v4167, 5
      %v4997 = vsel %vm3373, %v4995, %v4996
      %v4998 = vrot.slane %v4874, 5
      %v4999 = vrot.slane %v4998, 4
      %v5000 = vrot.slane %v4169, 5
      %v5001 = vsel %vm3373, %v4999, %v5000
      %v5002 = vrot.slane %v5000, 4
      %v5003 = vrot.slane %v4170, 5
      %v5004 = vsel %vm3373, %v5002, %v5003
      %v5005 = vrot.slane %v4875, 5
      %v5006 = vrot.slane %v5005, 4
      %v5007 = vrot.slane %v4172, 5
      %v5008 = vsel %vm3373, %v5006, %v5007
      %v5009 = vrot.slane %v5007, 4
      %v5010 = vrot.slane %v4173, 5
      %v5011 = vsel %vm3373, %v5009, %v5010
      %v5012 = vrot.slane %v4876, 5
      %v5013 = vrot.slane %v5012, 4
      %v5014 = vrot.slane %v4175, 5
      %v5015 = vsel %vm3373, %v5013, %v5014
      %v5016 = vrot.slane %v5014, 4
      %v5017 = vrot.slane %v4176, 5
      %v5018 = vsel %vm3373, %v5016, %v5017
      %v5019 = vrot.slane %v4877, 5
      %v5020 = vrot.slane %v5019, 4
      %v5021 = vrot.slane %v4178, 5
      %v5022 = vsel %vm3373, %v5020, %v5021
      %v5023 = vrot.slane %v5021, 4
      %v5024 = vrot.slane %v4179, 5
      %v5025 = vsel %vm3373, %v5023, %v5024
      %v5026 = vrot.slane %v4878, 5
      %v5027 = vrot.slane %v5026, 4
      %v5028 = vrot.slane %v4181, 5
      %v5029 = vsel %vm3373, %v5027, %v5028
      %v5030 = vrot.slane %v5028, 4
      %v5031 = vrot.slane %v4182, 5
      %v5032 = vsel %vm3373, %v5030, %v5031
      %v5033 = vrot.slane %v4879, 5
      %v5034 = vrot.slane %v5033, 4
      %v5035 = vrot.slane %v4184, 5
      %v5036 = vsel %vm3373, %v5034, %v5035
      %v5037 = vrot.slane %v5035, 4
      %v5038 = vrot.slane %v4185, 5
      %v5039 = vsel %vm3373, %v5037, %v5038
      %s5040 = scalar_lea.vmem %s3, 10
      %v5041 = vld [vmem:[%s5040] sm:$0x3]
      %v5042 = vunpack.c.l.b16 %v4931
      %v5043 = vunpack.c.l.b16 %v4934
      %v5044 = vunpack.c.l.b16 %v4938
      %v5045 = vunpack.c.l.b16 %v4941
      %v5046 = vunpack.c.l.b16 %v4945
      %v5047 = vunpack.c.l.b16 %v4948
      %v5048 = vunpack.c.l.b16 %v4952
      %v5049 = vunpack.c.l.b16 %v4955
      %v5050 = vunpack.c.l.b16 %v4959
      %v5051 = vunpack.c.l.b16 %v4962
      %v5052 = vunpack.c.l.b16 %v4966
      %v5053 = vunpack.c.l.b16 %v4969
      %v5054 = vunpack.c.l.b16 %v4973
      %v5055 = vunpack.c.l.b16 %v4976
      %v5056 = vunpack.c.l.b16 %v4980
      %v5057 = vunpack.c.l.b16 %v4983
      %v5058 = vunpack.c.l.b16 %v4987
      %v5059 = vunpack.c.l.b16 %v4990
      %v5060 = vunpack.c.l.b16 %v4994
      %v5061 = vunpack.c.l.b16 %v4997
      %v5062 = vunpack.c.l.b16 %v5001
      %v5063 = vunpack.c.l.b16 %v5004
      %v5064 = vunpack.c.l.b16 %v5008
      %v5065 = vunpack.c.l.b16 %v5011
      %v5066 = vunpack.c.l.b16 %v5015
      %v5067 = vunpack.c.l.b16 %v5018
      %v5068 = vunpack.c.l.b16 %v5022
      %v5069 = vunpack.c.l.b16 %v5025
      %v5070 = vunpack.c.l.b16 %v5029
      %v5071 = vunpack.c.l.b16 %v5032
      %v5072 = vunpack.c.l.b16 %v5036
      %v5073 = vunpack.c.l.b16 %v5039
      %v5074 = vpack.c.b16 %v5043, %v5042
      %v5075 = vpack.c.b16 %v5045, %v5044
      %v5076 = vpack.c.b16 %v5047, %v5046
      %v5077 = vpack.c.b16 %v5049, %v5048
      %v5078 = vpack.c.b16 %v5051, %v5050
      %v5079 = vpack.c.b16 %v5053, %v5052
      %v5080 = vpack.c.b16 %v5055, %v5054
      %v5081 = vpack.c.b16 %v5057, %v5056
      %v5082 = vpack.c.b16 %v5059, %v5058
      %v5083 = vpack.c.b16 %v5061, %v5060
      %v5084 = vpack.c.b16 %v5063, %v5062
      %v5085 = vpack.c.b16 %v5065, %v5064
      %v5086 = vpack.c.b16 %v5067, %v5066
      %v5087 = vpack.c.b16 %v5069, %v5068
      %v5088 = vpack.c.b16 %v5071, %v5070
      %v5089 = vpack.c.b16 %v5073, %v5072
      %v5091 = vsel %vm2817, %v5074, 0
      %v5094 = vsel %vm2817, %v5075, 0
      %v5097 = vsel %vm2817, %v5076, 0
      %v5100 = vsel %vm2817, %v5077, 0
      %v5103 = vsel %vm2817, %v5078, 0
      %v5106 = vsel %vm2817, %v5079, 0
      %v5109 = vsel %vm2817, %v5080, 0
      %v5112 = vsel %vm2817, %v5081, 0
      %v5115 = vsel %vm2817, %v5082, 0
      %v5118 = vsel %vm2817, %v5083, 0
      %v5121 = vsel %vm2817, %v5084, 0
      %v5124 = vsel %vm2817, %v5085, 0
      %v5127 = vsel %vm2817, %v5086, 0
      %v5130 = vsel %vm2817, %v5087, 0
      %v5133 = vsel %vm2817, %v5088, 0
      %v5136 = vsel %vm2817, %v5089, 0
      %v5139 = vsel %vm2866, %v5041, 0
      %5141 = vmatprep.subr.bf16.mxu0 0
      %5142 = vmatpush1.bf16.msra.mxu0 %v5139
      %5143 = vmatprep.subr.bf16.mxu0 0
      %5144 = vmatpush1.bf16.msra.mxu0 0
      %5145 = vmatprep.subr.bf16.mxu0 0
      %5146 = vmatpush1.bf16.msra.mxu0 0
      %5147 = vmatprep.subr.bf16.mxu0 0
      %5148 = vmatpush1.bf16.msra.mxu0 0
      %5149 = vmatprep.subr.bf16.mxu0 0
      %5150 = vmatpush1.bf16.msra.mxu0 0
      %5151 = vmatprep.subr.bf16.mxu0 0
      %5152 = vmatpush1.bf16.msra.mxu0 0
      %5153 = vmatprep.subr.bf16.mxu0 0
      %5154 = vmatpush1.bf16.msra.mxu0 0
      %5155 = vmatprep.subr.bf16.mxu0 0
      %5156 = vmatpush1.bf16.msra.mxu0 0
      %5157 = vmatprep.subr.bf16.mxu0 0
      %5158 = vmatpush1.bf16.msra.mxu0 0
      %5159 = vmatprep.subr.bf16.mxu0 0
      %5160 = vmatpush1.bf16.msra.mxu0 0
      %5161 = vmatprep.subr.bf16.mxu0 0
      %5162 = vmatpush1.bf16.msra.mxu0 0
      %5163 = vmatprep.subr.bf16.mxu0 0
      %5164 = vmatpush1.bf16.msra.mxu0 0
      %5165 = vmatprep.subr.bf16.mxu0 0
      %5166 = vmatpush1.bf16.msra.mxu0 0
      %5167 = vmatprep.subr.bf16.mxu0 0
      %5168 = vmatpush1.bf16.msra.mxu0 0
      %5169 = vmatprep.subr.bf16.mxu0 0
      %5170 = vmatpush1.bf16.msra.mxu0 0
      %5171 = vmatprep.subr.bf16.mxu0 0
      %5172 = vmatpush1.bf16.msra.mxu0 0
      %5173 = vmatprep.mubr.bf16.mxu0 0
      %5174 = vmatmul.mubr.bf16.gmra.mrb[0].mxu0 %v5091
      %v5175 = vpop.f32.mrb[0].mxu0
      %v5176 = vadd.f32 0.0, %v5175
      %v5177 = vpop.f32.mrb[0].mxu0
      %v5178 = vpop.f32.mrb[0].mxu0
      %v5179 = vadd.f32 0.0, %v5178
      %v5180 = vpop.f32.mrb[0].mxu0
      %5181 = vmatprep.mubr.bf16.mxu0 0
      %5182 = vmatmul.mubr.bf16.gmra.mrb[0].mxu0 %v5094
      %v5183 = vpop.f32.mrb[0].mxu0
      %v5184 = vadd.f32 0.0, %v5183
      %v5185 = vpop.f32.mrb[0].mxu0
      %v5186 = vpop.f32.mrb[0].mxu0
      %v5187 = vadd.f32 0.0, %v5186
      %v5188 = vpop.f32.mrb[0].mxu0
      %5189 = vmatprep.mubr.bf16.mxu0 0
      %5190 = vmatmul.mubr.bf16.gmra.mrb[0].mxu0 %v5097
      %v5191 = vpop.f32.mrb[0].mxu0
      %v5192 = vadd.f32 0.0, %v5191
      %v5193 = vpop.f32.mrb[0].mxu0
      %v5194 = vpop.f32.mrb[0].mxu0
      %v5195 = vadd.f32 0.0, %v5194
      %v5196 = vpop.f32.mrb[0].mxu0
      %5197 = vmatprep.mubr.bf16.mxu0 0
      %5198 = vmatmul.mubr.bf16.gmra.mrb[0].mxu0 %v5100
      %v5199 = vpop.f32.mrb[0].mxu0
      %v5200 = vadd.f32 0.0, %v5199
      %v5201 = vpop.f32.mrb[0].mxu0
      %v5202 = vpop.f32.mrb[0].mxu0
      %v5203 = vadd.f32 0.0, %v5202
      %v5204 = vpop.f32.mrb[0].mxu0
      %5205 = vmatprep.mubr.bf16.mxu0 0
      %5206 = vmatmul.mubr.bf16.gmra.mrb[0].mxu0 %v5103
      %v5207 = vpop.f32.mrb[0].mxu0
      %v5208 = vadd.f32 0.0, %v5207
      %v5209 = vpop.f32.mrb[0].mxu0
      %v5210 = vpop.f32.mrb[0].mxu0
      %v5211 = vadd.f32 0.0, %v5210
      %v5212 = vpop.f32.mrb[0].mxu0
      %5213 = vmatprep.mubr.bf16.mxu0 0
      %5214 = vmatmul.mubr.bf16.gmra.mrb[0].mxu0 %v5106
      %v5215 = vpop.f32.mrb[0].mxu0
      %v5216 = vadd.f32 0.0, %v5215
      %v5217 = vpop.f32.mrb[0].mxu0
      %v5218 = vpop.f32.mrb[0].mxu0
      %v5219 = vadd.f32 0.0, %v5218
      %v5220 = vpop.f32.mrb[0].mxu0
      %5221 = vmatprep.mubr.bf16.mxu0 0
      %5222 = vmatmul.mubr.bf16.gmra.mrb[0].mxu0 %v5109
      %v5223 = vpop.f32.mrb[0].mxu0
      %v5224 = vadd.f32 0.0, %v5223
      %v5225 = vpop.f32.mrb[0].mxu0
      %v5226 = vpop.f32.mrb[0].mxu0
      %v5227 = vadd.f32 0.0, %v5226
      %v5228 = vpop.f32.mrb[0].mxu0
      %5229 = vmatprep.mubr.bf16.mxu0 0
      %5230 = vmatmul.mubr.bf16.gmra.mrb[0].mxu0 %v5112
      %v5231 = vpop.f32.mrb[0].mxu0
      %v5232 = vadd.f32 0.0, %v5231
      %v5233 = vpop.f32.mrb[0].mxu0
      %v5234 = vpop.f32.mrb[0].mxu0
      %v5235 = vadd.f32 0.0, %v5234
      %v5236 = vpop.f32.mrb[0].mxu0
      %5237 = vmatprep.mubr.bf16.mxu0 0
      %5238 = vmatmul.mubr.bf16.gmra.mrb[0].mxu0 %v5115
      %v5239 = vpop.f32.mrb[0].mxu0
      %v5240 = vadd.f32 0.0, %v5239
      %v5241 = vpop.f32.mrb[0].mxu0
      %v5242 = vpop.f32.mrb[0].mxu0
      %v5243 = vadd.f32 0.0, %v5242
      %v5244 = vpop.f32.mrb[0].mxu0
      %5245 = vmatprep.mubr.bf16.mxu0 0
      %5246 = vmatmul.mubr.bf16.gmra.mrb[0].mxu0 %v5118
      %v5247 = vpop.f32.mrb[0].mxu0
      %v5248 = vadd.f32 0.0, %v5247
      %v5249 = vpop.f32.mrb[0].mxu0
      %v5250 = vpop.f32.mrb[0].mxu0
      %v5251 = vadd.f32 0.0, %v5250
      %v5252 = vpop.f32.mrb[0].mxu0
      %5253 = vmatprep.mubr.bf16.mxu0 0
      %5254 = vmatmul.mubr.bf16.gmra.mrb[0].mxu0 %v5121
      %v5255 = vpop.f32.mrb[0].mxu0
      %v5256 = vadd.f32 0.0, %v5255
      %v5257 = vpop.f32.mrb[0].mxu0
      %v5258 = vpop.f32.mrb[0].mxu0
      %v5259 = vadd.f32 0.0, %v5258
      %v5260 = vpop.f32.mrb[0].mxu0
      %5261 = vmatprep.mubr.bf16.mxu0 0
      %5262 = vmatmul.mubr.bf16.gmra.mrb[0].mxu0 %v5124
      %v5263 = vpop.f32.mrb[0].mxu0
      %v5264 = vadd.f32 0.0, %v5263
      %v5265 = vpop.f32.mrb[0].mxu0
      %v5266 = vpop.f32.mrb[0].mxu0
      %v5267 = vadd.f32 0.0, %v5266
      %v5268 = vpop.f32.mrb[0].mxu0
      %5269 = vmatprep.mubr.bf16.mxu0 0
      %5270 = vmatmul.mubr.bf16.gmra.mrb[0].mxu0 %v5127
      %v5271 = vpop.f32.mrb[0].mxu0
      %v5272 = vadd.f32 0.0, %v5271
      %v5273 = vpop.f32.mrb[0].mxu0
      %v5274 = vpop.f32.mrb[0].mxu0
      %v5275 = vadd.f32 0.0, %v5274
      %v5276 = vpop.f32.mrb[0].mxu0
      %5277 = vmatprep.mubr.bf16.mxu0 0
      %5278 = vmatmul.mubr.bf16.gmra.mrb[0].mxu0 %v5130
      %v5279 = vpop.f32.mrb[0].mxu0
      %v5280 = vadd.f32 0.0, %v5279
      %v5281 = vpop.f32.mrb[0].mxu0
      %v5282 = vpop.f32.mrb[0].mxu0
      %v5283 = vadd.f32 0.0, %v5282
      %v5284 = vpop.f32.mrb[0].mxu0
      %5285 = vmatprep.mubr.bf16.mxu0 0
      %5286 = vmatmul.mubr.bf16.gmra.mrb[0].mxu0 %v5133
      %v5287 = vpop.f32.mrb[0].mxu0
      %v5288 = vadd.f32 0.0, %v5287
      %v5289 = vpop.f32.mrb[0].mxu0
      %v5290 = vpop.f32.mrb[0].mxu0
      %v5291 = vadd.f32 0.0, %v5290
      %v5292 = vpop.f32.mrb[0].mxu0
      %5293 = vmatprep.mubr.bf16.mxu0 0
      %5294 = vmatmul.mubr.bf16.gmra.mrb[0].mxu0 %v5136
      %v5295 = vpop.f32.mrb[0].mxu0
      %v5296 = vadd.f32 0.0, %v5295
      %v5297 = vpop.f32.mrb[0].mxu0
      %v5298 = vpop.f32.mrb[0].mxu0
      %v5299 = vadd.f32 0.0, %v5298
      %v5300 = vpop.f32.mrb[0].mxu0
      %5301 = vdwg.mxu0
      %v5302 = vadd.f32 %v4832, %v5176
      %v5303 = vadd.f32 %v4833, %v5179
      %v5304 = vadd.f32 %v4834, %v5184
      %v5305 = vadd.f32 %v4835, %v5187
      %v5306 = vadd.f32 %v4836, %v5192
      %v5307 = vadd.f32 %v4837, %v5195
      %v5308 = vadd.f32 %v4838, %v5200
      %v5309 = vadd.f32 %v4839, %v5203
      %v5310 = vadd.f32 %v4840, %v5208
      %v5311 = vadd.f32 %v4841, %v5211
      %v5312 = vadd.f32 %v4842, %v5216
      %v5313 = vadd.f32 %v4843, %v5219
      %v5314 = vadd.f32 %v4844, %v5224
      %v5315 = vadd.f32 %v4845, %v5227
      %v5316 = vadd.f32 %v4846, %v5232
      %v5317 = vadd.f32 %v4847, %v5235
      %v5318 = vadd.f32 %v4848, %v5240
      %v5319 = vadd.f32 %v4849, %v5243
      %v5320 = vadd.f32 %v4850, %v5248
      %v5321 = vadd.f32 %v4851, %v5251
      %v5322 = vadd.f32 %v4852, %v5256
      %v5323 = vadd.f32 %v4853, %v5259
      %v5324 = vadd.f32 %v4854, %v5264
      %v5325 = vadd.f32 %v4855, %v5267
      %v5326 = vadd.f32 %v4856, %v5272
      %v5327 = vadd.f32 %v4857, %v5275
      %v5328 = vadd.f32 %v4858, %v5280
      %v5329 = vadd.f32 %v4859, %v5283
      %v5330 = vadd.f32 %v4860, %v5288
      %v5331 = vadd.f32 %v4861, %v5291
      %v5332 = vadd.f32 %v4862, %v5296
      %v5333 = vadd.f32 %v4863, %v5299
      %s5334 = scalar_lea.vmem [#allocation2], 24
      %v5335 = vld [vmem:[%s5334] sm:$0xf]
      %v5336 = vld [vmem:[%s5334 + $0x4] sm:$0xf]
      %v5337 = vld [vmem:[%s5334 + $0xc] sm:$0xf]
      %v5338 = vld [vmem:[%s5334 + $0x10] sm:$0xf]
      %v5339 = vld [vmem:[%s5334 + $0x18] sm:$0xf]
      %v5340 = vld [vmem:[%s5334 + $0x1c] sm:$0xf]
      %v5341 = vld [vmem:[%s5334 + $0x24] sm:$0xf]
      %v5342 = vld [vmem:[%s5334 + $0x28] sm:$0xf]
      %v5343 = vld [vmem:[%s5334 + $0x30] sm:$0xf]
      %v5344 = vld [vmem:[%s5334 + $0x34] sm:$0xf]
      %v5345 = vld [vmem:[%s5334 + $0x3c] sm:$0xf]
      %v5346 = vld [vmem:[%s5334 + $0x40] sm:$0xf]
      %v5347 = vld [vmem:[%s5334 + $0x48] sm:$0xf]
      %v5348 = vld [vmem:[%s5334 + $0x4c] sm:$0xf]
      %v5349 = vld [vmem:[%s5334 + $0x54] sm:$0xf]
      %v5350 = vld [vmem:[%s5334 + $0x58] sm:$0xf]
      %v5351 = vld [vmem:[%s5334 + $0x60] sm:$0xf]
      %v5352 = vld [vmem:[%s5334 + $0x64] sm:$0xf]
      %v5353 = vld [vmem:[%s5334 + $0x6c] sm:$0xf]
      %v5354 = vld [vmem:[%s5334 + $0x70] sm:$0xf]
      %v5355 = vld [vmem:[%s5334 + $0x78] sm:$0xf]
      %v5356 = vld [vmem:[%s5334 + $0x7c] sm:$0xf]
      %v5357 = vld [vmem:[%s5334 + $0x84] sm:$0xf]
      %v5358 = vld [vmem:[%s5334 + $0x88] sm:$0xf]
      %v5359 = vld [vmem:[%s5334 + $0x90] sm:$0xf]
      %v5360 = vld [vmem:[%s5334 + $0x94] sm:$0xf]
      %v5361 = vld [vmem:[%s5334 + $0x9c] sm:$0xf]
      %v5362 = vld [vmem:[%s5334 + $0xa0] sm:$0xf]
      %v5363 = vld [vmem:[%s5334 + $0xa8] sm:$0xf]
      %v5364 = vld [vmem:[%s5334 + $0xac] sm:$0xf]
      %v5365 = vld [vmem:[%s5334 + $0xb4] sm:$0xf]
      %v5366 = vld [vmem:[%s5334 + $0xb8] sm:$0xf]
      %s5367 = scalar_lea.vmem %s3, 12
      %v5368 = vld [vmem:[%s5367] sm:$0x3]
      %v5401 = vunpack.c.l.b16 %v5335
      %v5402 = vunpack.c.l.b16 %v5336
      %v5403 = vunpack.c.l.b16 %v5337
      %v5404 = vunpack.c.l.b16 %v5338
      %v5405 = vunpack.c.l.b16 %v5339
      %v5406 = vunpack.c.l.b16 %v5340
      %v5407 = vunpack.c.l.b16 %v5341
      %v5408 = vunpack.c.l.b16 %v5342
      %v5409 = vunpack.c.l.b16 %v5343
      %v5410 = vunpack.c.l.b16 %v5344
      %v5411 = vunpack.c.l.b16 %v5345
      %v5412 = vunpack.c.l.b16 %v5346
      %v5413 = vunpack.c.l.b16 %v5347
      %v5414 = vunpack.c.l.b16 %v5348
      %v5415 = vunpack.c.l.b16 %v5349
      %v5416 = vunpack.c.l.b16 %v5350
      %v5417 = vunpack.c.l.b16 %v5351
      %v5418 = vunpack.c.l.b16 %v5352
      %v5419 = vunpack.c.l.b16 %v5353
      %v5420 = vunpack.c.l.b16 %v5354
      %v5421 = vunpack.c.l.b16 %v5355
      %v5422 = vunpack.c.l.b16 %v5356
      %v5423 = vunpack.c.l.b16 %v5357
      %v5424 = vunpack.c.l.b16 %v5358
      %v5425 = vunpack.c.l.b16 %v5359
      %v5426 = vunpack.c.l.b16 %v5360
      %v5427 = vunpack.c.l.b16 %v5361
      %v5428 = vunpack.c.l.b16 %v5362
      %v5429 = vunpack.c.l.b16 %v5363
      %v5430 = vunpack.c.l.b16 %v5364
      %v5431 = vunpack.c.l.b16 %v5365
      %v5432 = vunpack.c.l.b16 %v5366
      %v5433 = vpack.c.b16 %v5402, %v5401
      %v5434 = vpack.c.b16 %v5404, %v5403
      %v5435 = vpack.c.b16 %v5406, %v5405
      %v5436 = vpack.c.b16 %v5408, %v5407
      %v5437 = vpack.c.b16 %v5410, %v5409
      %v5438 = vpack.c.b16 %v5412, %v5411
      %v5439 = vpack.c.b16 %v5414, %v5413
      %v5440 = vpack.c.b16 %v5416, %v5415
      %v5441 = vpack.c.b16 %v5418, %v5417
      %v5442 = vpack.c.b16 %v5420, %v5419
      %v5443 = vpack.c.b16 %v5422, %v5421
      %v5444 = vpack.c.b16 %v5424, %v5423
      %v5445 = vpack.c.b16 %v5426, %v5425
      %v5446 = vpack.c.b16 %v5428, %v5427
      %v5447 = vpack.c.b16 %v5430, %v5429
      %v5448 = vpack.c.b16 %v5432, %v5431
      %v5450 = vsel %vm2817, %v5433, 0
      %v5453 = vsel %vm2817, %v5434, 0
      %v5456 = vsel %vm2817, %v5435, 0
      %v5459 = vsel %vm2817, %v5436, 0
      %v5462 = vsel %vm2817, %v5437, 0
      %v5465 = vsel %vm2817, %v5438, 0
      %v5468 = vsel %vm2817, %v5439, 0
      %v5471 = vsel %vm2817, %v5440, 0
      %v5474 = vsel %vm2817, %v5441, 0
      %v5477 = vsel %vm2817, %v5442, 0
      %v5480 = vsel %vm2817, %v5443, 0
      %v5483 = vsel %vm2817, %v5444, 0
      %v5486 = vsel %vm2817, %v5445, 0
      %v5489 = vsel %vm2817, %v5446, 0
      %v5492 = vsel %vm2817, %v5447, 0
      %v5495 = vsel %vm2817, %v5448, 0
      %v5498 = vsel %vm2866, %v5368, 0
      %5500 = vmatprep.subr.bf16.mxu0 0
      %5501 = vmatpush1.bf16.msra.mxu0 %v5498
      %5502 = vmatprep.subr.bf16.mxu0 0
      %5503 = vmatpush1.bf16.msra.mxu0 0
      %5504 = vmatprep.subr.bf16.mxu0 0
      %5505 = vmatpush1.bf16.msra.mxu0 0
      %5506 = vmatprep.subr.bf16.mxu0 0
      %5507 = vmatpush1.bf16.msra.mxu0 0
      %5508 = vmatprep.subr.bf16.mxu0 0
      %5509 = vmatpush1.bf16.msra.mxu0 0
      %5510 = vmatprep.subr.bf16.mxu0 0
      %5511 = vmatpush1.bf16.msra.mxu0 0
      %5512 = vmatprep.subr.bf16.mxu0 0
      %5513 = vmatpush1.bf16.msra.mxu0 0
      %5514 = vmatprep.subr.bf16.mxu0 0
      %5515 = vmatpush1.bf16.msra.mxu0 0
      %5516 = vmatprep.subr.bf16.mxu0 0
      %5517 = vmatpush1.bf16.msra.mxu0 0
      %5518 = vmatprep.subr.bf16.mxu0 0
      %5519 = vmatpush1.bf16.msra.mxu0 0
      %5520 = vmatprep.subr.bf16.mxu0 0
      %5521 = vmatpush1.bf16.msra.mxu0 0
      %5522 = vmatprep.subr.bf16.mxu0 0
      %5523 = vmatpush1.bf16.msra.mxu0 0
      %5524 = vmatprep.subr.bf16.mxu0 0
      %5525 = vmatpush1.bf16.msra.mxu0 0
      %5526 = vmatprep.subr.bf16.mxu0 0
      %5527 = vmatpush1.bf16.msra.mxu0 0
      %5528 = vmatprep.subr.bf16.mxu0 0
      %5529 = vmatpush1.bf16.msra.mxu0 0
      %5530 = vmatprep.subr.bf16.mxu0 0
      %5531 = vmatpush1.bf16.msra.mxu0 0
      %5532 = vmatprep.mubr.bf16.mxu0 0
      %5533 = vmatmul.mubr.bf16.gmra.mrb[0].mxu0 %v5450
      %v5534 = vpop.f32.mrb[0].mxu0
      %v5535 = vadd.f32 0.0, %v5534
      %v5536 = vpop.f32.mrb[0].mxu0
      %v5537 = vpop.f32.mrb[0].mxu0
      %v5538 = vadd.f32 0.0, %v5537
      %v5539 = vpop.f32.mrb[0].mxu0
      %5540 = vmatprep.mubr.bf16.mxu0 0
      %5541 = vmatmul.mubr.bf16.gmra.mrb[0].mxu0 %v5453
      %v5542 = vpop.f32.mrb[0].mxu0
      %v5543 = vadd.f32 0.0, %v5542
      %v5544 = vpop.f32.mrb[0].mxu0
      %v5545 = vpop.f32.mrb[0].mxu0
      %v5546 = vadd.f32 0.0, %v5545
      %v5547 = vpop.f32.mrb[0].mxu0
      %5548 = vmatprep.mubr.bf16.mxu0 0
      %5549 = vmatmul.mubr.bf16.gmra.mrb[0].mxu0 %v5456
      %v5550 = vpop.f32.mrb[0].mxu0
      %v5551 = vadd.f32 0.0, %v5550
      %v5552 = vpop.f32.mrb[0].mxu0
      %v5553 = vpop.f32.mrb[0].mxu0
      %v5554 = vadd.f32 0.0, %v5553
      %v5555 = vpop.f32.mrb[0].mxu0
      %5556 = vmatprep.mubr.bf16.mxu0 0
      %5557 = vmatmul.mubr.bf16.gmra.mrb[0].mxu0 %v5459
      %v5558 = vpop.f32.mrb[0].mxu0
      %v5559 = vadd.f32 0.0, %v5558
      %v5560 = vpop.f32.mrb[0].mxu0
      %v5561 = vpop.f32.mrb[0].mxu0
      %v5562 = vadd.f32 0.0, %v5561
      %v5563 = vpop.f32.mrb[0].mxu0
      %5564 = vmatprep.mubr.bf16.mxu0 0
      %5565 = vmatmul.mubr.bf16.gmra.mrb[0].mxu0 %v5462
      %v5566 = vpop.f32.mrb[0].mxu0
      %v5567 = vadd.f32 0.0, %v5566
      %v5568 = vpop.f32.mrb[0].mxu0
      %v5569 = vpop.f32.mrb[0].mxu0
      %v5570 = vadd.f32 0.0, %v5569
      %v5571 = vpop.f32.mrb[0].mxu0
      %5572 = vmatprep.mubr.bf16.mxu0 0
      %5573 = vmatmul.mubr.bf16.gmra.mrb[0].mxu0 %v5465
      %v5574 = vpop.f32.mrb[0].mxu0
      %v5575 = vadd.f32 0.0, %v5574
      %v5576 = vpop.f32.mrb[0].mxu0
      %v5577 = vpop.f32.mrb[0].mxu0
      %v5578 = vadd.f32 0.0, %v5577
      %v5579 = vpop.f32.mrb[0].mxu0
      %5580 = vmatprep.mubr.bf16.mxu0 0
      %5581 = vmatmul.mubr.bf16.gmra.mrb[0].mxu0 %v5468
      %v5582 = vpop.f32.mrb[0].mxu0
      %v5583 = vadd.f32 0.0, %v5582
      %v5584 = vpop.f32.mrb[0].mxu0
      %v5585 = vpop.f32.mrb[0].mxu0
      %v5586 = vadd.f32 0.0, %v5585
      %v5587 = vpop.f32.mrb[0].mxu0
      %5588 = vmatprep.mubr.bf16.mxu0 0
      %5589 = vmatmul.mubr.bf16.gmra.mrb[0].mxu0 %v5471
      %v5590 = vpop.f32.mrb[0].mxu0
      %v5591 = vadd.f32 0.0, %v5590
      %v5592 = vpop.f32.mrb[0].mxu0
      %v5593 = vpop.f32.mrb[0].mxu0
      %v5594 = vadd.f32 0.0, %v5593
      %v5595 = vpop.f32.mrb[0].mxu0
      %5596 = vmatprep.mubr.bf16.mxu0 0
      %5597 = vmatmul.mubr.bf16.gmra.mrb[0].mxu0 %v5474
      %v5598 = vpop.f32.mrb[0].mxu0
      %v5599 = vadd.f32 0.0, %v5598
      %v5600 = vpop.f32.mrb[0].mxu0
      %v5601 = vpop.f32.mrb[0].mxu0
      %v5602 = vadd.f32 0.0, %v5601
      %v5603 = vpop.f32.mrb[0].mxu0
      %5604 = vmatprep.mubr.bf16.mxu0 0
      %5605 = vmatmul.mubr.bf16.gmra.mrb[0].mxu0 %v5477
      %v5606 = vpop.f32.mrb[0].mxu0
      %v5607 = vadd.f32 0.0, %v5606
      %v5608 = vpop.f32.mrb[0].mxu0
      %v5609 = vpop.f32.mrb[0].mxu0
      %v5610 = vadd.f32 0.0, %v5609
      %v5611 = vpop.f32.mrb[0].mxu0
      %5612 = vmatprep.mubr.bf16.mxu0 0
      %5613 = vmatmul.mubr.bf16.gmra.mrb[0].mxu0 %v5480
      %v5614 = vpop.f32.mrb[0].mxu0
      %v5615 = vadd.f32 0.0, %v5614
      %v5616 = vpop.f32.mrb[0].mxu0
      %v5617 = vpop.f32.mrb[0].mxu0
      %v5618 = vadd.f32 0.0, %v5617
      %v5619 = vpop.f32.mrb[0].mxu0
      %5620 = vmatprep.mubr.bf16.mxu0 0
      %5621 = vmatmul.mubr.bf16.gmra.mrb[0].mxu0 %v5483
      %v5622 = vpop.f32.mrb[0].mxu0
      %v5623 = vadd.f32 0.0, %v5622
      %v5624 = vpop.f32.mrb[0].mxu0
      %v5625 = vpop.f32.mrb[0].mxu0
      %v5626 = vadd.f32 0.0, %v5625
      %v5627 = vpop.f32.mrb[0].mxu0
      %5628 = vmatprep.mubr.bf16.mxu0 0
      %5629 = vmatmul.mubr.bf16.gmra.mrb[0].mxu0 %v5486
      %v5630 = vpop.f32.mrb[0].mxu0
      %v5631 = vadd.f32 0.0, %v5630
      %v5632 = vpop.f32.mrb[0].mxu0
      %v5633 = vpop.f32.mrb[0].mxu0
      %v5634 = vadd.f32 0.0, %v5633
      %v5635 = vpop.f32.mrb[0].mxu0
      %5636 = vmatprep.mubr.bf16.mxu0 0
      %5637 = vmatmul.mubr.bf16.gmra.mrb[0].mxu0 %v5489
      %v5638 = vpop.f32.mrb[0].mxu0
      %v5639 = vadd.f32 0.0, %v5638
      %v5640 = vpop.f32.mrb[0].mxu0
      %v5641 = vpop.f32.mrb[0].mxu0
      %v5642 = vadd.f32 0.0, %v5641
      %v5643 = vpop.f32.mrb[0].mxu0
      %5644 = vmatprep.mubr.bf16.mxu0 0
      %5645 = vmatmul.mubr.bf16.gmra.mrb[0].mxu0 %v5492
      %v5646 = vpop.f32.mrb[0].mxu0
      %v5647 = vadd.f32 0.0, %v5646
      %v5648 = vpop.f32.mrb[0].mxu0
      %v5649 = vpop.f32.mrb[0].mxu0
      %v5650 = vadd.f32 0.0, %v5649
      %v5651 = vpop.f32.mrb[0].mxu0
      %5652 = vmatprep.mubr.bf16.mxu0 0
      %5653 = vmatmul.mubr.bf16.gmra.mrb[0].mxu0 %v5495
      %v5654 = vpop.f32.mrb[0].mxu0
      %v5655 = vadd.f32 0.0, %v5654
      %v5656 = vpop.f32.mrb[0].mxu0
      %v5657 = vpop.f32.mrb[0].mxu0
      %v5658 = vadd.f32 0.0, %v5657
      %v5659 = vpop.f32.mrb[0].mxu0
      %5660 = vdwg.mxu0
      %v5661 = vadd.f32 %v5302, %v5535
      %v5662 = vadd.f32 %v5303, %v5538
      %v5663 = vadd.f32 %v5304, %v5543
      %v5664 = vadd.f32 %v5305, %v5546
      %v5665 = vadd.f32 %v5306, %v5551
      %v5666 = vadd.f32 %v5307, %v5554
      %v5667 = vadd.f32 %v5308, %v5559
      %v5668 = vadd.f32 %v5309, %v5562
      %v5669 = vadd.f32 %v5310, %v5567
      %v5670 = vadd.f32 %v5311, %v5570
      %v5671 = vadd.f32 %v5312, %v5575
      %v5672 = vadd.f32 %v5313, %v5578
      %v5673 = vadd.f32 %v5314, %v5583
      %v5674 = vadd.f32 %v5315, %v5586
      %v5675 = vadd.f32 %v5316, %v5591
      %v5676 = vadd.f32 %v5317, %v5594
      %v5677 = vadd.f32 %v5318, %v5599
      %v5678 = vadd.f32 %v5319, %v5602
      %v5679 = vadd.f32 %v5320, %v5607
      %v5680 = vadd.f32 %v5321, %v5610
      %v5681 = vadd.f32 %v5322, %v5615
      %v5682 = vadd.f32 %v5323, %v5618
      %v5683 = vadd.f32 %v5324, %v5623
      %v5684 = vadd.f32 %v5325, %v5626
      %v5685 = vadd.f32 %v5326, %v5631
      %v5686 = vadd.f32 %v5327, %v5634
      %v5687 = vadd.f32 %v5328, %v5639
      %v5688 = vadd.f32 %v5329, %v5642
      %v5689 = vadd.f32 %v5330, %v5647
      %v5690 = vadd.f32 %v5331, %v5650
      %v5691 = vadd.f32 %v5332, %v5655
      %v5692 = vadd.f32 %v5333, %v5658
      %v5693 = vld [vmem:[%s5334] sm:$0xf]
      %v5694 = vld [vmem:[%s5334 + $0x4] sm:$0xf]
      %v5695 = vld [vmem:[%s5334 + $0x8] sm:$0x1]
      %v5696 = vld [vmem:[%s5334 + $0xc] sm:$0xf]
      %v5697 = vld [vmem:[%s5334 + $0x10] sm:$0xf]
      %v5698 = vld [vmem:[%s5334 + $0x14] sm:$0x1]
      %v5699 = vld [vmem:[%s5334 + $0x18] sm:$0xf]
      %v5700 = vld [vmem:[%s5334 + $0x1c] sm:$0xf]
      %v5701 = vld [vmem:[%s5334 + $0x20] sm:$0x1]
      %v5702 = vld [vmem:[%s5334 + $0x24] sm:$0xf]
      %v5703 = vld [vmem:[%s5334 + $0x28] sm:$0xf]
      %v5704 = vld [vmem:[%s5334 + $0x2c] sm:$0x1]
      %v5705 = vld [vmem:[%s5334 + $0x30] sm:$0xf]
      %v5706 = vld [vmem:[%s5334 + $0x34] sm:$0xf]
      %v5707 = vld [vmem:[%s5334 + $0x38] sm:$0x1]
      %v5708 = vld [vmem:[%s5334 + $0x3c] sm:$0xf]
      %v5709 = vld [vmem:[%s5334 + $0x40] sm:$0xf]
      %v5710 = vld [vmem:[%s5334 + $0x44] sm:$0x1]
      %v5711 = vld [vmem:[%s5334 + $0x48] sm:$0xf]
      %v5712 = vld [vmem:[%s5334 + $0x4c] sm:$0xf]
      %v5713 = vld [vmem:[%s5334 + $0x50] sm:$0x1]
      %v5714 = vld [vmem:[%s5334 + $0x54] sm:$0xf]
      %v5715 = vld [vmem:[%s5334 + $0x58] sm:$0xf]
      %v5716 = vld [vmem:[%s5334 + $0x5c] sm:$0x1]
      %v5717 = vld [vmem:[%s5334 + $0x60] sm:$0xf]
      %v5718 = vld [vmem:[%s5334 + $0x64] sm:$0xf]
      %v5719 = vld [vmem:[%s5334 + $0x68] sm:$0x1]
      %v5720 = vld [vmem:[%s5334 + $0x6c] sm:$0xf]
      %v5721 = vld [vmem:[%s5334 + $0x70] sm:$0xf]
      %v5722 = vld [vmem:[%s5334 + $0x74] sm:$0x1]
      %v5723 = vld [vmem:[%s5334 + $0x78] sm:$0xf]
      %v5724 = vld [vmem:[%s5334 + $0x7c] sm:$0xf]
      %v5725 = vld [vmem:[%s5334 + $0x80] sm:$0x1]
      %v5726 = vld [vmem:[%s5334 + $0x84] sm:$0xf]
      %v5727 = vld [vmem:[%s5334 + $0x88] sm:$0xf]
      %v5728 = vld [vmem:[%s5334 + $0x8c] sm:$0x1]
      %v5729 = vld [vmem:[%s5334 + $0x90] sm:$0xf]
      %v5730 = vld [vmem:[%s5334 + $0x94] sm:$0xf]
      %v5731 = vld [vmem:[%s5334 + $0x98] sm:$0x1]
      %v5732 = vld [vmem:[%s5334 + $0x9c] sm:$0xf]
      %v5733 = vld [vmem:[%s5334 + $0xa0] sm:$0xf]
      %v5734 = vld [vmem:[%s5334 + $0xa4] sm:$0x1]
      %v5735 = vld [vmem:[%s5334 + $0xa8] sm:$0xf]
      %v5736 = vld [vmem:[%s5334 + $0xac] sm:$0xf]
      %v5737 = vld [vmem:[%s5334 + $0xb0] sm:$0x1]
      %v5738 = vld [vmem:[%s5334 + $0xb4] sm:$0xf]
      %v5739 = vld [vmem:[%s5334 + $0xb8] sm:$0xf]
      %v5740 = vld [vmem:[%s5334 + $0xbc] sm:$0x1]
      %v5742 = vshrl.u32 %v5693, 16
      %v5744 = vrot.slane %v5742, 4
      %v5745 = vshll.u32 %v5693, 16
      %v5747 = vrot.slane %v5745, 5
      %v5748 = vor.u32 %v5744, %v5747
      %v5749 = vrot.slane %v5748, 4
      %v5751 = vshll.u32 %v5694, 16
      %v5753 = vrot.slane %v5751, 5
      %v5754 = vsel %vm283, %v5749, %v5753
      %v5755 = vshrl.u32 %v5694, 16
      %v5757 = vrot.slane %v5755, 4
      %v5758 = vor.u32 %v5757, %v5753
      %v5759 = vrot.slane %v5758, 4
      %v5761 = vshll.u32 %v5695, 16
      %v5763 = vrot.slane %v5761, 5
      %v5764 = vsel %vm283, %v5759, %v5763
      %v5766 = vshrl.u32 %v5696, 16
      %v5768 = vrot.slane %v5766, 4
      %v5769 = vshll.u32 %v5696, 16
      %v5771 = vrot.slane %v5769, 5
      %v5772 = vor.u32 %v5768, %v5771
      %v5773 = vrot.slane %v5772, 4
      %v5775 = vshll.u32 %v5697, 16
      %v5777 = vrot.slane %v5775, 5
      %v5778 = vsel %vm283, %v5773, %v5777
      %v5779 = vshrl.u32 %v5697, 16
      %v5781 = vrot.slane %v5779, 4
      %v5782 = vor.u32 %v5781, %v5777
      %v5783 = vrot.slane %v5782, 4
      %v5785 = vshll.u32 %v5698, 16
      %v5787 = vrot.slane %v5785, 5
      %v5788 = vsel %vm283, %v5783, %v5787
      %v5790 = vshrl.u32 %v5699, 16
      %v5792 = vrot.slane %v5790, 4
      %v5793 = vshll.u32 %v5699, 16
      %v5795 = vrot.slane %v5793, 5
      %v5796 = vor.u32 %v5792, %v5795
      %v5797 = vrot.slane %v5796, 4
      %v5799 = vshll.u32 %v5700, 16
      %v5801 = vrot.slane %v5799, 5
      %v5802 = vsel %vm283, %v5797, %v5801
      %v5803 = vshrl.u32 %v5700, 16
      %v5805 = vrot.slane %v5803, 4
      %v5806 = vor.u32 %v5805, %v5801
      %v5807 = vrot.slane %v5806, 4
      %v5809 = vshll.u32 %v5701, 16
      %v5811 = vrot.slane %v5809, 5
      %v5812 = vsel %vm283, %v5807, %v5811
      %v5814 = vshrl.u32 %v5702, 16
      %v5816 = vrot.slane %v5814, 4
      %v5817 = vshll.u32 %v5702, 16
      %v5819 = vrot.slane %v5817, 5
      %v5820 = vor.u32 %v5816, %v5819
      %v5821 = vrot.slane %v5820, 4
      %v5823 = vshll.u32 %v5703, 16
      %v5825 = vrot.slane %v5823, 5
      %v5826 = vsel %vm283, %v5821, %v5825
      %v5827 = vshrl.u32 %v5703, 16
      %v5829 = vrot.slane %v5827, 4
      %v5830 = vor.u32 %v5829, %v5825
      %v5831 = vrot.slane %v5830, 4
      %v5833 = vshll.u32 %v5704, 16
      %v5835 = vrot.slane %v5833, 5
      %v5836 = vsel %vm283, %v5831, %v5835
      %v5838 = vshrl.u32 %v5705, 16
      %v5840 = vrot.slane %v5838, 4
      %v5841 = vshll.u32 %v5705, 16
      %v5843 = vrot.slane %v5841, 5
      %v5844 = vor.u32 %v5840, %v5843
      %v5845 = vrot.slane %v5844, 4
      %v5847 = vshll.u32 %v5706, 16
      %v5849 = vrot.slane %v5847, 5
      %v5850 = vsel %vm283, %v5845, %v5849
      %v5851 = vshrl.u32 %v5706, 16
      %v5853 = vrot.slane %v5851, 4
      %v5854 = vor.u32 %v5853, %v5849
      %v5855 = vrot.slane %v5854, 4
      %v5857 = vshll.u32 %v5707, 16
      %v5859 = vrot.slane %v5857, 5
      %v5860 = vsel %vm283, %v5855, %v5859
      %v5862 = vshrl.u32 %v5708, 16
      %v5864 = vrot.slane %v5862, 4
      %v5865 = vshll.u32 %v5708, 16
      %v5867 = vrot.slane %v5865, 5
      %v5868 = vor.u32 %v5864, %v5867
      %v5869 = vrot.slane %v5868, 4
      %v5871 = vshll.u32 %v5709, 16
      %v5873 = vrot.slane %v5871, 5
      %v5874 = vsel %vm283, %v5869, %v5873
      %v5875 = vshrl.u32 %v5709, 16
      %v5877 = vrot.slane %v5875, 4
      %v5878 = vor.u32 %v5877, %v5873
      %v5879 = vrot.slane %v5878, 4
      %v5881 = vshll.u32 %v5710, 16
      %v5883 = vrot.slane %v5881, 5
      %v5884 = vsel %vm283, %v5879, %v5883
      %v5886 = vshrl.u32 %v5711, 16
      %v5888 = vrot.slane %v5886, 4
      %v5889 = vshll.u32 %v5711, 16
      %v5891 = vrot.slane %v5889, 5
      %v5892 = vor.u32 %v5888, %v5891
      %v5893 = vrot.slane %v5892, 4
      %v5895 = vshll.u32 %v5712, 16
      %v5897 = vrot.slane %v5895, 5
      %v5898 = vsel %vm283, %v5893, %v5897
      %v5899 = vshrl.u32 %v5712, 16
      %v5901 = vrot.slane %v5899, 4
      %v5902 = vor.u32 %v5901, %v5897
      %v5903 = vrot.slane %v5902, 4
      %v5905 = vshll.u32 %v5713, 16
      %v5907 = vrot.slane %v5905, 5
      %v5908 = vsel %vm283, %v5903, %v5907
      %v5910 = vshrl.u32 %v5714, 16
      %v5912 = vrot.slane %v5910, 4
      %v5913 = vshll.u32 %v5714, 16
      %v5915 = vrot.slane %v5913, 5
      %v5916 = vor.u32 %v5912, %v5915
      %v5917 = vrot.slane %v5916, 4
      %v5919 = vshll.u32 %v5715, 16
      %v5921 = vrot.slane %v5919, 5
      %v5922 = vsel %vm283, %v5917, %v5921
      %v5923 = vshrl.u32 %v5715, 16
      %v5925 = vrot.slane %v5923, 4
      %v5926 = vor.u32 %v5925, %v5921
      %v5927 = vrot.slane %v5926, 4
      %v5929 = vshll.u32 %v5716, 16
      %v5931 = vrot.slane %v5929, 5
      %v5932 = vsel %vm283, %v5927, %v5931
      %v5934 = vshrl.u32 %v5717, 16
      %v5936 = vrot.slane %v5934, 4
      %v5937 = vshll.u32 %v5717, 16
      %v5939 = vrot.slane %v5937, 5
      %v5940 = vor.u32 %v5936, %v5939
      %v5941 = vrot.slane %v5940, 4
      %v5943 = vshll.u32 %v5718, 16
      %v5945 = vrot.slane %v5943, 5
      %v5946 = vsel %vm283, %v5941, %v5945
      %v5947 = vshrl.u32 %v5718, 16
      %v5949 = vrot.slane %v5947, 4
      %v5950 = vor.u32 %v5949, %v5945
      %v5951 = vrot.slane %v5950, 4
      %v5953 = vshll.u32 %v5719, 16
      %v5955 = vrot.slane %v5953, 5
      %v5956 = vsel %vm283, %v5951, %v5955
      %v5958 = vshrl.u32 %v5720, 16
      %v5960 = vrot.slane %v5958, 4
      %v5961 = vshll.u32 %v5720, 16
      %v5963 = vrot.slane %v5961, 5
      %v5964 = vor.u32 %v5960, %v5963
      %v5965 = vrot.slane %v5964, 4
      %v5967 = vshll.u32 %v5721, 16
      %v5969 = vrot.slane %v5967, 5
      %v5970 = vsel %vm283, %v5965, %v5969
      %v5971 = vshrl.u32 %v5721, 16
      %v5973 = vrot.slane %v5971, 4
      %v5974 = vor.u32 %v5973, %v5969
      %v5975 = vrot.slane %v5974, 4
      %v5977 = vshll.u32 %v5722, 16
      %v5979 = vrot.slane %v5977, 5
      %v5980 = vsel %vm283, %v5975, %v5979
      %v5982 = vshrl.u32 %v5723, 16
      %v5984 = vrot.slane %v5982, 4
      %v5985 = vshll.u32 %v5723, 16
      %v5987 = vrot.slane %v5985, 5
      %v5988 = vor.u32 %v5984, %v5987
      %v5989 = vrot.slane %v5988, 4
      %v5991 = vshll.u32 %v5724, 16
      %v5993 = vrot.slane %v5991, 5
      %v5994 = vsel %vm283, %v5989, %v5993
      %v5995 = vshrl.u32 %v5724, 16
      %v5997 = vrot.slane %v5995, 4
      %v5998 = vor.u32 %v5997, %v5993
      %v5999 = vrot.slane %v5998, 4
      %v6001 = vshll.u32 %v5725, 16
      %v6003 = vrot.slane %v6001, 5
      %v6004 = vsel %vm283, %v5999, %v6003
      %v6006 = vshrl.u32 %v5726, 16
      %v6008 = vrot.slane %v6006, 4
      %v6009 = vshll.u32 %v5726, 16
      %v6011 = vrot.slane %v6009, 5
      %v6012 = vor.u32 %v6008, %v6011
      %v6013 = vrot.slane %v6012, 4
      %v6015 = vshll.u32 %v5727, 16
      %v6017 = vrot.slane %v6015, 5
      %v6018 = vsel %vm283, %v6013, %v6017
      %v6019 = vshrl.u32 %v5727, 16
      %v6021 = vrot.slane %v6019, 4
      %v6022 = vor.u32 %v6021, %v6017
      %v6023 = vrot.slane %v6022, 4
      %v6025 = vshll.u32 %v5728, 16
      %v6027 = vrot.slane %v6025, 5
      %v6028 = vsel %vm283, %v6023, %v6027
      %v6030 = vshrl.u32 %v5729, 16
      %v6032 = vrot.slane %v6030, 4
      %v6033 = vshll.u32 %v5729, 16
      %v6035 = vrot.slane %v6033, 5
      %v6036 = vor.u32 %v6032, %v6035
      %v6037 = vrot.slane %v6036, 4
      %v6039 = vshll.u32 %v5730, 16
      %v6041 = vrot.slane %v6039, 5
      %v6042 = vsel %vm283, %v6037, %v6041
      %v6043 = vshrl.u32 %v5730, 16
      %v6045 = vrot.slane %v6043, 4
      %v6046 = vor.u32 %v6045, %v6041
      %v6047 = vrot.slane %v6046, 4
      %v6049 = vshll.u32 %v5731, 16
      %v6051 = vrot.slane %v6049, 5
      %v6052 = vsel %vm283, %v6047, %v6051
      %v6054 = vshrl.u32 %v5732, 16
      %v6056 = vrot.slane %v6054, 4
      %v6057 = vshll.u32 %v5732, 16
      %v6059 = vrot.slane %v6057, 5
      %v6060 = vor.u32 %v6056, %v6059
      %v6061 = vrot.slane %v6060, 4
      %v6063 = vshll.u32 %v5733, 16
      %v6065 = vrot.slane %v6063, 5
      %v6066 = vsel %vm283, %v6061, %v6065
      %v6067 = vshrl.u32 %v5733, 16
      %v6069 = vrot.slane %v6067, 4
      %v6070 = vor.u32 %v6069, %v6065
      %v6071 = vrot.slane %v6070, 4
      %v6073 = vshll.u32 %v5734, 16
      %v6075 = vrot.slane %v6073, 5
      %v6076 = vsel %vm283, %v6071, %v6075
      %v6078 = vshrl.u32 %v5735, 16
      %v6080 = vrot.slane %v6078, 4
      %v6081 = vshll.u32 %v5735, 16
      %v6083 = vrot.slane %v6081, 5
      %v6084 = vor.u32 %v6080, %v6083
      %v6085 = vrot.slane %v6084, 4
      %v6087 = vshll.u32 %v5736, 16
      %v6089 = vrot.slane %v6087, 5
      %v6090 = vsel %vm283, %v6085, %v6089
      %v6091 = vshrl.u32 %v5736, 16
      %v6093 = vrot.slane %v6091, 4
      %v6094 = vor.u32 %v6093, %v6089
      %v6095 = vrot.slane %v6094, 4
      %v6097 = vshll.u32 %v5737, 16
      %v6099 = vrot.slane %v6097, 5
      %v6100 = vsel %vm283, %v6095, %v6099
      %v6102 = vshrl.u32 %v5738, 16
      %v6104 = vrot.slane %v6102, 4
      %v6105 = vshll.u32 %v5738, 16
      %v6107 = vrot.slane %v6105, 5
      %v6108 = vor.u32 %v6104, %v6107
      %v6109 = vrot.slane %v6108, 4
      %v6111 = vshll.u32 %v5739, 16
      %v6113 = vrot.slane %v6111, 5
      %v6114 = vsel %vm283, %v6109, %v6113
      %v6115 = vshrl.u32 %v5739, 16
      %v6117 = vrot.slane %v6115, 4
      %v6118 = vor.u32 %v6117, %v6113
      %v6119 = vrot.slane %v6118, 4
      %v6121 = vshll.u32 %v5740, 16
      %v6123 = vrot.slane %v6121, 5
      %v6124 = vsel %vm283, %v6119, %v6123
      %s6125 = scalar_lea.vmem %s3, 14
      %v6126 = vld [vmem:[%s6125] sm:$0x3]
      %v6127 = vunpack.c.l.b16 %v5754
      %v6128 = vunpack.c.l.b16 %v5764
      %v6129 = vunpack.c.l.b16 %v5778
      %v6130 = vunpack.c.l.b16 %v5788
      %v6131 = vunpack.c.l.b16 %v5802
      %v6132 = vunpack.c.l.b16 %v5812
      %v6133 = vunpack.c.l.b16 %v5826
      %v6134 = vunpack.c.l.b16 %v5836
      %v6135 = vunpack.c.l.b16 %v5850
      %v6136 = vunpack.c.l.b16 %v5860
      %v6137 = vunpack.c.l.b16 %v5874
      %v6138 = vunpack.c.l.b16 %v5884
      %v6139 = vunpack.c.l.b16 %v5898
      %v6140 = vunpack.c.l.b16 %v5908
      %v6141 = vunpack.c.l.b16 %v5922
      %v6142 = vunpack.c.l.b16 %v5932
      %v6143 = vunpack.c.l.b16 %v5946
      %v6144 = vunpack.c.l.b16 %v5956
      %v6145 = vunpack.c.l.b16 %v5970
      %v6146 = vunpack.c.l.b16 %v5980
      %v6147 = vunpack.c.l.b16 %v5994
      %v6148 = vunpack.c.l.b16 %v6004
      %v6149 = vunpack.c.l.b16 %v6018
      %v6150 = vunpack.c.l.b16 %v6028
      %v6151 = vunpack.c.l.b16 %v6042
      %v6152 = vunpack.c.l.b16 %v6052
      %v6153 = vunpack.c.l.b16 %v6066
      %v6154 = vunpack.c.l.b16 %v6076
      %v6155 = vunpack.c.l.b16 %v6090
      %v6156 = vunpack.c.l.b16 %v6100
      %v6157 = vunpack.c.l.b16 %v6114
      %v6158 = vunpack.c.l.b16 %v6124
      %v6159 = vpack.c.b16 %v6128, %v6127
      %v6160 = vpack.c.b16 %v6130, %v6129
      %v6161 = vpack.c.b16 %v6132, %v6131
      %v6162 = vpack.c.b16 %v6134, %v6133
      %v6163 = vpack.c.b16 %v6136, %v6135
      %v6164 = vpack.c.b16 %v6138, %v6137
      %v6165 = vpack.c.b16 %v6140, %v6139
      %v6166 = vpack.c.b16 %v6142, %v6141
      %v6167 = vpack.c.b16 %v6144, %v6143
      %v6168 = vpack.c.b16 %v6146, %v6145
      %v6169 = vpack.c.b16 %v6148, %v6147
      %v6170 = vpack.c.b16 %v6150, %v6149
      %v6171 = vpack.c.b16 %v6152, %v6151
      %v6172 = vpack.c.b16 %v6154, %v6153
      %v6173 = vpack.c.b16 %v6156, %v6155
      %v6174 = vpack.c.b16 %v6158, %v6157
      %v6176 = vsel %vm2817, %v6159, 0
      %v6179 = vsel %vm2817, %v6160, 0
      %v6182 = vsel %vm2817, %v6161, 0
      %v6185 = vsel %vm2817, %v6162, 0
      %v6188 = vsel %vm2817, %v6163, 0
      %v6191 = vsel %vm2817, %v6164, 0
      %v6194 = vsel %vm2817, %v6165, 0
      %v6197 = vsel %vm2817, %v6166, 0
      %v6200 = vsel %vm2817, %v6167, 0
      %v6203 = vsel %vm2817, %v6168, 0
      %v6206 = vsel %vm2817, %v6169, 0
      %v6209 = vsel %vm2817, %v6170, 0
      %v6212 = vsel %vm2817, %v6171, 0
      %v6215 = vsel %vm2817, %v6172, 0
      %v6218 = vsel %vm2817, %v6173, 0
      %v6221 = vsel %vm2817, %v6174, 0
      %v6224 = vsel %vm2866, %v6126, 0
      %6226 = vmatprep.subr.bf16.mxu0 0
      %6227 = vmatpush1.bf16.msra.mxu0 %v6224
      %6228 = vmatprep.subr.bf16.mxu0 0
      %6229 = vmatpush1.bf16.msra.mxu0 0
      %6230 = vmatprep.subr.bf16.mxu0 0
      %6231 = vmatpush1.bf16.msra.mxu0 0
      %6232 = vmatprep.subr.bf16.mxu0 0
      %6233 = vmatpush1.bf16.msra.mxu0 0
      %6234 = vmatprep.subr.bf16.mxu0 0
      %6235 = vmatpush1.bf16.msra.mxu0 0
      %6236 = vmatprep.subr.bf16.mxu0 0
      %6237 = vmatpush1.bf16.msra.mxu0 0
      %6238 = vmatprep.subr.bf16.mxu0 0
      %6239 = vmatpush1.bf16.msra.mxu0 0
      %6240 = vmatprep.subr.bf16.mxu0 0
      %6241 = vmatpush1.bf16.msra.mxu0 0
      %6242 = vmatprep.subr.bf16.mxu0 0
      %6243 = vmatpush1.bf16.msra.mxu0 0
      %6244 = vmatprep.subr.bf16.mxu0 0
      %6245 = vmatpush1.bf16.msra.mxu0 0
      %6246 = vmatprep.subr.bf16.mxu0 0
      %6247 = vmatpush1.bf16.msra.mxu0 0
      %6248 = vmatprep.subr.bf16.mxu0 0
      %6249 = vmatpush1.bf16.msra.mxu0 0
      %6250 = vmatprep.subr.bf16.mxu0 0
      %6251 = vmatpush1.bf16.msra.mxu0 0
      %6252 = vmatprep.subr.bf16.mxu0 0
      %6253 = vmatpush1.bf16.msra.mxu0 0
      %6254 = vmatprep.subr.bf16.mxu0 0
      %6255 = vmatpush1.bf16.msra.mxu0 0
      %6256 = vmatprep.subr.bf16.mxu0 0
      %6257 = vmatpush1.bf16.msra.mxu0 0
      %6258 = vmatprep.mubr.bf16.mxu0 0
      %6259 = vmatmul.mubr.bf16.gmra.mrb[0].mxu0 %v6176
      %v6260 = vpop.f32.mrb[0].mxu0
      %v6261 = vadd.f32 0.0, %v6260
      %v6262 = vpop.f32.mrb[0].mxu0
      %v6263 = vpop.f32.mrb[0].mxu0
      %v6264 = vadd.f32 0.0, %v6263
      %v6265 = vpop.f32.mrb[0].mxu0
      %6266 = vmatprep.mubr.bf16.mxu0 0
      %6267 = vmatmul.mubr.bf16.gmra.mrb[0].mxu0 %v6179
      %v6268 = vpop.f32.mrb[0].mxu0
      %v6269 = vadd.f32 0.0, %v6268
      %v6270 = vpop.f32.mrb[0].mxu0
      %v6271 = vpop.f32.mrb[0].mxu0
      %v6272 = vadd.f32 0.0, %v6271
      %v6273 = vpop.f32.mrb[0].mxu0
      %6274 = vmatprep.mubr.bf16.mxu0 0
      %6275 = vmatmul.mubr.bf16.gmra.mrb[0].mxu0 %v6182
      %v6276 = vpop.f32.mrb[0].mxu0
      %v6277 = vadd.f32 0.0, %v6276
      %v6278 = vpop.f32.mrb[0].mxu0
      %v6279 = vpop.f32.mrb[0].mxu0
      %v6280 = vadd.f32 0.0, %v6279
      %v6281 = vpop.f32.mrb[0].mxu0
      %6282 = vmatprep.mubr.bf16.mxu0 0
      %6283 = vmatmul.mubr.bf16.gmra.mrb[0].mxu0 %v6185
      %v6284 = vpop.f32.mrb[0].mxu0
      %v6285 = vadd.f32 0.0, %v6284
      %v6286 = vpop.f32.mrb[0].mxu0
      %v6287 = vpop.f32.mrb[0].mxu0
      %v6288 = vadd.f32 0.0, %v6287
      %v6289 = vpop.f32.mrb[0].mxu0
      %6290 = vmatprep.mubr.bf16.mxu0 0
      %6291 = vmatmul.mubr.bf16.gmra.mrb[0].mxu0 %v6188
      %v6292 = vpop.f32.mrb[0].mxu0
      %v6293 = vadd.f32 0.0, %v6292
      %v6294 = vpop.f32.mrb[0].mxu0
      %v6295 = vpop.f32.mrb[0].mxu0
      %v6296 = vadd.f32 0.0, %v6295
      %v6297 = vpop.f32.mrb[0].mxu0
      %6298 = vmatprep.mubr.bf16.mxu0 0
      %6299 = vmatmul.mubr.bf16.gmra.mrb[0].mxu0 %v6191
      %v6300 = vpop.f32.mrb[0].mxu0
      %v6301 = vadd.f32 0.0, %v6300
      %v6302 = vpop.f32.mrb[0].mxu0
      %v6303 = vpop.f32.mrb[0].mxu0
      %v6304 = vadd.f32 0.0, %v6303
      %v6305 = vpop.f32.mrb[0].mxu0
      %6306 = vmatprep.mubr.bf16.mxu0 0
      %6307 = vmatmul.mubr.bf16.gmra.mrb[0].mxu0 %v6194
      %v6308 = vpop.f32.mrb[0].mxu0
      %v6309 = vadd.f32 0.0, %v6308
      %v6310 = vpop.f32.mrb[0].mxu0
      %v6311 = vpop.f32.mrb[0].mxu0
      %v6312 = vadd.f32 0.0, %v6311
      %v6313 = vpop.f32.mrb[0].mxu0
      %6314 = vmatprep.mubr.bf16.mxu0 0
      %6315 = vmatmul.mubr.bf16.gmra.mrb[0].mxu0 %v6197
      %v6316 = vpop.f32.mrb[0].mxu0
      %v6317 = vadd.f32 0.0, %v6316
      %v6318 = vpop.f32.mrb[0].mxu0
      %v6319 = vpop.f32.mrb[0].mxu0
      %v6320 = vadd.f32 0.0, %v6319
      %v6321 = vpop.f32.mrb[0].mxu0
      %6322 = vmatprep.mubr.bf16.mxu0 0
      %6323 = vmatmul.mubr.bf16.gmra.mrb[0].mxu0 %v6200
      %v6324 = vpop.f32.mrb[0].mxu0
      %v6325 = vadd.f32 0.0, %v6324
      %v6326 = vpop.f32.mrb[0].mxu0
      %v6327 = vpop.f32.mrb[0].mxu0
      %v6328 = vadd.f32 0.0, %v6327
      %v6329 = vpop.f32.mrb[0].mxu0
      %6330 = vmatprep.mubr.bf16.mxu0 0
      %6331 = vmatmul.mubr.bf16.gmra.mrb[0].mxu0 %v6203
      %v6332 = vpop.f32.mrb[0].mxu0
      %v6333 = vadd.f32 0.0, %v6332
      %v6334 = vpop.f32.mrb[0].mxu0
      %v6335 = vpop.f32.mrb[0].mxu0
      %v6336 = vadd.f32 0.0, %v6335
      %v6337 = vpop.f32.mrb[0].mxu0
      %6338 = vmatprep.mubr.bf16.mxu0 0
      %6339 = vmatmul.mubr.bf16.gmra.mrb[0].mxu0 %v6206
      %v6340 = vpop.f32.mrb[0].mxu0
      %v6341 = vadd.f32 0.0, %v6340
      %v6342 = vpop.f32.mrb[0].mxu0
      %v6343 = vpop.f32.mrb[0].mxu0
      %v6344 = vadd.f32 0.0, %v6343
      %v6345 = vpop.f32.mrb[0].mxu0
      %6346 = vmatprep.mubr.bf16.mxu0 0
      %6347 = vmatmul.mubr.bf16.gmra.mrb[0].mxu0 %v6209
      %v6348 = vpop.f32.mrb[0].mxu0
      %v6349 = vadd.f32 0.0, %v6348
      %v6350 = vpop.f32.mrb[0].mxu0
      %v6351 = vpop.f32.mrb[0].mxu0
      %v6352 = vadd.f32 0.0, %v6351
      %v6353 = vpop.f32.mrb[0].mxu0
      %6354 = vmatprep.mubr.bf16.mxu0 0
      %6355 = vmatmul.mubr.bf16.gmra.mrb[0].mxu0 %v6212
      %v6356 = vpop.f32.mrb[0].mxu0
      %v6357 = vadd.f32 0.0, %v6356
      %v6358 = vpop.f32.mrb[0].mxu0
      %v6359 = vpop.f32.mrb[0].mxu0
      %v6360 = vadd.f32 0.0, %v6359
      %v6361 = vpop.f32.mrb[0].mxu0
      %6362 = vmatprep.mubr.bf16.mxu0 0
      %6363 = vmatmul.mubr.bf16.gmra.mrb[0].mxu0 %v6215
      %v6364 = vpop.f32.mrb[0].mxu0
      %v6365 = vadd.f32 0.0, %v6364
      %v6366 = vpop.f32.mrb[0].mxu0
      %v6367 = vpop.f32.mrb[0].mxu0
      %v6368 = vadd.f32 0.0, %v6367
      %v6369 = vpop.f32.mrb[0].mxu0
      %6370 = vmatprep.mubr.bf16.mxu0 0
      %6371 = vmatmul.mubr.bf16.gmra.mrb[0].mxu0 %v6218
      %v6372 = vpop.f32.mrb[0].mxu0
      %v6373 = vadd.f32 0.0, %v6372
      %v6374 = vpop.f32.mrb[0].mxu0
      %v6375 = vpop.f32.mrb[0].mxu0
      %v6376 = vadd.f32 0.0, %v6375
      %v6377 = vpop.f32.mrb[0].mxu0
      %6378 = vmatprep.mubr.bf16.mxu0 0
      %6379 = vmatmul.mubr.bf16.gmra.mrb[0].mxu0 %v6221
      %v6380 = vpop.f32.mrb[0].mxu0
      %v6381 = vadd.f32 0.0, %v6380
      %v6382 = vpop.f32.mrb[0].mxu0
      %v6383 = vpop.f32.mrb[0].mxu0
      %v6384 = vadd.f32 0.0, %v6383
      %v6385 = vpop.f32.mrb[0].mxu0
      %6386 = vdwg.mxu0
      %v6387 = vadd.f32 %v5661, %v6261
      %v6388 = vadd.f32 %v5662, %v6264
      %v6389 = vadd.f32 %v5663, %v6269
      %v6390 = vadd.f32 %v5664, %v6272
      %v6391 = vadd.f32 %v5665, %v6277
      %v6392 = vadd.f32 %v5666, %v6280
      %v6393 = vadd.f32 %v5667, %v6285
      %v6394 = vadd.f32 %v5668, %v6288
      %v6395 = vadd.f32 %v5669, %v6293
      %v6396 = vadd.f32 %v5670, %v6296
      %v6397 = vadd.f32 %v5671, %v6301
      %v6398 = vadd.f32 %v5672, %v6304
      %v6399 = vadd.f32 %v5673, %v6309
      %v6400 = vadd.f32 %v5674, %v6312
      %v6401 = vadd.f32 %v5675, %v6317
      %v6402 = vadd.f32 %v5676, %v6320
      %v6403 = vadd.f32 %v5677, %v6325
      %v6404 = vadd.f32 %v5678, %v6328
      %v6405 = vadd.f32 %v5679, %v6333
      %v6406 = vadd.f32 %v5680, %v6336
      %v6407 = vadd.f32 %v5681, %v6341
      %v6408 = vadd.f32 %v5682, %v6344
      %v6409 = vadd.f32 %v5683, %v6349
      %v6410 = vadd.f32 %v5684, %v6352
      %v6411 = vadd.f32 %v5685, %v6357
      %v6412 = vadd.f32 %v5686, %v6360
      %v6413 = vadd.f32 %v5687, %v6365
      %v6414 = vadd.f32 %v5688, %v6368
      %v6415 = vadd.f32 %v5689, %v6373
      %v6416 = vadd.f32 %v5690, %v6376
      %v6417 = vadd.f32 %v5691, %v6381
      %v6418 = vadd.f32 %v5692, %v6384
      %v6419 = vld [vmem:[%s5334] sm:$0xe]
      %v6420 = vld [vmem:[%s5334 + $0xc] sm:$0xe]
      %v6421 = vld [vmem:[%s5334 + $0x18] sm:$0xe]
      %v6422 = vld [vmem:[%s5334 + $0x24] sm:$0xe]
      %v6423 = vld [vmem:[%s5334 + $0x30] sm:$0xe]
      %v6424 = vld [vmem:[%s5334 + $0x3c] sm:$0xe]
      %v6425 = vld [vmem:[%s5334 + $0x48] sm:$0xe]
      %v6426 = vld [vmem:[%s5334 + $0x54] sm:$0xe]
      %v6427 = vld [vmem:[%s5334 + $0x60] sm:$0xe]
      %v6428 = vld [vmem:[%s5334 + $0x6c] sm:$0xe]
      %v6429 = vld [vmem:[%s5334 + $0x78] sm:$0xe]
      %v6430 = vld [vmem:[%s5334 + $0x84] sm:$0xe]
      %v6431 = vld [vmem:[%s5334 + $0x90] sm:$0xe]
      %v6432 = vld [vmem:[%s5334 + $0x9c] sm:$0xe]
      %v6433 = vld [vmem:[%s5334 + $0xa8] sm:$0xe]
      %v6434 = vld [vmem:[%s5334 + $0xb4] sm:$0xe]
      %v6483 = vrot.slane %v6419, 5
      %v6484 = vrot.slane %v6483, 4
      %v6485 = vrot.slane %v5694, 5
      %v6486 = vsel %vm3373, %v6484, %v6485
      %v6487 = vrot.slane %v6485, 4
      %v6488 = vrot.slane %v5695, 5
      %v6489 = vsel %vm3373, %v6487, %v6488
      %v6490 = vrot.slane %v6420, 5
      %v6491 = vrot.slane %v6490, 4
      %v6492 = vrot.slane %v5697, 5
      %v6493 = vsel %vm3373, %v6491, %v6492
      %v6494 = vrot.slane %v6492, 4
      %v6495 = vrot.slane %v5698, 5
      %v6496 = vsel %vm3373, %v6494, %v6495
      %v6497 = vrot.slane %v6421, 5
      %v6498 = vrot.slane %v6497, 4
      %v6499 = vrot.slane %v5700, 5
      %v6500 = vsel %vm3373, %v6498, %v6499
      %v6501 = vrot.slane %v6499, 4
      %v6502 = vrot.slane %v5701, 5
      %v6503 = vsel %vm3373, %v6501, %v6502
      %v6504 = vrot.slane %v6422, 5
      %v6505 = vrot.slane %v6504, 4
      %v6506 = vrot.slane %v5703, 5
      %v6507 = vsel %vm3373, %v6505, %v6506
      %v6508 = vrot.slane %v6506, 4
      %v6509 = vrot.slane %v5704, 5
      %v6510 = vsel %vm3373, %v6508, %v6509
      %v6511 = vrot.slane %v6423, 5
      %v6512 = vrot.slane %v6511, 4
      %v6513 = vrot.slane %v5706, 5
      %v6514 = vsel %vm3373, %v6512, %v6513
      %v6515 = vrot.slane %v6513, 4
      %v6516 = vrot.slane %v5707, 5
      %v6517 = vsel %vm3373, %v6515, %v6516
      %v6518 = vrot.slane %v6424, 5
      %v6519 = vrot.slane %v6518, 4
      %v6520 = vrot.slane %v5709, 5
      %v6521 = vsel %vm3373, %v6519, %v6520
      %v6522 = vrot.slane %v6520, 4
      %v6523 = vrot.slane %v5710, 5
      %v6524 = vsel %vm3373, %v6522, %v6523
      %v6525 = vrot.slane %v6425, 5
      %v6526 = vrot.slane %v6525, 4
      %v6527 = vrot.slane %v5712, 5
      %v6528 = vsel %vm3373, %v6526, %v6527
      %v6529 = vrot.slane %v6527, 4
      %v6530 = vrot.slane %v5713, 5
      %v6531 = vsel %vm3373, %v6529, %v6530
      %v6532 = vrot.slane %v6426, 5
      %v6533 = vrot.slane %v6532, 4
      %v6534 = vrot.slane %v5715, 5
      %v6535 = vsel %vm3373, %v6533, %v6534
      %v6536 = vrot.slane %v6534, 4
      %v6537 = vrot.slane %v5716, 5
      %v6538 = vsel %vm3373, %v6536, %v6537
      %v6539 = vrot.slane %v6427, 5
      %v6540 = vrot.slane %v6539, 4
      %v6541 = vrot.slane %v5718, 5
      %v6542 = vsel %vm3373, %v6540, %v6541
      %v6543 = vrot.slane %v6541, 4
      %v6544 = vrot.slane %v5719, 5
      %v6545 = vsel %vm3373, %v6543, %v6544
      %v6546 = vrot.slane %v6428, 5
      %v6547 = vrot.slane %v6546, 4
      %v6548 = vrot.slane %v5721, 5
      %v6549 = vsel %vm3373, %v6547, %v6548
      %v6550 = vrot.slane %v6548, 4
      %v6551 = vrot.slane %v5722, 5
      %v6552 = vsel %vm3373, %v6550, %v6551
      %v6553 = vrot.slane %v6429, 5
      %v6554 = vrot.slane %v6553, 4
      %v6555 = vrot.slane %v5724, 5
      %v6556 = vsel %vm3373, %v6554, %v6555
      %v6557 = vrot.slane %v6555, 4
      %v6558 = vrot.slane %v5725, 5
      %v6559 = vsel %vm3373, %v6557, %v6558
      %v6560 = vrot.slane %v6430, 5
      %v6561 = vrot.slane %v6560, 4
      %v6562 = vrot.slane %v5727, 5
      %v6563 = vsel %vm3373, %v6561, %v6562
      %v6564 = vrot.slane %v6562, 4
      %v6565 = vrot.slane %v5728, 5
      %v6566 = vsel %vm3373, %v6564, %v6565
      %v6567 = vrot.slane %v6431, 5
      %v6568 = vrot.slane %v6567, 4
      %v6569 = vrot.slane %v5730, 5
      %v6570 = vsel %vm3373, %v6568, %v6569
      %v6571 = vrot.slane %v6569, 4
      %v6572 = vrot.slane %v5731, 5
      %v6573 = vsel %vm3373, %v6571, %v6572
      %v6574 = vrot.slane %v6432, 5
      %v6575 = vrot.slane %v6574, 4
      %v6576 = vrot.slane %v5733, 5
      %v6577 = vsel %vm3373, %v6575, %v6576
      %v6578 = vrot.slane %v6576, 4
      %v6579 = vrot.slane %v5734, 5
      %v6580 = vsel %vm3373, %v6578, %v6579
      %v6581 = vrot.slane %v6433, 5
      %v6582 = vrot.slane %v6581, 4
      %v6583 = vrot.slane %v5736, 5
      %v6584 = vsel %vm3373, %v6582, %v6583
      %v6585 = vrot.slane %v6583, 4
      %v6586 = vrot.slane %v5737, 5
      %v6587 = vsel %vm3373, %v6585, %v6586
      %v6588 = vrot.slane %v6434, 5
      %v6589 = vrot.slane %v6588, 4
      %v6590 = vrot.slane %v5739, 5
      %v6591 = vsel %vm3373, %v6589, %v6590
      %v6592 = vrot.slane %v6590, 4
      %v6593 = vrot.slane %v5740, 5
      %v6594 = vsel %vm3373, %v6592, %v6593
      %s6595 = scalar_lea.vmem %s3, 16
      %v6596 = vld [vmem:[%s6595] sm:$0x3]
      %v6597 = vunpack.c.l.b16 %v6486
      %v6598 = vunpack.c.l.b16 %v6489
      %v6599 = vunpack.c.l.b16 %v6493
      %v6600 = vunpack.c.l.b16 %v6496
      %v6601 = vunpack.c.l.b16 %v6500
      %v6602 = vunpack.c.l.b16 %v6503
      %v6603 = vunpack.c.l.b16 %v6507
      %v6604 = vunpack.c.l.b16 %v6510
      %v6605 = vunpack.c.l.b16 %v6514
      %v6606 = vunpack.c.l.b16 %v6517
      %v6607 = vunpack.c.l.b16 %v6521
      %v6608 = vunpack.c.l.b16 %v6524
      %v6609 = vunpack.c.l.b16 %v6528
      %v6610 = vunpack.c.l.b16 %v6531
      %v6611 = vunpack.c.l.b16 %v6535
      %v6612 = vunpack.c.l.b16 %v6538
      %v6613 = vunpack.c.l.b16 %v6542
      %v6614 = vunpack.c.l.b16 %v6545
      %v6615 = vunpack.c.l.b16 %v6549
      %v6616 = vunpack.c.l.b16 %v6552
      %v6617 = vunpack.c.l.b16 %v6556
      %v6618 = vunpack.c.l.b16 %v6559
      %v6619 = vunpack.c.l.b16 %v6563
      %v6620 = vunpack.c.l.b16 %v6566
      %v6621 = vunpack.c.l.b16 %v6570
      %v6622 = vunpack.c.l.b16 %v6573
      %v6623 = vunpack.c.l.b16 %v6577
      %v6624 = vunpack.c.l.b16 %v6580
      %v6625 = vunpack.c.l.b16 %v6584
      %v6626 = vunpack.c.l.b16 %v6587
      %v6627 = vunpack.c.l.b16 %v6591
      %v6628 = vunpack.c.l.b16 %v6594
      %v6629 = vpack.c.b16 %v6598, %v6597
      %v6630 = vpack.c.b16 %v6600, %v6599
      %v6631 = vpack.c.b16 %v6602, %v6601
      %v6632 = vpack.c.b16 %v6604, %v6603
      %v6633 = vpack.c.b16 %v6606, %v6605
      %v6634 = vpack.c.b16 %v6608, %v6607
      %v6635 = vpack.c.b16 %v6610, %v6609
      %v6636 = vpack.c.b16 %v6612, %v6611
      %v6637 = vpack.c.b16 %v6614, %v6613
      %v6638 = vpack.c.b16 %v6616, %v6615
      %v6639 = vpack.c.b16 %v6618, %v6617
      %v6640 = vpack.c.b16 %v6620, %v6619
      %v6641 = vpack.c.b16 %v6622, %v6621
      %v6642 = vpack.c.b16 %v6624, %v6623
      %v6643 = vpack.c.b16 %v6626, %v6625
      %v6644 = vpack.c.b16 %v6628, %v6627
      %v6646 = vsel %vm2817, %v6629, 0
      %v6649 = vsel %vm2817, %v6630, 0
      %v6652 = vsel %vm2817, %v6631, 0
      %v6655 = vsel %vm2817, %v6632, 0
      %v6658 = vsel %vm2817, %v6633, 0
      %v6661 = vsel %vm2817, %v6634, 0
      %v6664 = vsel %vm2817, %v6635, 0
      %v6667 = vsel %vm2817, %v6636, 0
      %v6670 = vsel %vm2817, %v6637, 0
      %v6673 = vsel %vm2817, %v6638, 0
      %v6676 = vsel %vm2817, %v6639, 0
      %v6679 = vsel %vm2817, %v6640, 0
      %v6682 = vsel %vm2817, %v6641, 0
      %v6685 = vsel %vm2817, %v6642, 0
      %v6688 = vsel %vm2817, %v6643, 0
      %v6691 = vsel %vm2817, %v6644, 0
      %v6694 = vsel %vm2866, %v6596, 0
      %6696 = vmatprep.subr.bf16.mxu0 0
      %6697 = vmatpush1.bf16.msra.mxu0 %v6694
      %6698 = vmatprep.subr.bf16.mxu0 0
      %6699 = vmatpush1.bf16.msra.mxu0 0
      %6700 = vmatprep.subr.bf16.mxu0 0
      %6701 = vmatpush1.bf16.msra.mxu0 0
      %6702 = vmatprep.subr.bf16.mxu0 0
      %6703 = vmatpush1.bf16.msra.mxu0 0
      %6704 = vmatprep.subr.bf16.mxu0 0
      %6705 = vmatpush1.bf16.msra.mxu0 0
      %6706 = vmatprep.subr.bf16.mxu0 0
      %6707 = vmatpush1.bf16.msra.mxu0 0
      %6708 = vmatprep.subr.bf16.mxu0 0
      %6709 = vmatpush1.bf16.msra.mxu0 0
      %6710 = vmatprep.subr.bf16.mxu0 0
      %6711 = vmatpush1.bf16.msra.mxu0 0
      %6712 = vmatprep.subr.bf16.mxu0 0
      %6713 = vmatpush1.bf16.msra.mxu0 0
      %6714 = vmatprep.subr.bf16.mxu0 0
      %6715 = vmatpush1.bf16.msra.mxu0 0
      %6716 = vmatprep.subr.bf16.mxu0 0
      %6717 = vmatpush1.bf16.msra.mxu0 0
      %6718 = vmatprep.subr.bf16.mxu0 0
      %6719 = vmatpush1.bf16.msra.mxu0 0
      %6720 = vmatprep.subr.bf16.mxu0 0
      %6721 = vmatpush1.bf16.msra.mxu0 0
      %6722 = vmatprep.subr.bf16.mxu0 0
      %6723 = vmatpush1.bf16.msra.mxu0 0
      %6724 = vmatprep.subr.bf16.mxu0 0
      %6725 = vmatpush1.bf16.msra.mxu0 0
      %6726 = vmatprep.subr.bf16.mxu0 0
      %6727 = vmatpush1.bf16.msra.mxu0 0
      %6728 = vmatprep.mubr.bf16.mxu0 0
      %6729 = vmatmul.mubr.bf16.gmra.mrb[0].mxu0 %v6646
      %v6730 = vpop.f32.mrb[0].mxu0
      %v6731 = vadd.f32 0.0, %v6730
      %v6732 = vpop.f32.mrb[0].mxu0
      %v6733 = vpop.f32.mrb[0].mxu0
      %v6734 = vadd.f32 0.0, %v6733
      %v6735 = vpop.f32.mrb[0].mxu0
      %6736 = vmatprep.mubr.bf16.mxu0 0
      %6737 = vmatmul.mubr.bf16.gmra.mrb[0].mxu0 %v6649
      %v6738 = vpop.f32.mrb[0].mxu0
      %v6739 = vadd.f32 0.0, %v6738
      %v6740 = vpop.f32.mrb[0].mxu0
      %v6741 = vpop.f32.mrb[0].mxu0
      %v6742 = vadd.f32 0.0, %v6741
      %v6743 = vpop.f32.mrb[0].mxu0
      %6744 = vmatprep.mubr.bf16.mxu0 0
      %6745 = vmatmul.mubr.bf16.gmra.mrb[0].mxu0 %v6652
      %v6746 = vpop.f32.mrb[0].mxu0
      %v6747 = vadd.f32 0.0, %v6746
      %v6748 = vpop.f32.mrb[0].mxu0
      %v6749 = vpop.f32.mrb[0].mxu0
      %v6750 = vadd.f32 0.0, %v6749
      %v6751 = vpop.f32.mrb[0].mxu0
      %6752 = vmatprep.mubr.bf16.mxu0 0
      %6753 = vmatmul.mubr.bf16.gmra.mrb[0].mxu0 %v6655
      %v6754 = vpop.f32.mrb[0].mxu0
      %v6755 = vadd.f32 0.0, %v6754
      %v6756 = vpop.f32.mrb[0].mxu0
      %v6757 = vpop.f32.mrb[0].mxu0
      %v6758 = vadd.f32 0.0, %v6757
      %v6759 = vpop.f32.mrb[0].mxu0
      %6760 = vmatprep.mubr.bf16.mxu0 0
      %6761 = vmatmul.mubr.bf16.gmra.mrb[0].mxu0 %v6658
      %v6762 = vpop.f32.mrb[0].mxu0
      %v6763 = vadd.f32 0.0, %v6762
      %v6764 = vpop.f32.mrb[0].mxu0
      %v6765 = vpop.f32.mrb[0].mxu0
      %v6766 = vadd.f32 0.0, %v6765
      %v6767 = vpop.f32.mrb[0].mxu0
      %6768 = vmatprep.mubr.bf16.mxu0 0
      %6769 = vmatmul.mubr.bf16.gmra.mrb[0].mxu0 %v6661
      %v6770 = vpop.f32.mrb[0].mxu0
      %v6771 = vadd.f32 0.0, %v6770
      %v6772 = vpop.f32.mrb[0].mxu0
      %v6773 = vpop.f32.mrb[0].mxu0
      %v6774 = vadd.f32 0.0, %v6773
      %v6775 = vpop.f32.mrb[0].mxu0
      %6776 = vmatprep.mubr.bf16.mxu0 0
      %6777 = vmatmul.mubr.bf16.gmra.mrb[0].mxu0 %v6664
      %v6778 = vpop.f32.mrb[0].mxu0
      %v6779 = vadd.f32 0.0, %v6778
      %v6780 = vpop.f32.mrb[0].mxu0
      %v6781 = vpop.f32.mrb[0].mxu0
      %v6782 = vadd.f32 0.0, %v6781
      %v6783 = vpop.f32.mrb[0].mxu0
      %6784 = vmatprep.mubr.bf16.mxu0 0
      %6785 = vmatmul.mubr.bf16.gmra.mrb[0].mxu0 %v6667
      %v6786 = vpop.f32.mrb[0].mxu0
      %v6787 = vadd.f32 0.0, %v6786
      %v6788 = vpop.f32.mrb[0].mxu0
      %v6789 = vpop.f32.mrb[0].mxu0
      %v6790 = vadd.f32 0.0, %v6789
      %v6791 = vpop.f32.mrb[0].mxu0
      %6792 = vmatprep.mubr.bf16.mxu0 0
      %6793 = vmatmul.mubr.bf16.gmra.mrb[0].mxu0 %v6670
      %v6794 = vpop.f32.mrb[0].mxu0
      %v6795 = vadd.f32 0.0, %v6794
      %v6796 = vpop.f32.mrb[0].mxu0
      %v6797 = vpop.f32.mrb[0].mxu0
      %v6798 = vadd.f32 0.0, %v6797
      %v6799 = vpop.f32.mrb[0].mxu0
      %6800 = vmatprep.mubr.bf16.mxu0 0
      %6801 = vmatmul.mubr.bf16.gmra.mrb[0].mxu0 %v6673
      %v6802 = vpop.f32.mrb[0].mxu0
      %v6803 = vadd.f32 0.0, %v6802
      %v6804 = vpop.f32.mrb[0].mxu0
      %v6805 = vpop.f32.mrb[0].mxu0
      %v6806 = vadd.f32 0.0, %v6805
      %v6807 = vpop.f32.mrb[0].mxu0
      %6808 = vmatprep.mubr.bf16.mxu0 0
      %6809 = vmatmul.mubr.bf16.gmra.mrb[0].mxu0 %v6676
      %v6810 = vpop.f32.mrb[0].mxu0
      %v6811 = vadd.f32 0.0, %v6810
      %v6812 = vpop.f32.mrb[0].mxu0
      %v6813 = vpop.f32.mrb[0].mxu0
      %v6814 = vadd.f32 0.0, %v6813
      %v6815 = vpop.f32.mrb[0].mxu0
      %6816 = vmatprep.mubr.bf16.mxu0 0
      %6817 = vmatmul.mubr.bf16.gmra.mrb[0].mxu0 %v6679
      %v6818 = vpop.f32.mrb[0].mxu0
      %v6819 = vadd.f32 0.0, %v6818
      %v6820 = vpop.f32.mrb[0].mxu0
      %v6821 = vpop.f32.mrb[0].mxu0
      %v6822 = vadd.f32 0.0, %v6821
      %v6823 = vpop.f32.mrb[0].mxu0
      %6824 = vmatprep.mubr.bf16.mxu0 0
      %6825 = vmatmul.mubr.bf16.gmra.mrb[0].mxu0 %v6682
      %v6826 = vpop.f32.mrb[0].mxu0
      %v6827 = vadd.f32 0.0, %v6826
      %v6828 = vpop.f32.mrb[0].mxu0
      %v6829 = vpop.f32.mrb[0].mxu0
      %v6830 = vadd.f32 0.0, %v6829
      %v6831 = vpop.f32.mrb[0].mxu0
      %6832 = vmatprep.mubr.bf16.mxu0 0
      %6833 = vmatmul.mubr.bf16.gmra.mrb[0].mxu0 %v6685
      %v6834 = vpop.f32.mrb[0].mxu0
      %v6835 = vadd.f32 0.0, %v6834
      %v6836 = vpop.f32.mrb[0].mxu0
      %v6837 = vpop.f32.mrb[0].mxu0
      %v6838 = vadd.f32 0.0, %v6837
      %v6839 = vpop.f32.mrb[0].mxu0
      %6840 = vmatprep.mubr.bf16.mxu0 0
      %6841 = vmatmul.mubr.bf16.gmra.mrb[0].mxu0 %v6688
      %v6842 = vpop.f32.mrb[0].mxu0
      %v6843 = vadd.f32 0.0, %v6842
      %v6844 = vpop.f32.mrb[0].mxu0
      %v6845 = vpop.f32.mrb[0].mxu0
      %v6846 = vadd.f32 0.0, %v6845
      %v6847 = vpop.f32.mrb[0].mxu0
      %6848 = vmatprep.mubr.bf16.mxu0 0
      %6849 = vmatmul.mubr.bf16.gmra.mrb[0].mxu0 %v6691
      %v6850 = vpop.f32.mrb[0].mxu0
      %v6851 = vadd.f32 0.0, %v6850
      %v6852 = vpop.f32.mrb[0].mxu0
      %v6853 = vpop.f32.mrb[0].mxu0
      %v6854 = vadd.f32 0.0, %v6853
      %v6855 = vpop.f32.mrb[0].mxu0
      %6856 = vdwg.mxu0
      %v6857 = vadd.f32 %v6387, %v6731
      %v6858 = vadd.f32 %v6388, %v6734
      %v6859 = vadd.f32 %v6389, %v6739
      %v6860 = vadd.f32 %v6390, %v6742
      %v6861 = vadd.f32 %v6391, %v6747
      %v6862 = vadd.f32 %v6392, %v6750
      %v6863 = vadd.f32 %v6393, %v6755
      %v6864 = vadd.f32 %v6394, %v6758
      %v6865 = vadd.f32 %v6395, %v6763
      %v6866 = vadd.f32 %v6396, %v6766
      %v6867 = vadd.f32 %v6397, %v6771
      %v6868 = vadd.f32 %v6398, %v6774
      %v6869 = vadd.f32 %v6399, %v6779
      %v6870 = vadd.f32 %v6400, %v6782
      %v6871 = vadd.f32 %v6401, %v6787
      %v6872 = vadd.f32 %v6402, %v6790
      %v6873 = vadd.f32 %v6403, %v6795
      %v6874 = vadd.f32 %v6404, %v6798
      %v6875 = vadd.f32 %v6405, %v6803
      %v6876 = vadd.f32 %v6406, %v6806
      %v6877 = vadd.f32 %v6407, %v6811
      %v6878 = vadd.f32 %v6408, %v6814
      %v6879 = vadd.f32 %v6409, %v6819
      %v6880 = vadd.f32 %v6410, %v6822
      %v6881 = vadd.f32 %v6411, %v6827
      %v6882 = vadd.f32 %v6412, %v6830
      %v6883 = vadd.f32 %v6413, %v6835
      %v6884 = vadd.f32 %v6414, %v6838
      %v6885 = vadd.f32 %v6415, %v6843
      %v6886 = vadd.f32 %v6416, %v6846
      %v6887 = vadd.f32 %v6417, %v6851
      %v6888 = vadd.f32 %v6418, %v6854
      %v6889 = vld [vmem:[%s4] sm:$0x1]
      %v6891 = vlaneseq
      %v6892 = vshrl.u32 %v6891, 7
      %v6893 = vsub.s32 0, %v6892
      %v6894 = vrot.slane %v6889, %v6893
      %v6896 = vadd.f32 %v6857, %v6894
      %v6897 = vadd.f32 %v6858, %v6894
      %v6898 = vadd.f32 %v6859, %v6894
      %v6899 = vadd.f32 %v6860, %v6894
      %v6900 = vadd.f32 %v6861, %v6894
      %v6901 = vadd.f32 %v6862, %v6894
      %v6902 = vadd.f32 %v6863, %v6894
      %v6903 = vadd.f32 %v6864, %v6894
      %v6904 = vadd.f32 %v6865, %v6894
      %v6905 = vadd.f32 %v6866, %v6894
      %v6906 = vadd.f32 %v6867, %v6894
      %v6907 = vadd.f32 %v6868, %v6894
      %v6908 = vadd.f32 %v6869, %v6894
      %v6909 = vadd.f32 %v6870, %v6894
      %v6910 = vadd.f32 %v6871, %v6894
      %v6911 = vadd.f32 %v6872, %v6894
      %v6912 = vadd.f32 %v6873, %v6894
      %v6913 = vadd.f32 %v6874, %v6894
      %v6914 = vadd.f32 %v6875, %v6894
      %v6915 = vadd.f32 %v6876, %v6894
      %v6916 = vadd.f32 %v6877, %v6894
      %v6917 = vadd.f32 %v6878, %v6894
      %v6918 = vadd.f32 %v6879, %v6894
      %v6919 = vadd.f32 %v6880, %v6894
      %v6920 = vadd.f32 %v6881, %v6894
      %v6921 = vadd.f32 %v6882, %v6894
      %v6922 = vadd.f32 %v6883, %v6894
      %v6923 = vadd.f32 %v6884, %v6894
      %v6924 = vadd.f32 %v6885, %v6894
      %v6925 = vadd.f32 %v6886, %v6894
      %v6926 = vadd.f32 %v6887, %v6894
      %v6927 = vadd.f32 %v6888, %v6894
      %vm6928 = vcmask 130048
      %6929 = vst.msk [vmem:[%s224] sm:$0xff] %vm6928, %v6896
      %6930 = vst.msk [vmem:[%s224 + $0x8] sm:$0xff] %vm6928, %v6897
      %6931 = vst.msk [vmem:[%s224 + $0x10] sm:$0xff] %vm6928, %v6898
      %6932 = vst.msk [vmem:[%s224 + $0x18] sm:$0xff] %vm6928, %v6899
      %6933 = vst.msk [vmem:[%s224 + $0x20] sm:$0xff] %vm6928, %v6900
      %6934 = vst.msk [vmem:[%s224 + $0x28] sm:$0xff] %vm6928, %v6901
      %6935 = vst.msk [vmem:[%s224 + $0x30] sm:$0xff] %vm6928, %v6902
      %6936 = vst.msk [vmem:[%s224 + $0x38] sm:$0xff] %vm6928, %v6903
      %6937 = vst.msk [vmem:[%s224 + $0x40] sm:$0xff] %vm6928, %v6904
      %6938 = vst.msk [vmem:[%s224 + $0x48] sm:$0xff] %vm6928, %v6905
      %6939 = vst.msk [vmem:[%s224 + $0x50] sm:$0xff] %vm6928, %v6906
      %6940 = vst.msk [vmem:[%s224 + $0x58] sm:$0xff] %vm6928, %v6907
      %6941 = vst.msk [vmem:[%s224 + $0x60] sm:$0xff] %vm6928, %v6908
      %6942 = vst.msk [vmem:[%s224 + $0x68] sm:$0xff] %vm6928, %v6909
      %6943 = vst.msk [vmem:[%s224 + $0x70] sm:$0xff] %vm6928, %v6910
      %6944 = vst.msk [vmem:[%s224 + $0x78] sm:$0xff] %vm6928, %v6911
      %6945 = vst.msk [vmem:[%s224 + $0x80] sm:$0xff] %vm6928, %v6912
      %6946 = vst.msk [vmem:[%s224 + $0x88] sm:$0xff] %vm6928, %v6913
      %6947 = vst.msk [vmem:[%s224 + $0x90] sm:$0xff] %vm6928, %v6914
      %6948 = vst.msk [vmem:[%s224 + $0x98] sm:$0xff] %vm6928, %v6915
      %6949 = vst.msk [vmem:[%s224 + $0xa0] sm:$0xff] %vm6928, %v6916
      %6950 = vst.msk [vmem:[%s224 + $0xa8] sm:$0xff] %vm6928, %v6917
      %6951 = vst.msk [vmem:[%s224 + $0xb0] sm:$0xff] %vm6928, %v6918
      %6952 = vst.msk [vmem:[%s224 + $0xb8] sm:$0xff] %vm6928, %v6919
      %6953 = vst.msk [vmem:[%s224 + $0xc0] sm:$0xff] %vm6928, %v6920
      %6954 = vst.msk [vmem:[%s224 + $0xc8] sm:$0xff] %vm6928, %v6921
      %6955 = vst.msk [vmem:[%s224 + $0xd0] sm:$0xff] %vm6928, %v6922
      %6956 = vst.msk [vmem:[%s224 + $0xd8] sm:$0xff] %vm6928, %v6923
      %6957 = vst.msk [vmem:[%s224 + $0xe0] sm:$0xff] %vm6928, %v6924
      %6958 = vst.msk [vmem:[%s224 + $0xe8] sm:$0xff] %vm6928, %v6925
      %6959 = vst.msk [vmem:[%s224 + $0xf0] sm:$0xff] %vm6928, %v6926
      %6960 = vst.msk [vmem:[%s224 + $0xf8] sm:$0xff] %vm6928, %v6927
      %p6961 = scmp.lt.s32.totalorder %s16, 1
      %s6962 = scalar_select %p6961, %s16, 1
      %s6963 = smul.addr %s6962, 32
      %s6964 = smul.addr %s6963, 8
      %s6965 = scalar_lea.vmem %s5, %s6964
      // Predicated region
      $region41: #{downsample2_forward.1} parent=39 // pred_check
        %p6966 = pneg %p144
      $region42: #{downsample2_forward.1} parent=39 // pred_check_branch
        %6968 = sbr.rel (%p6966) target = $region44
      $region43: #{downsample2_forward.1} parent=39 // pred_region
        _
      $region44: #{downsample2_forward.1} parent=39 // pred_fallthru
        _
    $region40: #{downsample2_forward.1} parent=5 // pred_fallthru
      _
    %p6969 = scmp.le.s32.totalorder 2, %s11
    // Predicated region
    $region45: #{downsample2_forward.1} parent=5 // pred_check
      %p6970 = pneg %p6969
    $region46: #{downsample2_forward.1} parent=5 // pred_check_branch
      %6972 = sbr.rel (%p6970) target = $region48
    $region47: #{downsample2_forward.1} parent=5 // pred_region
      %s6973 = ssub.s32 %s11, 2
      // Predicated region
      $region49: #{downsample2_forward.1} parent=47 // pred_check
        %p6974 = pneg %p150
      $region50: #{downsample2_forward.1} parent=47 // pred_check_branch
        %6976 = sbr.rel (%p6974) target = $region52
      $region51: #{downsample2_forward.1} parent=47 // pred_region
        %p6977 = scmp.lt.s32.totalorder %s17, 1
        %s6978 = scalar_select %p6977, %s17, 1
        %s6979 = smul.addr %s6978, 32
        %s6980 = smul.addr %s6979, 8
        %s6981 = scalar_lea.vmem %s5, %s6980
      $region52: #{downsample2_forward.1} parent=47 // pred_fallthru
        _
    $region48: #{downsample2_forward.1} parent=5 // pred_fallthru
      _
  $region6: #{downsample2_forward.1} parent=0 // loop_footer
    %s15 = sadd.s32 1, %s11
  $region7: #{downsample2_forward.1} parent=0 // loop_footer_branch
    %10 = sbr.rel target = $region3
  $region8: #{downsample2_forward.1} parent=0 // loop_exit
    _

</llo_original>
